<compile_context>
chip_gen: v7x
topology: tpu7x:2x2x1
jax: 0.10.0
libtpu: 0.0.40
codegen_flags: <defaults>
</compile_context>

<pallas_src>
import functools

import jax
import jax.numpy as jnp
from jax import lax
from jax.experimental import pallas as pl
from jax.experimental.pallas import tpu as pltpu


# ----------------------------- fused model kernel ------------------------------

def _fused_model_kernel(x_ref, inw_ref, inb_ref, pos_ref,
                        wqkv_ref, bqkv_ref, wo_ref, bo_ref, ln1g_ref, ln1b_ref,
                        w1_ref, b1_ref, w2_ref, b2_ref, ln2g_ref, ln2b_ref,
                        outw_ref, outb_ref,
                        o_ref, h_scr, *, nhead, eps=1e-5):
    # Grid: (batch, layer).  One batch element per step on the "parallel" axis; the
    # "arbitrary" layer axis carries the activation in h_scr (VMEM scratch).
    l = pl.program_id(1)
    num_layers = pl.num_programs(1)
    s_len, d_model = h_scr.shape
    dh = d_model // nhead

    # ---- layer step 0: input projection + positional encoding into the carry ----
    @pl.when(l == 0)
    def _():
        xb = x_ref[0].astype(jnp.bfloat16)                     # (S, F)
        h_scr[...] = (jnp.dot(xb, inw_ref[...], preferred_element_type=jnp.float32)
                      + inb_ref[...] + pos_ref[...])

    h = h_scr[...]                                             # (S, D) f32
    hb = h.astype(jnp.bfloat16)

    # ---- attention sub-layer: one packed QKV matmul (scale pre-folded into Wq) ----
    qkv = (jnp.dot(hb, wqkv_ref[0], preferred_element_type=jnp.float32)
           + bqkv_ref[0])                                      # (S, 3D) f32
    q = qkv[:, :d_model].astype(jnp.bfloat16)                  # cast once
    k = qkv[:, d_model:2 * d_model].astype(jnp.bfloat16)       # cast once
    v = qkv[:, 2 * d_model:].astype(jnp.bfloat16)              # cast once

    avs = []
    for hd in range(nhead):                                    # small static head count
        sl = slice(hd * dh, (hd + 1) * dh)
        s = lax.dot_general(q[:, sl], k[:, sl], (((1,), (1,)), ((), ())),
                            preferred_element_type=jnp.float32)           # (S, S)
        s = s - jnp.max(s, axis=-1, keepdims=True)
        p = jnp.exp(s)
        p = p * pl.reciprocal(jnp.sum(p, axis=-1, keepdims=True), approx=True)
        avs.append(jnp.dot(p.astype(jnp.bfloat16), v[:, sl],
                           preferred_element_type=jnp.float32))            # (S, dh)
    # concat heads along lanes, then ONE full-contraction output projection
    av = jnp.concatenate(avs, axis=-1).astype(jnp.bfloat16)               # (S, D)
    attn = jnp.dot(av, wo_ref[0], preferred_element_type=jnp.float32) + bo_ref[0]

    z1 = attn + h                                              # residual (post-norm)
    mu1 = jnp.mean(z1, axis=-1, keepdims=True)
    zc1 = z1 - mu1
    var1 = jnp.mean(zc1 * zc1, axis=-1, keepdims=True)
    h1 = zc1 * lax.rsqrt(var1 + eps) * ln1g_ref[0] + ln1b_ref[0]

    # ---- FFN sub-layer: (S, Dff) intermediate never leaves VMEM ----
    mid = (jnp.dot(h1.astype(jnp.bfloat16), w1_ref[0],
                   preferred_element_type=jnp.float32) + b1_ref[0])
    mid = jnp.maximum(mid, 0.0)
    y = (jnp.dot(mid.astype(jnp.bfloat16), w2_ref[0],
                 preferred_element_type=jnp.float32) + b2_ref[0])
    z2 = y + h1
    mu2 = jnp.mean(z2, axis=-1, keepdims=True)
    zc2 = z2 - mu2
    var2 = jnp.mean(zc2 * zc2, axis=-1, keepdims=True)
    h2 = zc2 * lax.rsqrt(var2 + eps) * ln2g_ref[0] + ln2b_ref[0]
    h_scr[...] = h2                                            # carry to next layer step

    # ---- last layer step: mean over sequence + output projection ----
    @pl.when(l == num_layers - 1)
    def _():
        xm = jnp.mean(h2, axis=0, keepdims=True)               # (1, D)
        o_ref[0] = (jnp.dot(xm.astype(jnp.bfloat16), outw_ref[...],
                            preferred_element_type=jnp.float32) + outb_ref[...])


# ------------------------------- forward wrapper -------------------------------

def transformer_predictor_forward(params, x, nhead):
    """Pallas-backed forward matching TransformerPredictor.forward (eval mode)."""
    B, S, F = x.shape
    D = params["in_w"].shape[1]
    L = params["wqkv"].shape[0]
    Dff = params["w1"].shape[2]
    N = params["out_w"].shape[1]

    pos_s = params["pos"][:S]                                  # (S, D)
    kern = functools.partial(_fused_model_kernel, nhead=nhead)

    out3 = pl.pallas_call(
        kern,
        grid=(B, L),
        in_specs=[
            pl.BlockSpec((1, S, F), lambda b, l: (b, 0, 0)),        # x (fetched once per b)
            pl.BlockSpec((F, D), lambda b, l: (0, 0)),              # in_w (constant)
            pl.BlockSpec((1, D), lambda b, l: (0, 0)),              # in_b
            pl.BlockSpec((S, D), lambda b, l: (0, 0)),              # pos (broadcast over b)
            pl.BlockSpec((1, D, 3 * D), lambda b, l: (l, 0, 0)),    # wqkv
            pl.BlockSpec((1, 1, 3 * D), lambda b, l: (l, 0, 0)),    # bqkv
            pl.BlockSpec((1, D, D), lambda b, l: (l, 0, 0)),        # wo
            pl.BlockSpec((1, 1, D), lambda b, l: (l, 0, 0)),        # bo
            pl.BlockSpec((1, 1, D), lambda b, l: (l, 0, 0)),        # ln1_g
            pl.BlockSpec((1, 1, D), lambda b, l: (l, 0, 0)),        # ln1_b
            pl.BlockSpec((1, D, Dff), lambda b, l: (l, 0, 0)),      # w1
            pl.BlockSpec((1, 1, Dff), lambda b, l: (l, 0, 0)),      # b1
            pl.BlockSpec((1, Dff, D), lambda b, l: (l, 0, 0)),      # w2
            pl.BlockSpec((1, 1, D), lambda b, l: (l, 0, 0)),        # b2
            pl.BlockSpec((1, 1, D), lambda b, l: (l, 0, 0)),        # ln2_g
            pl.BlockSpec((1, 1, D), lambda b, l: (l, 0, 0)),        # ln2_b
            pl.BlockSpec((D, N), lambda b, l: (0, 0)),              # out_w (constant)
            pl.BlockSpec((1, N), lambda b, l: (0, 0)),              # out_b (constant)
        ],
        out_specs=pl.BlockSpec((1, 1, N), lambda b, l: (b, 0, 0)),  # written at l == L-1
        out_shape=jax.ShapeDtypeStruct((B, 1, N), jnp.float32),
        scratch_shapes=[pltpu.VMEM((S, D), jnp.float32)],           # activation carry
        compiler_params=pltpu.CompilerParams(
            dimension_semantics=("parallel", "arbitrary")),
    )(x, params["in_w"], params["in_b"], pos_s,
      params["wqkv"], params["bqkv"], params["wo"], params["bo"],
      params["ln1_g"], params["ln1_b"],
      params["w1"], params["b1"], params["w2"], params["b2"],
      params["ln2_g"], params["ln2_b"],
      params["out_w"], params["out_b"])

    return out3[:, 0, :]                                       # (B, output_size)


# ------------------------- parameters (deterministic) --------------------------

def init_params(key, input_size, d_model, nhead, num_layers, output_size,
                dim_ff=2048, max_len=1000):
    assert d_model % nhead == 0
    bf = jnp.bfloat16
    dh = d_model // nhead
    scale = float(dh) ** -0.5

    def lin(k, fan_in, fan_out):
        k1, k2 = jax.random.split(k)
        w = jax.random.normal(k1, (fan_in, fan_out), jnp.float32) / jnp.sqrt(float(fan_in))
        b = 0.01 * jax.random.normal(k2, (1, fan_out), jnp.float32)
        return w, b

    keys = jax.random.split(key, 3 + num_layers)
    params = {}
    w, b = lin(keys[0], input_size, d_model)
    params["in_w"], params["in_b"] = w.astype(bf), b
    params["pos"] = jax.random.normal(keys[1], (max_len, d_model), jnp.float32)
    w, b = lin(keys[2], d_model, output_size)
    params["out_w"], params["out_b"] = w.astype(bf), b

    wqkv, bqkv, wo, bo = [], [], [], []
    w1s, b1s, w2s, b2s = [], [], [], []
    for i in range(num_layers):
        lk = jax.random.split(keys[3 + i], 6)
        wq, bq = lin(lk[0], d_model, d_model)
        wk, bk = lin(lk[1], d_model, d_model)
        wv, bv = lin(lk[2], d_model, d_model)
        wo_i, bo_i = lin(lk[3], d_model, d_model)
        w1, b1 = lin(lk[4], d_model, dim_ff)
        w2, b2 = lin(lk[5], dim_ff, d_model)
        # Pack QKV lane-dense; pre-fold the 1/sqrt(dh) attention scale into Wq / bq.
        wqkv.append(jnp.concatenate([wq * scale, wk, wv], axis=1))   # (D, 3D)
        bqkv.append(jnp.concatenate([bq * scale, bk, bv], axis=1))   # (1, 3D)
        wo.append(wo_i)
        bo.append(bo_i)
        w1s.append(w1); b1s.append(b1); w2s.append(w2); b2s.append(b2)

    L = num_layers
    params["wqkv"] = jnp.stack(wqkv).astype(bf)                      # (L, D, 3D)
    params["bqkv"] = jnp.stack(bqkv)                                 # (L, 1, 3D)
    params["wo"] = jnp.stack(wo).astype(bf)                          # (L, D, D)
    params["bo"] = jnp.stack(bo)                                     # (L, 1, D)
    params["w1"] = jnp.stack(w1s).astype(bf)                         # (L, D, Dff)
    params["b1"] = jnp.stack(b1s)                                    # (L, 1, Dff)
    params["w2"] = jnp.stack(w2s).astype(bf)                         # (L, Dff, D)
    params["b2"] = jnp.stack(b2s)                                    # (L, 1, D)
    params["ln1_g"] = jnp.ones((L, 1, d_model), jnp.float32)
    params["ln1_b"] = jnp.zeros((L, 1, d_model), jnp.float32)
    params["ln2_g"] = jnp.ones((L, 1, d_model), jnp.float32)
    params["ln2_b"] = jnp.zeros((L, 1, d_model), jnp.float32)
    return params


# ------------------------- pure-JAX reference (for checking) -------------------

def reference_forward(params, x, nhead):
    bf = jnp.bfloat16
    B, S, _ = x.shape
    D = params["in_w"].shape[1]
    dh = D // nhead

    def mm(a, w):  # f32 input, bf16 weight, f32 accumulation (mirrors the kernel)
        return jnp.dot(a.astype(bf), w, preferred_element_type=jnp.float32)

    def ln(t, g, b):
        mu = jnp.mean(t, axis=-1, keepdims=True)
        var = jnp.mean((t - mu) ** 2, axis=-1, keepdims=True)
        return (t - mu) * lax.rsqrt(var + 1e-5) * g + b

    h = mm(x, params["in_w"]) + params["in_b"] + params["pos"][:S][None]
    num_layers = params["wqkv"].shape[0]
    for l in range(num_layers):
        qkv = mm(h, params["wqkv"][l]) + params["bqkv"][l]           # scale pre-folded
        q = qkv[..., :D].reshape(B, S, nhead, dh)
        k = qkv[..., D:2 * D].reshape(B, S, nhead, dh)
        v = qkv[..., 2 * D:].reshape(B, S, nhead, dh)
        s = jnp.einsum("bqhd,bkhd->bhqk", q.astype(bf), k.astype(bf),
                       preferred_element_type=jnp.float32)
        p = jax.nn.softmax(s, axis=-1)
        av = jnp.einsum("bhqk,bkhd->bqhd", p.astype(bf), v.astype(bf),
                        preferred_element_type=jnp.float32).reshape(B, S, D)
        attn = mm(av, params["wo"][l]) + params["bo"][l]
        h = ln(h + attn, params["ln1_g"][l], params["ln1_b"][l])
        ff = jnp.maximum(mm(h, params["w1"][l]) + params["b1"][l], 0.0)
        ff = mm(ff, params["w2"][l]) + params["b2"][l]
        h = ln(h + ff, params["ln2_g"][l], params["ln2_b"][l])
    return mm(h.mean(axis=1), params["out_w"]) + params["out_b"]


# ----------------------------------- main --------------------------------------

if __name__ == "__main__":
    B, S = 2, 8
    input_size, d_model, nhead, num_layers, output_size = 16, 32, 4, 2, 4

    key = jax.random.PRNGKey(0)
    kx, kp = jax.random.split(key)
    x = jax.random.normal(kx, (B, S, input_size), jnp.float32)
    params = init_params(kp, input_size, d_model, nhead, num_layers, output_size)

    fwd = jax.jit(functools.partial(transformer_predictor_forward, nhead=nhead))
    out = jax.block_until_ready(fwd(params, x))

    ref = jax.block_until_ready(reference_forward(params, x, nhead))
    assert out.shape == (B, output_size)
    assert jnp.allclose(out, ref, atol=2e-2, rtol=2e-2), "Pallas output mismatch vs JAX reference"

    print("KERNEL_OK")
</pallas_src>

<mosaic_0001>
module attributes {stable_mosaic.version = 11 : i64} {
  func.func @_fused_model_kernel(%arg0: i32, %arg1: i32, %arg2: memref<1x8x16xf32, #tpu.memory_space<vmem>>, %arg3: memref<16x32xbf16, #tpu.memory_space<vmem>>, %arg4: memref<1x32xf32, #tpu.memory_space<vmem>>, %arg5: memref<8x32xf32, #tpu.memory_space<vmem>>, %arg6: memref<1x32x96xbf16, #tpu.memory_space<vmem>>, %arg7: memref<1x1x96xf32, #tpu.memory_space<vmem>>, %arg8: memref<1x32x32xbf16, #tpu.memory_space<vmem>>, %arg9: memref<1x1x32xf32, #tpu.memory_space<vmem>>, %arg10: memref<1x1x32xf32, #tpu.memory_space<vmem>>, %arg11: memref<1x1x32xf32, #tpu.memory_space<vmem>>, %arg12: memref<1x32x2048xbf16, #tpu.memory_space<vmem>>, %arg13: memref<1x1x2048xf32, #tpu.memory_space<vmem>>, %arg14: memref<1x2048x32xbf16, #tpu.memory_space<vmem>>, %arg15: memref<1x1x32xf32, #tpu.memory_space<vmem>>, %arg16: memref<1x1x32xf32, #tpu.memory_space<vmem>>, %arg17: memref<1x1x32xf32, #tpu.memory_space<vmem>>, %arg18: memref<32x4xbf16, #tpu.memory_space<vmem>>, %arg19: memref<1x4xf32, #tpu.memory_space<vmem>>, %arg20: memref<1x1x4xf32, #tpu.memory_space<vmem>>, %arg21: memref<8x32xf32, #tpu.memory_space<vmem>>) attributes {dimension_semantics = [#tpu.dimension_semantics<parallel>, #tpu.dimension_semantics<arbitrary>], iteration_bounds = array<i64: 2, 2>, scalar_prefetch = 0 : i64, scratch_operands = 1 : i64, tpu.core_type = #tpu.core_type<tc>, window_params = [{transform_indices = @transform_0, window_bounds = array<i64: 1, 8, 16>}, {pipeline_mode = #tpu.pipeline_mode<synchronous>, transform_indices = @transform_1, window_bounds = array<i64: 16, 32>}, {pipeline_mode = #tpu.pipeline_mode<synchronous>, transform_indices = @transform_2, window_bounds = array<i64: 1, 32>}, {pipeline_mode = #tpu.pipeline_mode<synchronous>, transform_indices = @transform_3, window_bounds = array<i64: 8, 32>}, {transform_indices = @transform_4, window_bounds = array<i64: 1, 32, 96>}, {transform_indices = @transform_5, window_bounds = array<i64: 1, 1, 96>}, {transform_indices = @transform_6, window_bounds = array<i64: 1, 32, 32>}, {transform_indices = @transform_7, window_bounds = array<i64: 1, 1, 32>}, {transform_indices = @transform_8, window_bounds = array<i64: 1, 1, 32>}, {transform_indices = @transform_9, window_bounds = array<i64: 1, 1, 32>}, {transform_indices = @transform_10, window_bounds = array<i64: 1, 32, 2048>}, {transform_indices = @transform_11, window_bounds = array<i64: 1, 1, 2048>}, {transform_indices = @transform_12, window_bounds = array<i64: 1, 2048, 32>}, {transform_indices = @transform_13, window_bounds = array<i64: 1, 1, 32>}, {transform_indices = @transform_14, window_bounds = array<i64: 1, 1, 32>}, {transform_indices = @transform_15, window_bounds = array<i64: 1, 1, 32>}, {pipeline_mode = #tpu.pipeline_mode<synchronous>, transform_indices = @transform_16, window_bounds = array<i64: 32, 4>}, {pipeline_mode = #tpu.pipeline_mode<synchronous>, transform_indices = @transform_17, window_bounds = array<i64: 1, 4>}, {transform_indices = @transform_18, window_bounds = array<i64: 1, 1, 4>}]} {
    %c0_i32 = arith.constant 0 : i32
    %0 = arith.cmpi eq, %arg1, %c0_i32 : i32
    %1 = arith.extui %0 : i1 to i32
    %c0_i32_0 = arith.constant 0 : i32
    %2 = arith.cmpi ne, %1, %c0_i32_0 : i32
    scf.if %2 {
      %c0_71 = arith.constant 0 : index
      %c0_72 = arith.constant 0 : index
      %c0_73 = arith.constant 0 : index
      %163 = vector.load %arg2[%c0_71, %c0_72, %c0_73] : memref<1x8x16xf32, #tpu.memory_space<vmem>>, vector<1x8x16xf32>
      %164 = vector.shape_cast %163 : vector<1x8x16xf32> to vector<8x16xf32>
      %165 = arith.truncf %164 : vector<8x16xf32> to vector<8x16xbf16>
      %c0_74 = arith.constant 0 : index
      %c0_75 = arith.constant 0 : index
      %166 = vector.load %arg3[%c0_74, %c0_75] : memref<16x32xbf16, #tpu.memory_space<vmem>>, vector<16x32xbf16>
      %cst_76 = arith.constant dense<0.000000e+00> : vector<8x32xf32>
      %167 = tpu.matmul %165, %166, %cst_76 {dimension_numbers = #tpu.dot_dimension_numbers<[1], [0], [0], [1], [0, 0, 1, 1], [], []>} : vector<8x16xbf16>, vector<16x32xbf16>, vector<8x32xf32> -> vector<8x32xf32>
      %c0_77 = arith.constant 0 : index
      %c0_78 = arith.constant 0 : index
      %168 = vector.load %arg4[%c0_77, %c0_78] : memref<1x32xf32, #tpu.memory_space<vmem>>, vector<1x32xf32>
      %169 = vector.broadcast %168 : vector<1x32xf32> to vector<8x32xf32>
      %170 = arith.addf %167, %169 : vector<8x32xf32>
      %c0_79 = arith.constant 0 : index
      %c0_80 = arith.constant 0 : index
      %171 = vector.load %arg5[%c0_79, %c0_80] : memref<8x32xf32, #tpu.memory_space<vmem>>, vector<8x32xf32>
      %172 = arith.addf %170, %171 : vector<8x32xf32>
      %c0_81 = arith.constant 0 : index
      %c0_82 = arith.constant 0 : index
      %173 = vector.load %arg21[%c0_81, %c0_82] : memref<8x32xf32, #tpu.memory_space<vmem>>, vector<8x32xf32>
      tpu.vector_store %arg21[%c0_81, %c0_82], %172 {strides = array<i32>} : memref<8x32xf32, #tpu.memory_space<vmem>>, vector<8x32xf32>,
    } else {
    }
    %c0 = arith.constant 0 : index
    %c0_1 = arith.constant 0 : index
    %3 = vector.load %arg21[%c0, %c0_1] : memref<8x32xf32, #tpu.memory_space<vmem>>, vector<8x32xf32>
    %4 = arith.truncf %3 : vector<8x32xf32> to vector<8x32xbf16>
    %c0_2 = arith.constant 0 : index
    %c0_3 = arith.constant 0 : index
    %c0_4 = arith.constant 0 : index
    %5 = vector.load %arg6[%c0_2, %c0_3, %c0_4] : memref<1x32x96xbf16, #tpu.memory_space<vmem>>, vector<1x32x96xbf16>
    %6 = vector.shape_cast %5 : vector<1x32x96xbf16> to vector<32x96xbf16>
    %cst = arith.constant dense<0.000000e+00> : vector<8x96xf32>
    %7 = tpu.matmul %4, %6, %cst {dimension_numbers = #tpu.dot_dimension_numbers<[1], [0], [0], [1], [0, 0, 1, 1], [], []>} : vector<8x32xbf16>, vector<32x96xbf16>, vector<8x96xf32> -> vector<8x96xf32>
    %c0_5 = arith.constant 0 : index
    %c0_6 = arith.constant 0 : index
    %c0_7 = arith.constant 0 : index
    %8 = vector.load %arg7[%c0_5, %c0_6, %c0_7] : memref<1x1x96xf32, #tpu.memory_space<vmem>>, vector<1x1x96xf32>
    %9 = vector.shape_cast %8 : vector<1x1x96xf32> to vector<1x96xf32>
    %10 = vector.broadcast %9 : vector<1x96xf32> to vector<8x96xf32>
    %11 = arith.addf %7, %10 : vector<8x96xf32>
    %12 = vector.extract_strided_slice %11 {offsets = [0, 0], sizes = [8, 32], strides = [1, 1]} : vector<8x96xf32> to vector<8x32xf32>
    %13 = arith.truncf %12 : vector<8x32xf32> to vector<8x32xbf16>
    %14 = vector.extract_strided_slice %11 {offsets = [0, 32], sizes = [8, 32], strides = [1, 1]} : vector<8x96xf32> to vector<8x32xf32>
    %15 = arith.truncf %14 : vector<8x32xf32> to vector<8x32xbf16>
    %16 = vector.extract_strided_slice %11 {offsets = [0, 64], sizes = [8, 32], strides = [1, 1]} : vector<8x96xf32> to vector<8x32xf32>
    %17 = arith.truncf %16 : vector<8x32xf32> to vector<8x32xbf16>
    %18 = vector.extract_strided_slice %13 {offsets = [0, 0], sizes = [8, 8], strides = [1, 1]} : vector<8x32xbf16> to vector<8x8xbf16>
    %19 = vector.extract_strided_slice %15 {offsets = [0, 0], sizes = [8, 8], strides = [1, 1]} : vector<8x32xbf16> to vector<8x8xbf16>
    %cst_8 = arith.constant dense<0.000000e+00> : vector<8x8xf32>
    %20 = tpu.matmul %18, %19, %cst_8 {dimension_numbers = #tpu.dot_dimension_numbers<[1], [1], [0], [0], [0, 0, 1, 0], [], []>} : vector<8x8xbf16>, vector<8x8xbf16>, vector<8x8xf32> -> vector<8x8xf32>
    %cst_9 = arith.constant dense<0xFF800000> : vector<8xf32>
    %21 = vector.multi_reduction <maximumf>, %20, %cst_9 [1] : vector<8x8xf32> to vector<8xf32>
    %22 = vector.shape_cast %21 : vector<8xf32> to vector<8x1xf32>
    %23 = vector.broadcast %22 : vector<8x1xf32> to vector<8x8xf32>
    %24 = arith.subf %20, %23 : vector<8x8xf32>
    %25 = math.exp %24 : vector<8x8xf32>
    %cst_10 = arith.constant dense<0.000000e+00> : vector<8xf32>
    %26 = vector.multi_reduction <add>, %25, %cst_10 [1] : vector<8x8xf32> to vector<8xf32>
    %27 = vector.shape_cast %26 : vector<8xf32> to vector<8x1xf32>
    %28 = tpu.reciprocal %27 {approx = true} : vector<8x1xf32> -> vector<8x1xf32>
    %29 = vector.broadcast %28 : vector<8x1xf32> to vector<8x8xf32>
    %30 = arith.mulf %25, %29 : vector<8x8xf32>
    %31 = arith.truncf %30 : vector<8x8xf32> to vector<8x8xbf16>
    %32 = vector.extract_strided_slice %17 {offsets = [0, 0], sizes = [8, 8], strides = [1, 1]} : vector<8x32xbf16> to vector<8x8xbf16>
    %cst_11 = arith.constant dense<0.000000e+00> : vector<8x8xf32>
    %33 = tpu.matmul %31, %32, %cst_11 {dimension_numbers = #tpu.dot_dimension_numbers<[1], [0], [0], [1], [0, 0, 1, 1], [], []>} : vector<8x8xbf16>, vector<8x8xbf16>, vector<8x8xf32> -> vector<8x8xf32>
    %34 = vector.extract_strided_slice %13 {offsets = [0, 8], sizes = [8, 8], strides = [1, 1]} : vector<8x32xbf16> to vector<8x8xbf16>
    %35 = vector.extract_strided_slice %15 {offsets = [0, 8], sizes = [8, 8], strides = [1, 1]} : vector<8x32xbf16> to vector<8x8xbf16>
    %cst_12 = arith.constant dense<0.000000e+00> : vector<8x8xf32>
    %36 = tpu.matmul %34, %35, %cst_12 {dimension_numbers = #tpu.dot_dimension_numbers<[1], [1], [0], [0], [0, 0, 1, 0], [], []>} : vector<8x8xbf16>, vector<8x8xbf16>, vector<8x8xf32> -> vector<8x8xf32>
    %cst_13 = arith.constant dense<0xFF800000> : vector<8xf32>
    %37 = vector.multi_reduction <maximumf>, %36, %cst_13 [1] : vector<8x8xf32> to vector<8xf32>
    %38 = vector.shape_cast %37 : vector<8xf32> to vector<8x1xf32>
    %39 = vector.broadcast %38 : vector<8x1xf32> to vector<8x8xf32>
    %40 = arith.subf %36, %39 : vector<8x8xf32>
    %41 = math.exp %40 : vector<8x8xf32>
    %cst_14 = arith.constant dense<0.000000e+00> : vector<8xf32>
    %42 = vector.multi_reduction <add>, %41, %cst_14 [1] : vector<8x8xf32> to vector<8xf32>
    %43 = vector.shape_cast %42 : vector<8xf32> to vector<8x1xf32>
    %44 = tpu.reciprocal %43 {approx = true} : vector<8x1xf32> -> vector<8x1xf32>
    %45 = vector.broadcast %44 : vector<8x1xf32> to vector<8x8xf32>
    %46 = arith.mulf %41, %45 : vector<8x8xf32>
    %47 = arith.truncf %46 : vector<8x8xf32> to vector<8x8xbf16>
    %48 = vector.extract_strided_slice %17 {offsets = [0, 8], sizes = [8, 8], strides = [1, 1]} : vector<8x32xbf16> to vector<8x8xbf16>
    %cst_15 = arith.constant dense<0.000000e+00> : vector<8x8xf32>
    %49 = tpu.matmul %47, %48, %cst_15 {dimension_numbers = #tpu.dot_dimension_numbers<[1], [0], [0], [1], [0, 0, 1, 1], [], []>} : vector<8x8xbf16>, vector<8x8xbf16>, vector<8x8xf32> -> vector<8x8xf32>
    %50 = vector.extract_strided_slice %13 {offsets = [0, 16], sizes = [8, 8], strides = [1, 1]} : vector<8x32xbf16> to vector<8x8xbf16>
    %51 = vector.extract_strided_slice %15 {offsets = [0, 16], sizes = [8, 8], strides = [1, 1]} : vector<8x32xbf16> to vector<8x8xbf16>
    %cst_16 = arith.constant dense<0.000000e+00> : vector<8x8xf32>
    %52 = tpu.matmul %50, %51, %cst_16 {dimension_numbers = #tpu.dot_dimension_numbers<[1], [1], [0], [0], [0, 0, 1, 0], [], []>} : vector<8x8xbf16>, vector<8x8xbf16>, vector<8x8xf32> -> vector<8x8xf32>
    %cst_17 = arith.constant dense<0xFF800000> : vector<8xf32>
    %53 = vector.multi_reduction <maximumf>, %52, %cst_17 [1] : vector<8x8xf32> to vector<8xf32>
    %54 = vector.shape_cast %53 : vector<8xf32> to vector<8x1xf32>
    %55 = vector.broadcast %54 : vector<8x1xf32> to vector<8x8xf32>
    %56 = arith.subf %52, %55 : vector<8x8xf32>
    %57 = math.exp %56 : vector<8x8xf32>
    %cst_18 = arith.constant dense<0.000000e+00> : vector<8xf32>
    %58 = vector.multi_reduction <add>, %57, %cst_18 [1] : vector<8x8xf32> to vector<8xf32>
    %59 = vector.shape_cast %58 : vector<8xf32> to vector<8x1xf32>
    %60 = tpu.reciprocal %59 {approx = true} : vector<8x1xf32> -> vector<8x1xf32>
    %61 = vector.broadcast %60 : vector<8x1xf32> to vector<8x8xf32>
    %62 = arith.mulf %57, %61 : vector<8x8xf32>
    %63 = arith.truncf %62 : vector<8x8xf32> to vector<8x8xbf16>
    %64 = vector.extract_strided_slice %17 {offsets = [0, 16], sizes = [8, 8], strides = [1, 1]} : vector<8x32xbf16> to vector<8x8xbf16>
    %cst_19 = arith.constant dense<0.000000e+00> : vector<8x8xf32>
    %65 = tpu.matmul %63, %64, %cst_19 {dimension_numbers = #tpu.dot_dimension_numbers<[1], [0], [0], [1], [0, 0, 1, 1], [], []>} : vector<8x8xbf16>, vector<8x8xbf16>, vector<8x8xf32> -> vector<8x8xf32>
    %66 = vector.extract_strided_slice %13 {offsets = [0, 24], sizes = [8, 8], strides = [1, 1]} : vector<8x32xbf16> to vector<8x8xbf16>
    %67 = vector.extract_strided_slice %15 {offsets = [0, 24], sizes = [8, 8], strides = [1, 1]} : vector<8x32xbf16> to vector<8x8xbf16>
    %cst_20 = arith.constant dense<0.000000e+00> : vector<8x8xf32>
    %68 = tpu.matmul %66, %67, %cst_20 {dimension_numbers = #tpu.dot_dimension_numbers<[1], [1], [0], [0], [0, 0, 1, 0], [], []>} : vector<8x8xbf16>, vector<8x8xbf16>, vector<8x8xf32> -> vector<8x8xf32>
    %cst_21 = arith.constant dense<0xFF800000> : vector<8xf32>
    %69 = vector.multi_reduction <maximumf>, %68, %cst_21 [1] : vector<8x8xf32> to vector<8xf32>
    %70 = vector.shape_cast %69 : vector<8xf32> to vector<8x1xf32>
    %71 = vector.broadcast %70 : vector<8x1xf32> to vector<8x8xf32>
    %72 = arith.subf %68, %71 : vector<8x8xf32>
    %73 = math.exp %72 : vector<8x8xf32>
    %cst_22 = arith.constant dense<0.000000e+00> : vector<8xf32>
    %74 = vector.multi_reduction <add>, %73, %cst_22 [1] : vector<8x8xf32> to vector<8xf32>
    %75 = vector.shape_cast %74 : vector<8xf32> to vector<8x1xf32>
    %76 = tpu.reciprocal %75 {approx = true} : vector<8x1xf32> -> vector<8x1xf32>
    %77 = vector.broadcast %76 : vector<8x1xf32> to vector<8x8xf32>
    %78 = arith.mulf %73, %77 : vector<8x8xf32>
    %79 = arith.truncf %78 : vector<8x8xf32> to vector<8x8xbf16>
    %80 = vector.extract_strided_slice %17 {offsets = [0, 24], sizes = [8, 8], strides = [1, 1]} : vector<8x32xbf16> to vector<8x8xbf16>
    %cst_23 = arith.constant dense<0.000000e+00> : vector<8x8xf32>
    %81 = tpu.matmul %79, %80, %cst_23 {dimension_numbers = #tpu.dot_dimension_numbers<[1], [0], [0], [1], [0, 0, 1, 1], [], []>} : vector<8x8xbf16>, vector<8x8xbf16>, vector<8x8xf32> -> vector<8x8xf32>
    %82 = tpu.concatenate %33, %49, %65, %81 in 1 : vector<8x8xf32>, vector<8x8xf32>, vector<8x8xf32>, vector<8x8xf32> -> vector<8x32xf32>
    %83 = arith.truncf %82 : vector<8x32xf32> to vector<8x32xbf16>
    %c0_24 = arith.constant 0 : index
    %c0_25 = arith.constant 0 : index
    %c0_26 = arith.constant 0 : index
    %84 = vector.load %arg8[%c0_24, %c0_25, %c0_26] : memref<1x32x32xbf16, #tpu.memory_space<vmem>>, vector<1x32x32xbf16>
    %85 = vector.shape_cast %84 : vector<1x32x32xbf16> to vector<32x32xbf16>
    %cst_27 = arith.constant dense<0.000000e+00> : vector<8x32xf32>
    %86 = tpu.matmul %83, %85, %cst_27 {dimension_numbers = #tpu.dot_dimension_numbers<[1], [0], [0], [1], [0, 0, 1, 1], [], []>} : vector<8x32xbf16>, vector<32x32xbf16>, vector<8x32xf32> -> vector<8x32xf32>
    %c0_28 = arith.constant 0 : index
    %c0_29 = arith.constant 0 : index
    %c0_30 = arith.constant 0 : index
    %87 = vector.load %arg9[%c0_28, %c0_29, %c0_30] : memref<1x1x32xf32, #tpu.memory_space<vmem>>, vector<1x1x32xf32>
    %88 = vector.shape_cast %87 : vector<1x1x32xf32> to vector<1x32xf32>
    %89 = vector.broadcast %88 : vector<1x32xf32> to vector<8x32xf32>
    %90 = arith.addf %86, %89 : vector<8x32xf32>
    %91 = arith.addf %90, %3 : vector<8x32xf32>
    %cst_31 = arith.constant dense<0.000000e+00> : vector<8xf32>
    %92 = vector.multi_reduction <add>, %91, %cst_31 [1] : vector<8x32xf32> to vector<8xf32>
    %93 = vector.shape_cast %92 : vector<8xf32> to vector<8x1xf32>
    %cst_32 = arith.constant 3.200000e+01 : f32
    %94 = vector.broadcast %cst_32 : f32 to vector<8x1xf32>
    %95 = arith.divf %93, %94 : vector<8x1xf32>
    %96 = vector.broadcast %95 : vector<8x1xf32> to vector<8x32xf32>
    %97 = arith.subf %91, %96 : vector<8x32xf32>
    %98 = arith.mulf %97, %97 : vector<8x32xf32>
    %cst_33 = arith.constant dense<0.000000e+00> : vector<8xf32>
    %99 = vector.multi_reduction <add>, %98, %cst_33 [1] : vector<8x32xf32> to vector<8xf32>
    %100 = vector.shape_cast %99 : vector<8xf32> to vector<8x1xf32>
    %cst_34 = arith.constant 3.200000e+01 : f32
    %101 = vector.broadcast %cst_34 : f32 to vector<8x1xf32>
    %102 = arith.divf %100, %101 : vector<8x1xf32>
    %cst_35 = arith.constant 9.99999974E-6 : f32
    %103 = vector.broadcast %cst_35 : f32 to vector<8x1xf32>
    %104 = arith.addf %102, %103 : vector<8x1xf32>
    %105 = math.rsqrt %104 : vector<8x1xf32>
    %106 = vector.broadcast %105 : vector<8x1xf32> to vector<8x32xf32>
    %107 = arith.mulf %97, %106 : vector<8x32xf32>
    %c0_36 = arith.constant 0 : index
    %c0_37 = arith.constant 0 : index
    %c0_38 = arith.constant 0 : index
    %108 = vector.load %arg10[%c0_36, %c0_37, %c0_38] : memref<1x1x32xf32, #tpu.memory_space<vmem>>, vector<1x1x32xf32>
    %109 = vector.shape_cast %108 : vector<1x1x32xf32> to vector<1x32xf32>
    %110 = vector.broadcast %109 : vector<1x32xf32> to vector<8x32xf32>
    %111 = arith.mulf %107, %110 : vector<8x32xf32>
    %c0_39 = arith.constant 0 : index
    %c0_40 = arith.constant 0 : index
    %c0_41 = arith.constant 0 : index
    %112 = vector.load %arg11[%c0_39, %c0_40, %c0_41] : memref<1x1x32xf32, #tpu.memory_space<vmem>>, vector<1x1x32xf32>
    %113 = vector.shape_cast %112 : vector<1x1x32xf32> to vector<1x32xf32>
    %114 = vector.broadcast %113 : vector<1x32xf32> to vector<8x32xf32>
    %115 = arith.addf %111, %114 : vector<8x32xf32>
    %116 = arith.truncf %115 : vector<8x32xf32> to vector<8x32xbf16>
    %c0_42 = arith.constant 0 : index
    %c0_43 = arith.constant 0 : index
    %c0_44 = arith.constant 0 : index
    %117 = vector.load %arg12[%c0_42, %c0_43, %c0_44] : memref<1x32x2048xbf16, #tpu.memory_space<vmem>>, vector<1x32x2048xbf16>
    %118 = vector.shape_cast %117 : vector<1x32x2048xbf16> to vector<32x2048xbf16>
    %cst_45 = arith.constant dense<0.000000e+00> : vector<8x2048xf32>
    %119 = tpu.matmul %116, %118, %cst_45 {dimension_numbers = #tpu.dot_dimension_numbers<[1], [0], [0], [1], [0, 0, 1, 1], [], []>} : vector<8x32xbf16>, vector<32x2048xbf16>, vector<8x2048xf32> -> vector<8x2048xf32>
    %c0_46 = arith.constant 0 : index
    %c0_47 = arith.constant 0 : index
    %c0_48 = arith.constant 0 : index
    %120 = vector.load %arg13[%c0_46, %c0_47, %c0_48] : memref<1x1x2048xf32, #tpu.memory_space<vmem>>, vector<1x1x2048xf32>
    %121 = vector.shape_cast %120 : vector<1x1x2048xf32> to vector<1x2048xf32>
    %122 = vector.broadcast %121 : vector<1x2048xf32> to vector<8x2048xf32>
    %123 = arith.addf %119, %122 : vector<8x2048xf32>
    %cst_49 = arith.constant 0.000000e+00 : f32
    %124 = vector.broadcast %cst_49 : f32 to vector<8x2048xf32>
    %125 = arith.maximumf %123, %124 : vector<8x2048xf32>
    %126 = arith.truncf %125 : vector<8x2048xf32> to vector<8x2048xbf16>
    %c0_50 = arith.constant 0 : index
    %c0_51 = arith.constant 0 : index
    %c0_52 = arith.constant 0 : index
    %127 = vector.load %arg14[%c0_50, %c0_51, %c0_52] : memref<1x2048x32xbf16, #tpu.memory_space<vmem>>, vector<1x2048x32xbf16>
    %128 = vector.shape_cast %127 : vector<1x2048x32xbf16> to vector<2048x32xbf16>
    %cst_53 = arith.constant dense<0.000000e+00> : vector<8x32xf32>
    %129 = tpu.matmul %126, %128, %cst_53 {dimension_numbers = #tpu.dot_dimension_numbers<[1], [0], [0], [1], [0, 0, 1, 1], [], []>} : vector<8x2048xbf16>, vector<2048x32xbf16>, vector<8x32xf32> -> vector<8x32xf32>
    %c0_54 = arith.constant 0 : index
    %c0_55 = arith.constant 0 : index
    %c0_56 = arith.constant 0 : index
    %130 = vector.load %arg15[%c0_54, %c0_55, %c0_56] : memref<1x1x32xf32, #tpu.memory_space<vmem>>, vector<1x1x32xf32>
    %131 = vector.shape_cast %130 : vector<1x1x32xf32> to vector<1x32xf32>
    %132 = vector.broadcast %131 : vector<1x32xf32> to vector<8x32xf32>
    %133 = arith.addf %129, %132 : vector<8x32xf32>
    %134 = arith.addf %133, %115 : vector<8x32xf32>
    %cst_57 = arith.constant dense<0.000000e+00> : vector<8xf32>
    %135 = vector.multi_reduction <add>, %134, %cst_57 [1] : vector<8x32xf32> to vector<8xf32>
    %136 = vector.shape_cast %135 : vector<8xf32> to vector<8x1xf32>
    %cst_58 = arith.constant 3.200000e+01 : f32
    %137 = vector.broadcast %cst_58 : f32 to vector<8x1xf32>
    %138 = arith.divf %136, %137 : vector<8x1xf32>
    %139 = vector.broadcast %138 : vector<8x1xf32> to vector<8x32xf32>
    %140 = arith.subf %134, %139 : vector<8x32xf32>
    %141 = arith.mulf %140, %140 : vector<8x32xf32>
    %cst_59 = arith.constant dense<0.000000e+00> : vector<8xf32>
    %142 = vector.multi_reduction <add>, %141, %cst_59 [1] : vector<8x32xf32> to vector<8xf32>
    %143 = vector.shape_cast %142 : vector<8xf32> to vector<8x1xf32>
    %cst_60 = arith.constant 3.200000e+01 : f32
    %144 = vector.broadcast %cst_60 : f32 to vector<8x1xf32>
    %145 = arith.divf %143, %144 : vector<8x1xf32>
    %cst_61 = arith.constant 9.99999974E-6 : f32
    %146 = vector.broadcast %cst_61 : f32 to vector<8x1xf32>
    %147 = arith.addf %145, %146 : vector<8x1xf32>
    %148 = math.rsqrt %147 : vector<8x1xf32>
    %149 = vector.broadcast %148 : vector<8x1xf32> to vector<8x32xf32>
    %150 = arith.mulf %140, %149 : vector<8x32xf32>
    %c0_62 = arith.constant 0 : index
    %c0_63 = arith.constant 0 : index
    %c0_64 = arith.constant 0 : index
    %151 = vector.load %arg16[%c0_62, %c0_63, %c0_64] : memref<1x1x32xf32, #tpu.memory_space<vmem>>, vector<1x1x32xf32>
    %152 = vector.shape_cast %151 : vector<1x1x32xf32> to vector<1x32xf32>
    %153 = vector.broadcast %152 : vector<1x32xf32> to vector<8x32xf32>
    %154 = arith.mulf %150, %153 : vector<8x32xf32>
    %c0_65 = arith.constant 0 : index
    %c0_66 = arith.constant 0 : index
    %c0_67 = arith.constant 0 : index
    %155 = vector.load %arg17[%c0_65, %c0_66, %c0_67] : memref<1x1x32xf32, #tpu.memory_space<vmem>>, vector<1x1x32xf32>
    %156 = vector.shape_cast %155 : vector<1x1x32xf32> to vector<1x32xf32>
    %157 = vector.broadcast %156 : vector<1x32xf32> to vector<8x32xf32>
    %158 = arith.addf %154, %157 : vector<8x32xf32>
    %c0_68 = arith.constant 0 : index
    %c0_69 = arith.constant 0 : index
    %159 = vector.load %arg21[%c0_68, %c0_69] : memref<8x32xf32, #tpu.memory_space<vmem>>, vector<8x32xf32>
    tpu.vector_store %arg21[%c0_68, %c0_69], %158 {strides = array<i32>} : memref<8x32xf32, #tpu.memory_space<vmem>>, vector<8x32xf32>,
    %c1_i32 = arith.constant 1 : i32
    %160 = arith.cmpi eq, %arg1, %c1_i32 : i32
    %161 = arith.extui %160 : i1 to i32
    %c0_i32_70 = arith.constant 0 : i32
    %162 = arith.cmpi ne, %161, %c0_i32_70 : i32
    scf.if %162 {
      %cst_71 = arith.constant dense<0.000000e+00> : vector<32xf32>
      %163 = vector.multi_reduction <add>, %158, %cst_71 [0] : vector<8x32xf32> to vector<32xf32>
      %164 = vector.shape_cast %163 : vector<32xf32> to vector<1x32xf32>
      %cst_72 = arith.constant 8.000000e+00 : f32
      %165 = vector.broadcast %cst_72 : f32 to vector<1x32xf32>
      %166 = arith.divf %164, %165 : vector<1x32xf32>
      %167 = arith.truncf %166 : vector<1x32xf32> to vector<1x32xbf16>
      %c0_73 = arith.constant 0 : index
      %c0_74 = arith.constant 0 : index
      %168 = vector.load %arg18[%c0_73, %c0_74] : memref<32x4xbf16, #tpu.memory_space<vmem>>, vector<32x4xbf16>
      %cst_75 = arith.constant dense<0.000000e+00> : vector<1x4xf32>
      %169 = tpu.matmul %167, %168, %cst_75 {dimension_numbers = #tpu.dot_dimension_numbers<[1], [0], [0], [1], [0, 0, 1, 1], [], []>} : vector<1x32xbf16>, vector<32x4xbf16>, vector<1x4xf32> -> vector<1x4xf32>
      %c0_76 = arith.constant 0 : index
      %c0_77 = arith.constant 0 : index
      %170 = vector.load %arg19[%c0_76, %c0_77] : memref<1x4xf32, #tpu.memory_space<vmem>>, vector<1x4xf32>
      %171 = arith.addf %169, %170 : vector<1x4xf32>
      %c0_78 = arith.constant 0 : index
      %c0_79 = arith.constant 0 : index
      %c0_80 = arith.constant 0 : index
      %172 = vector.load %arg20[%c0_78, %c0_79, %c0_80] : memref<1x1x4xf32, #tpu.memory_space<vmem>>, vector<1x1x4xf32>
      %173 = vector.shape_cast %172 : vector<1x1x4xf32> to vector<1x4xf32>
      %174 = vector.shape_cast %171 : vector<1x4xf32> to vector<1x1x4xf32>
      tpu.vector_store %arg20[%c0_78, %c0_79, %c0_80], %174 {strides = array<i32>} : memref<1x1x4xf32, #tpu.memory_space<vmem>>, vector<1x1x4xf32>,
    } else {
    }
    return
  }
  func.func @transform_0(%arg0: i32, %arg1: i32) -> (i32, i32, i32) {
    %c0_i32 = arith.constant 0 : i32
    %c0_i32_0 = arith.constant 0 : i32
    %c0_i32_1 = arith.constant 0 : i32
    return %arg0, %c0_i32, %c0_i32_0 : i32, i32, i32
  }
  func.func @transform_1(%arg0: i32, %arg1: i32) -> (i32, i32) {
    %c0_i32 = arith.constant 0 : i32
    %c0_i32_0 = arith.constant 0 : i32
    %c0_i32_1 = arith.constant 0 : i32
    return %c0_i32, %c0_i32_0 : i32, i32
  }
  func.func @transform_2(%arg0: i32, %arg1: i32) -> (i32, i32) {
    %c0_i32 = arith.constant 0 : i32
    %c0_i32_0 = arith.constant 0 : i32
    %c0_i32_1 = arith.constant 0 : i32
    return %c0_i32, %c0_i32_0 : i32, i32
  }
  func.func @transform_3(%arg0: i32, %arg1: i32) -> (i32, i32) {
    %c0_i32 = arith.constant 0 : i32
    %c0_i32_0 = arith.constant 0 : i32
    %c0_i32_1 = arith.constant 0 : i32
    return %c0_i32, %c0_i32_0 : i32, i32
  }
  func.func @transform_4(%arg0: i32, %arg1: i32) -> (i32, i32, i32) {
    %c0_i32 = arith.constant 0 : i32
    %c0_i32_0 = arith.constant 0 : i32
    %c0_i32_1 = arith.constant 0 : i32
    return %arg1, %c0_i32, %c0_i32_0 : i32, i32, i32
  }
  func.func @transform_5(%arg0: i32, %arg1: i32) -> (i32, i32, i32) {
    %c0_i32 = arith.constant 0 : i32
    %c0_i32_0 = arith.constant 0 : i32
    %c0_i32_1 = arith.constant 0 : i32
    return %arg1, %c0_i32, %c0_i32_0 : i32, i32, i32
  }
  func.func @transform_6(%arg0: i32, %arg1: i32) -> (i32, i32, i32) {
    %c0_i32 = arith.constant 0 : i32
    %c0_i32_0 = arith.constant 0 : i32
    %c0_i32_1 = arith.constant 0 : i32
    return %arg1, %c0_i32, %c0_i32_0 : i32, i32, i32
  }
  func.func @transform_7(%arg0: i32, %arg1: i32) -> (i32, i32, i32) {
    %c0_i32 = arith.constant 0 : i32
    %c0_i32_0 = arith.constant 0 : i32
    %c0_i32_1 = arith.constant 0 : i32
    return %arg1, %c0_i32, %c0_i32_0 : i32, i32, i32
  }
  func.func @transform_8(%arg0: i32, %arg1: i32) -> (i32, i32, i32) {
    %c0_i32 = arith.constant 0 : i32
    %c0_i32_0 = arith.constant 0 : i32
    %c0_i32_1 = arith.constant 0 : i32
    return %arg1, %c0_i32, %c0_i32_0 : i32, i32, i32
  }
  func.func @transform_9(%arg0: i32, %arg1: i32) -> (i32, i32, i32) {
    %c0_i32 = arith.constant 0 : i32
    %c0_i32_0 = arith.constant 0 : i32
    %c0_i32_1 = arith.constant 0 : i32
    return %arg1, %c0_i32, %c0_i32_0 : i32, i32, i32
  }
  func.func @transform_10(%arg0: i32, %arg1: i32) -> (i32, i32, i32) {
    %c0_i32 = arith.constant 0 : i32
    %c0_i32_0 = arith.constant 0 : i32
    %c0_i32_1 = arith.constant 0 : i32
    return %arg1, %c0_i32, %c0_i32_0 : i32, i32, i32
  }
  func.func @transform_11(%arg0: i32, %arg1: i32) -> (i32, i32, i32) {
    %c0_i32 = arith.constant 0 : i32
    %c0_i32_0 = arith.constant 0 : i32
    %c0_i32_1 = arith.constant 0 : i32
    return %arg1, %c0_i32, %c0_i32_0 : i32, i32, i32
  }
  func.func @transform_12(%arg0: i32, %arg1: i32) -> (i32, i32, i32) {
    %c0_i32 = arith.constant 0 : i32
    %c0_i32_0 = arith.constant 0 : i32
    %c0_i32_1 = arith.constant 0 : i32
    return %arg1, %c0_i32, %c0_i32_0 : i32, i32, i32
  }
  func.func @transform_13(%arg0: i32, %arg1: i32) -> (i32, i32, i32) {
    %c0_i32 = arith.constant 0 : i32
    %c0_i32_0 = arith.constant 0 : i32
    %c0_i32_1 = arith.constant 0 : i32
    return %arg1, %c0_i32, %c0_i32_0 : i32, i32, i32
  }
  func.func @transform_14(%arg0: i32, %arg1: i32) -> (i32, i32, i32) {
    %c0_i32 = arith.constant 0 : i32
    %c0_i32_0 = arith.constant 0 : i32
    %c0_i32_1 = arith.constant 0 : i32
    return %arg1, %c0_i32, %c0_i32_0 : i32, i32, i32
  }
  func.func @transform_15(%arg0: i32, %arg1: i32) -> (i32, i32, i32) {
    %c0_i32 = arith.constant 0 : i32
    %c0_i32_0 = arith.constant 0 : i32
    %c0_i32_1 = arith.constant 0 : i32
    return %arg1, %c0_i32, %c0_i32_0 : i32, i32, i32
  }
  func.func @transform_16(%arg0: i32, %arg1: i32) -> (i32, i32) {
    %c0_i32 = arith.constant 0 : i32
    %c0_i32_0 = arith.constant 0 : i32
    %c0_i32_1 = arith.constant 0 : i32
    return %c0_i32, %c0_i32_0 : i32, i32
  }
  func.func @transform_17(%arg0: i32, %arg1: i32) -> (i32, i32) {
    %c0_i32 = arith.constant 0 : i32
    %c0_i32_0 = arith.constant 0 : i32
    %c0_i32_1 = arith.constant 0 : i32
    return %c0_i32, %c0_i32_0 : i32, i32
  }
  func.func @transform_18(%arg0: i32, %arg1: i32) -> (i32, i32, i32) {
    %c0_i32 = arith.constant 0 : i32
    %c0_i32_0 = arith.constant 0 : i32
    %c0_i32_1 = arith.constant 0 : i32
    return %arg0, %c0_i32, %c0_i32_0 : i32, i32, i32
  }
}

</mosaic_0001>

<llo_original>
// kernel: transformer_predictor_forward.1
$region0: #{transformer_predictor_forward.1}
  #allocation0 [shape = 'u32[]', space=smem, size = 0x4, offset = 0x4, fixed_abs, tag = 'smem constant byte address 0x4 - core index']
  #allocation1 [shape = 'u32[144,128]{1,0:T(1,128)}', space=vmem, size = 0x12000, scoped, tag = 'internal scratch']
  #allocation2 [shape = 'f32[8,32]{1,0:T(8,128)}', space=vmem, size = 0x1000, scoped, tag = 'scratch operand']
  %s0 = inlined_call_operand.vmem [shape: f32[2,8,16], index: 0, kind: input, shape index: {}]
  %s1 = inlined_call_operand.vmem [shape: bf16[16,32], index: 1, kind: input, shape index: {}]
  %s2 = inlined_call_operand.vmem [shape: f32[1,32], index: 2, kind: input, shape index: {}]
  %s3 = inlined_call_operand.vmem [shape: f32[8,32], index: 3, kind: input, shape index: {}]
  %s4 = inlined_call_operand.vmem [shape: bf16[2,32,96], index: 4, kind: input, shape index: {}]
  %s5 = inlined_call_operand.vmem [shape: f32[2,1,96], index: 5, kind: input, shape index: {}]
  %s6 = inlined_call_operand.vmem [shape: bf16[2,32,32], index: 6, kind: input, shape index: {}]
  %s7 = inlined_call_operand.vmem [shape: f32[2,1,32], index: 7, kind: input, shape index: {}]
  %s8 = inlined_call_operand.vmem [shape: f32[2,1,32], index: 8, kind: input, shape index: {}]
  %s9 = inlined_call_operand.vmem [shape: f32[2,1,32], index: 9, kind: input, shape index: {}]
  %s10 = inlined_call_operand.vmem [shape: bf16[2,32,2048], index: 10, kind: input, shape index: {}]
  %s11 = inlined_call_operand.vmem [shape: f32[2,1,2048], index: 11, kind: input, shape index: {}]
  %s12 = inlined_call_operand.vmem [shape: bf16[2,2048,32], index: 12, kind: input, shape index: {}]
  %s13 = inlined_call_operand.vmem [shape: f32[2,1,32], index: 13, kind: input, shape index: {}]
  %s14 = inlined_call_operand.vmem [shape: f32[2,1,32], index: 14, kind: input, shape index: {}]
  %s15 = inlined_call_operand.vmem [shape: f32[2,1,32], index: 15, kind: input, shape index: {}]
  %s16 = inlined_call_operand.vmem [shape: bf16[32,4], index: 16, kind: input, shape index: {}]
  %s17 = inlined_call_operand.vmem [shape: f32[1,4], index: 17, kind: input, shape index: {}]
  %s18 = inlined_call_operand.hbm [shape: f32[2,1,4], index: 18, kind: output, shape index: {}]
  %s19 = sld [smem:[#allocation0]]
  $region113: #{transformer_predictor_forward.1} parent=0
    _
  %s21 = ssub.s32 1, %s19
  %s22 = scalar_select 0, %s21, %s19
  $region1: #{transformer_predictor_forward.1} parent=0
    #allocation3 [shape = 'u8[1024]{0}', space=vmem, size = 0x400, scoped, tag = 'output window, operand 0']
    #allocation4 [shape = 's32[2]{0}', space=sflag, size = 0x8, scoped, tag = 'scoped memory for transformer_predictor_forward.1']
    %23 = vsyncpa [#allocation4], 0
    %s24 = scalar_lea.sflag [#allocation4], 1
    %25 = vsyncpa %s24, 0
    loop: start=0, step=1, limit=6
    $region2: #{transformer_predictor_forward.1} parent=1 // loop_pre_header
      _
    $region3: #{transformer_predictor_forward.1} parent=1 // loop_header
      %s27 = sphi 0, %s31
      %p28 = scmp.ge.s32.totalorder %s27, 6
      %s34 = sphi 0, %s46
      %s35 = sphi 0, %s42
      %s36 = sphi 0, %s34
      %s37 = sphi 0, %s35
      %s38 = sphi 0, %s36
      %s39 = sphi 0, %s37
      %s49 = sphi 0, %s51
      %s52 = sphi 0, %s49
      %s53 = sphi 0, %s52
      %s69 = sphi 0, %s53
      %s73 = sphi 0, %s73
      %s75 = sphi 0, %s73
      %s76 = sphi 0, %s75
      %s90 = sphi 0, %s76
      %s94 = sphi 0, %s94
      %s96 = sphi 0, %s94
      %s97 = sphi 0, %s96
      %s111 = sphi 0, %s97
      %s115 = sphi 0, %s115
      %s117 = sphi 0, %s115
      %s118 = sphi 0, %s117
      %s132 = sphi 0, %s118
      %s138 = sphi 0, %s140
      %s141 = sphi 0, %s138
      %s142 = sphi 0, %s141
      %s158 = sphi 0, %s142
      %s164 = sphi 0, %s166
      %s167 = sphi 0, %s164
      %s168 = sphi 0, %s167
      %s184 = sphi 0, %s168
      %s190 = sphi 0, %s192
      %s193 = sphi 0, %s190
      %s194 = sphi 0, %s193
      %s210 = sphi 0, %s194
      %s216 = sphi 0, %s218
      %s219 = sphi 0, %s216
      %s220 = sphi 0, %s219
      %s236 = sphi 0, %s220
      %s242 = sphi 0, %s244
      %s245 = sphi 0, %s242
      %s246 = sphi 0, %s245
      %s262 = sphi 0, %s246
      %s268 = sphi 0, %s270
      %s271 = sphi 0, %s268
      %s272 = sphi 0, %s271
      %s288 = sphi 0, %s272
      %s294 = sphi 0, %s296
      %s297 = sphi 0, %s294
      %s298 = sphi 0, %s297
      %s314 = sphi 0, %s298
      %s320 = sphi 0, %s322
      %s323 = sphi 0, %s320
      %s324 = sphi 0, %s323
      %s340 = sphi 0, %s324
      %s346 = sphi 0, %s348
      %s349 = sphi 0, %s346
      %s350 = sphi 0, %s349
      %s366 = sphi 0, %s350
      %s372 = sphi 0, %s374
      %s375 = sphi 0, %s372
      %s376 = sphi 0, %s375
      %s392 = sphi 0, %s376
      %s398 = sphi 0, %s400
      %s401 = sphi 0, %s398
      %s402 = sphi 0, %s401
      %s418 = sphi 0, %s402
      %s424 = sphi 0, %s426
      %s427 = sphi 0, %s424
      %s428 = sphi 0, %s427
      %s444 = sphi 0, %s428
      %s448 = sphi 0, %s448
      %s450 = sphi 0, %s448
      %s451 = sphi 0, %s450
      %s465 = sphi 0, %s451
      %s469 = sphi 0, %s469
      %s471 = sphi 0, %s469
      %s472 = sphi 0, %s471
      %s486 = sphi 0, %s472
      %s492 = sphi 0, %s494
      %s495 = sphi 0, %s492
      %s496 = sphi 0, %s495
      %s512 = sphi 0, %s496
    $region4: #{transformer_predictor_forward.1} parent=1 // loop_header_branch
      %30 = sbr.rel (%p28) target = $region8
    $region5: #{transformer_predictor_forward.1} parent=1 // loop_body
      %s32 = ssub.s32 %s27, 1
      %s33 = ssub.s32 %s27, 2
      %s40 = sadd.s32 1, %s35
      %p41 = scmp.ge.s32.totalorder %s40, 2
      %s42 = scalar_select %p41, 0, %s40
      %s43 = sadd.s32 1, %s34
      %s44 = scalar_select %p41, %s43, %s34
      %p45 = scmp.ge.s32.totalorder %s44, 2
      %s46 = scalar_select %p45, 0, %s44
      %s47 = ssub.s32 %s34, %s46
      %p48 = scmp.eq.s32.totalorder %s47, 0
      %s50 = sadd.s32 %s49, 1
      %s51 = scalar_select %p48, %s49, %s50
      %p54 = pneg %p48
      %p55 = scmp.eq.s32.totalorder %s27, 3
      %p56 = por %p54, %p55
      %p57 = scmp.ne.s32.totalorder %s49, %s52
      %p58 = scmp.eq.s32.totalorder %s27, 0
      %p59 = por %p57, %p58
      %p60 = scmp.ne.s32.totalorder %s49, %s52
      %p61 = scmp.eq.s32.totalorder %s32, 3
      %p62 = por %p60, %p61
      %p63 = scmp.ne.s32.totalorder %s52, %s53
      %p64 = scmp.eq.s32.totalorder %s32, 0
      %p65 = por %p63, %p64
      %p66 = scmp.ne.s32.totalorder %s52, %s53
      %p67 = scmp.eq.s32.totalorder %s33, 3
      %p68 = por %p66, %p67
      %p70 = scmp.ne.s32.totalorder %s53, %s69
      %p71 = scmp.eq.s32.totalorder %s33, 0
      %p72 = por %p70, %p71
      %s74 = sadd.s32 %s73, 1
      %p77 = scmp.eq.s32.totalorder %s27, 3
      %p78 = scmp.ne.s32.totalorder %s73, %s75
      %p79 = scmp.eq.s32.totalorder %s27, 0
      %p80 = por %p78, %p79
      %p81 = scmp.ne.s32.totalorder %s73, %s75
      %p82 = scmp.eq.s32.totalorder %s32, 3
      %p83 = por %p81, %p82
      %p84 = scmp.ne.s32.totalorder %s75, %s76
      %p85 = scmp.eq.s32.totalorder %s32, 0
      %p86 = por %p84, %p85
      %p87 = scmp.ne.s32.totalorder %s75, %s76
      %p88 = scmp.eq.s32.totalorder %s33, 3
      %p89 = por %p87, %p88
      %p91 = scmp.ne.s32.totalorder %s76, %s90
      %p92 = scmp.eq.s32.totalorder %s33, 0
      %p93 = por %p91, %p92
      %s95 = sadd.s32 %s94, 1
      %p98 = scmp.eq.s32.totalorder %s27, 3
      %p99 = scmp.ne.s32.totalorder %s94, %s96
      %p100 = scmp.eq.s32.totalorder %s27, 0
      %p101 = por %p99, %p100
      %p102 = scmp.ne.s32.totalorder %s94, %s96
      %p103 = scmp.eq.s32.totalorder %s32, 3
      %p104 = por %p102, %p103
      %p105 = scmp.ne.s32.totalorder %s96, %s97
      %p106 = scmp.eq.s32.totalorder %s32, 0
      %p107 = por %p105, %p106
      %p108 = scmp.ne.s32.totalorder %s96, %s97
      %p109 = scmp.eq.s32.totalorder %s33, 3
      %p110 = por %p108, %p109
      %p112 = scmp.ne.s32.totalorder %s97, %s111
      %p113 = scmp.eq.s32.totalorder %s33, 0
      %p114 = por %p112, %p113
      %s116 = sadd.s32 %s115, 1
      %p119 = scmp.eq.s32.totalorder %s27, 3
      %p120 = scmp.ne.s32.totalorder %s115, %s117
      %p121 = scmp.eq.s32.totalorder %s27, 0
      %p122 = por %p120, %p121
      %p123 = scmp.ne.s32.totalorder %s115, %s117
      %p124 = scmp.eq.s32.totalorder %s32, 3
      %p125 = por %p123, %p124
      %p126 = scmp.ne.s32.totalorder %s117, %s118
      %p127 = scmp.eq.s32.totalorder %s32, 0
      %p128 = por %p126, %p127
      %p129 = scmp.ne.s32.totalorder %s117, %s118
      %p130 = scmp.eq.s32.totalorder %s33, 3
      %p131 = por %p129, %p130
      %p133 = scmp.ne.s32.totalorder %s118, %s132
      %p134 = scmp.eq.s32.totalorder %s33, 0
      %p135 = por %p133, %p134
      %s136 = ssub.s32 %s35, %s42
      %p137 = scmp.eq.s32.totalorder %s136, 0
      %s139 = sadd.s32 %s138, 1
      %s140 = scalar_select %p137, %s138, %s139
      %p143 = pneg %p137
      %p144 = scmp.eq.s32.totalorder %s27, 3
      %p145 = por %p143, %p144
      %p146 = scmp.ne.s32.totalorder %s138, %s141
      %p147 = scmp.eq.s32.totalorder %s27, 0
      %p148 = por %p146, %p147
      %p149 = scmp.ne.s32.totalorder %s138, %s141
      %p150 = scmp.eq.s32.totalorder %s32, 3
      %p151 = por %p149, %p150
      %p152 = scmp.ne.s32.totalorder %s141, %s142
      %p153 = scmp.eq.s32.totalorder %s32, 0
      %p154 = por %p152, %p153
      %p155 = scmp.ne.s32.totalorder %s141, %s142
      %p156 = scmp.eq.s32.totalorder %s33, 3
      %p157 = por %p155, %p156
      %p159 = scmp.ne.s32.totalorder %s142, %s158
      %p160 = scmp.eq.s32.totalorder %s33, 0
      %p161 = por %p159, %p160
      %s162 = ssub.s32 %s35, %s42
      %p163 = scmp.eq.s32.totalorder %s162, 0
      %s165 = sadd.s32 %s164, 1
      %s166 = scalar_select %p163, %s164, %s165
      %p169 = pneg %p163
      %p170 = scmp.eq.s32.totalorder %s27, 3
      %p171 = por %p169, %p170
      %p172 = scmp.ne.s32.totalorder %s164, %s167
      %p173 = scmp.eq.s32.totalorder %s27, 0
      %p174 = por %p172, %p173
      %p175 = scmp.ne.s32.totalorder %s164, %s167
      %p176 = scmp.eq.s32.totalorder %s32, 3
      %p177 = por %p175, %p176
      %p178 = scmp.ne.s32.totalorder %s167, %s168
      %p179 = scmp.eq.s32.totalorder %s32, 0
      %p180 = por %p178, %p179
      %p181 = scmp.ne.s32.totalorder %s167, %s168
      %p182 = scmp.eq.s32.totalorder %s33, 3
      %p183 = por %p181, %p182
      %p185 = scmp.ne.s32.totalorder %s168, %s184
      %p186 = scmp.eq.s32.totalorder %s33, 0
      %p187 = por %p185, %p186
      %s188 = ssub.s32 %s35, %s42
      %p189 = scmp.eq.s32.totalorder %s188, 0
      %s191 = sadd.s32 %s190, 1
      %s192 = scalar_select %p189, %s190, %s191
      %p195 = pneg %p189
      %p196 = scmp.eq.s32.totalorder %s27, 3
      %p197 = por %p195, %p196
      %p198 = scmp.ne.s32.totalorder %s190, %s193
      %p199 = scmp.eq.s32.totalorder %s27, 0
      %p200 = por %p198, %p199
      %p201 = scmp.ne.s32.totalorder %s190, %s193
      %p202 = scmp.eq.s32.totalorder %s32, 3
      %p203 = por %p201, %p202
      %p204 = scmp.ne.s32.totalorder %s193, %s194
      %p205 = scmp.eq.s32.totalorder %s32, 0
      %p206 = por %p204, %p205
      %p207 = scmp.ne.s32.totalorder %s193, %s194
      %p208 = scmp.eq.s32.totalorder %s33, 3
      %p209 = por %p207, %p208
      %p211 = scmp.ne.s32.totalorder %s194, %s210
      %p212 = scmp.eq.s32.totalorder %s33, 0
      %p213 = por %p211, %p212
      %s214 = ssub.s32 %s35, %s42
      %p215 = scmp.eq.s32.totalorder %s214, 0
      %s217 = sadd.s32 %s216, 1
      %s218 = scalar_select %p215, %s216, %s217
      %p221 = pneg %p215
      %p222 = scmp.eq.s32.totalorder %s27, 3
      %p223 = por %p221, %p222
      %p224 = scmp.ne.s32.totalorder %s216, %s219
      %p225 = scmp.eq.s32.totalorder %s27, 0
      %p226 = por %p224, %p225
      %p227 = scmp.ne.s32.totalorder %s216, %s219
      %p228 = scmp.eq.s32.totalorder %s32, 3
      %p229 = por %p227, %p228
      %p230 = scmp.ne.s32.totalorder %s219, %s220
      %p231 = scmp.eq.s32.totalorder %s32, 0
      %p232 = por %p230, %p231
      %p233 = scmp.ne.s32.totalorder %s219, %s220
      %p234 = scmp.eq.s32.totalorder %s33, 3
      %p235 = por %p233, %p234
      %p237 = scmp.ne.s32.totalorder %s220, %s236
      %p238 = scmp.eq.s32.totalorder %s33, 0
      %p239 = por %p237, %p238
      %s240 = ssub.s32 %s35, %s42
      %p241 = scmp.eq.s32.totalorder %s240, 0
      %s243 = sadd.s32 %s242, 1
      %s244 = scalar_select %p241, %s242, %s243
      %p247 = pneg %p241
      %p248 = scmp.eq.s32.totalorder %s27, 3
      %p249 = por %p247, %p248
      %p250 = scmp.ne.s32.totalorder %s242, %s245
      %p251 = scmp.eq.s32.totalorder %s27, 0
      %p252 = por %p250, %p251
      %p253 = scmp.ne.s32.totalorder %s242, %s245
      %p254 = scmp.eq.s32.totalorder %s32, 3
      %p255 = por %p253, %p254
      %p256 = scmp.ne.s32.totalorder %s245, %s246
      %p257 = scmp.eq.s32.totalorder %s32, 0
      %p258 = por %p256, %p257
      %p259 = scmp.ne.s32.totalorder %s245, %s246
      %p260 = scmp.eq.s32.totalorder %s33, 3
      %p261 = por %p259, %p260
      %p263 = scmp.ne.s32.totalorder %s246, %s262
      %p264 = scmp.eq.s32.totalorder %s33, 0
      %p265 = por %p263, %p264
      %s266 = ssub.s32 %s35, %s42
      %p267 = scmp.eq.s32.totalorder %s266, 0
      %s269 = sadd.s32 %s268, 1
      %s270 = scalar_select %p267, %s268, %s269
      %p273 = pneg %p267
      %p274 = scmp.eq.s32.totalorder %s27, 3
      %p275 = por %p273, %p274
      %p276 = scmp.ne.s32.totalorder %s268, %s271
      %p277 = scmp.eq.s32.totalorder %s27, 0
      %p278 = por %p276, %p277
      %p279 = scmp.ne.s32.totalorder %s268, %s271
      %p280 = scmp.eq.s32.totalorder %s32, 3
      %p281 = por %p279, %p280
      %p282 = scmp.ne.s32.totalorder %s271, %s272
      %p283 = scmp.eq.s32.totalorder %s32, 0
      %p284 = por %p282, %p283
      %p285 = scmp.ne.s32.totalorder %s271, %s272
      %p286 = scmp.eq.s32.totalorder %s33, 3
      %p287 = por %p285, %p286
      %p289 = scmp.ne.s32.totalorder %s272, %s288
      %p290 = scmp.eq.s32.totalorder %s33, 0
      %p291 = por %p289, %p290
      %s292 = ssub.s32 %s35, %s42
      %p293 = scmp.eq.s32.totalorder %s292, 0
      %s295 = sadd.s32 %s294, 1
      %s296 = scalar_select %p293, %s294, %s295
      %p299 = pneg %p293
      %p300 = scmp.eq.s32.totalorder %s27, 3
      %p301 = por %p299, %p300
      %p302 = scmp.ne.s32.totalorder %s294, %s297
      %p303 = scmp.eq.s32.totalorder %s27, 0
      %p304 = por %p302, %p303
      %p305 = scmp.ne.s32.totalorder %s294, %s297
      %p306 = scmp.eq.s32.totalorder %s32, 3
      %p307 = por %p305, %p306
      %p308 = scmp.ne.s32.totalorder %s297, %s298
      %p309 = scmp.eq.s32.totalorder %s32, 0
      %p310 = por %p308, %p309
      %p311 = scmp.ne.s32.totalorder %s297, %s298
      %p312 = scmp.eq.s32.totalorder %s33, 3
      %p313 = por %p311, %p312
      %p315 = scmp.ne.s32.totalorder %s298, %s314
      %p316 = scmp.eq.s32.totalorder %s33, 0
      %p317 = por %p315, %p316
      %s318 = ssub.s32 %s35, %s42
      %p319 = scmp.eq.s32.totalorder %s318, 0
      %s321 = sadd.s32 %s320, 1
      %s322 = scalar_select %p319, %s320, %s321
      %p325 = pneg %p319
      %p326 = scmp.eq.s32.totalorder %s27, 3
      %p327 = por %p325, %p326
      %p328 = scmp.ne.s32.totalorder %s320, %s323
      %p329 = scmp.eq.s32.totalorder %s27, 0
      %p330 = por %p328, %p329
      %p331 = scmp.ne.s32.totalorder %s320, %s323
      %p332 = scmp.eq.s32.totalorder %s32, 3
      %p333 = por %p331, %p332
      %p334 = scmp.ne.s32.totalorder %s323, %s324
      %p335 = scmp.eq.s32.totalorder %s32, 0
      %p336 = por %p334, %p335
      %p337 = scmp.ne.s32.totalorder %s323, %s324
      %p338 = scmp.eq.s32.totalorder %s33, 3
      %p339 = por %p337, %p338
      %p341 = scmp.ne.s32.totalorder %s324, %s340
      %p342 = scmp.eq.s32.totalorder %s33, 0
      %p343 = por %p341, %p342
      %s344 = ssub.s32 %s35, %s42
      %p345 = scmp.eq.s32.totalorder %s344, 0
      %s347 = sadd.s32 %s346, 1
      %s348 = scalar_select %p345, %s346, %s347
      %p351 = pneg %p345
      %p352 = scmp.eq.s32.totalorder %s27, 3
      %p353 = por %p351, %p352
      %p354 = scmp.ne.s32.totalorder %s346, %s349
      %p355 = scmp.eq.s32.totalorder %s27, 0
      %p356 = por %p354, %p355
      %p357 = scmp.ne.s32.totalorder %s346, %s349
      %p358 = scmp.eq.s32.totalorder %s32, 3
      %p359 = por %p357, %p358
      %p360 = scmp.ne.s32.totalorder %s349, %s350
      %p361 = scmp.eq.s32.totalorder %s32, 0
      %p362 = por %p360, %p361
      %p363 = scmp.ne.s32.totalorder %s349, %s350
      %p364 = scmp.eq.s32.totalorder %s33, 3
      %p365 = por %p363, %p364
      %p367 = scmp.ne.s32.totalorder %s350, %s366
      %p368 = scmp.eq.s32.totalorder %s33, 0
      %p369 = por %p367, %p368
      %s370 = ssub.s32 %s35, %s42
      %p371 = scmp.eq.s32.totalorder %s370, 0
      %s373 = sadd.s32 %s372, 1
      %s374 = scalar_select %p371, %s372, %s373
      %p377 = pneg %p371
      %p378 = scmp.eq.s32.totalorder %s27, 3
      %p379 = por %p377, %p378
      %p380 = scmp.ne.s32.totalorder %s372, %s375
      %p381 = scmp.eq.s32.totalorder %s27, 0
      %p382 = por %p380, %p381
      %p383 = scmp.ne.s32.totalorder %s372, %s375
      %p384 = scmp.eq.s32.totalorder %s32, 3
      %p385 = por %p383, %p384
      %p386 = scmp.ne.s32.totalorder %s375, %s376
      %p387 = scmp.eq.s32.totalorder %s32, 0
      %p388 = por %p386, %p387
      %p389 = scmp.ne.s32.totalorder %s375, %s376
      %p390 = scmp.eq.s32.totalorder %s33, 3
      %p391 = por %p389, %p390
      %p393 = scmp.ne.s32.totalorder %s376, %s392
      %p394 = scmp.eq.s32.totalorder %s33, 0
      %p395 = por %p393, %p394
      %s396 = ssub.s32 %s35, %s42
      %p397 = scmp.eq.s32.totalorder %s396, 0
      %s399 = sadd.s32 %s398, 1
      %s400 = scalar_select %p397, %s398, %s399
      %p403 = pneg %p397
      %p404 = scmp.eq.s32.totalorder %s27, 3
      %p405 = por %p403, %p404
      %p406 = scmp.ne.s32.totalorder %s398, %s401
      %p407 = scmp.eq.s32.totalorder %s27, 0
      %p408 = por %p406, %p407
      %p409 = scmp.ne.s32.totalorder %s398, %s401
      %p410 = scmp.eq.s32.totalorder %s32, 3
      %p411 = por %p409, %p410
      %p412 = scmp.ne.s32.totalorder %s401, %s402
      %p413 = scmp.eq.s32.totalorder %s32, 0
      %p414 = por %p412, %p413
      %p415 = scmp.ne.s32.totalorder %s401, %s402
      %p416 = scmp.eq.s32.totalorder %s33, 3
      %p417 = por %p415, %p416
      %p419 = scmp.ne.s32.totalorder %s402, %s418
      %p420 = scmp.eq.s32.totalorder %s33, 0
      %p421 = por %p419, %p420
      %s422 = ssub.s32 %s35, %s42
      %p423 = scmp.eq.s32.totalorder %s422, 0
      %s425 = sadd.s32 %s424, 1
      %s426 = scalar_select %p423, %s424, %s425
      %p429 = pneg %p423
      %p430 = scmp.eq.s32.totalorder %s27, 3
      %p431 = por %p429, %p430
      %p432 = scmp.ne.s32.totalorder %s424, %s427
      %p433 = scmp.eq.s32.totalorder %s27, 0
      %p434 = por %p432, %p433
      %p435 = scmp.ne.s32.totalorder %s424, %s427
      %p436 = scmp.eq.s32.totalorder %s32, 3
      %p437 = por %p435, %p436
      %p438 = scmp.ne.s32.totalorder %s427, %s428
      %p439 = scmp.eq.s32.totalorder %s32, 0
      %p440 = por %p438, %p439
      %p441 = scmp.ne.s32.totalorder %s427, %s428
      %p442 = scmp.eq.s32.totalorder %s33, 3
      %p443 = por %p441, %p442
      %p445 = scmp.ne.s32.totalorder %s428, %s444
      %p446 = scmp.eq.s32.totalorder %s33, 0
      %p447 = por %p445, %p446
      %s449 = sadd.s32 %s448, 1
      %p452 = scmp.eq.s32.totalorder %s27, 3
      %p453 = scmp.ne.s32.totalorder %s448, %s450
      %p454 = scmp.eq.s32.totalorder %s27, 0
      %p455 = por %p453, %p454
      %p456 = scmp.ne.s32.totalorder %s448, %s450
      %p457 = scmp.eq.s32.totalorder %s32, 3
      %p458 = por %p456, %p457
      %p459 = scmp.ne.s32.totalorder %s450, %s451
      %p460 = scmp.eq.s32.totalorder %s32, 0
      %p461 = por %p459, %p460
      %p462 = scmp.ne.s32.totalorder %s450, %s451
      %p463 = scmp.eq.s32.totalorder %s33, 3
      %p464 = por %p462, %p463
      %p466 = scmp.ne.s32.totalorder %s451, %s465
      %p467 = scmp.eq.s32.totalorder %s33, 0
      %p468 = por %p466, %p467
      %s470 = sadd.s32 %s469, 1
      %p473 = scmp.eq.s32.totalorder %s27, 3
      %p474 = scmp.ne.s32.totalorder %s469, %s471
      %p475 = scmp.eq.s32.totalorder %s27, 0
      %p476 = por %p474, %p475
      %p477 = scmp.ne.s32.totalorder %s469, %s471
      %p478 = scmp.eq.s32.totalorder %s32, 3
      %p479 = por %p477, %p478
      %p480 = scmp.ne.s32.totalorder %s471, %s472
      %p481 = scmp.eq.s32.totalorder %s32, 0
      %p482 = por %p480, %p481
      %p483 = scmp.ne.s32.totalorder %s471, %s472
      %p484 = scmp.eq.s32.totalorder %s33, 3
      %p485 = por %p483, %p484
      %p487 = scmp.ne.s32.totalorder %s472, %s486
      %p488 = scmp.eq.s32.totalorder %s33, 0
      %p489 = por %p487, %p488
      %s490 = ssub.s32 %s34, %s46
      %p491 = scmp.eq.s32.totalorder %s490, 0
      %s493 = sadd.s32 %s492, 1
      %s494 = scalar_select %p491, %s492, %s493
      %p497 = pneg %p491
      %p498 = scmp.eq.s32.totalorder %s27, 3
      %p499 = por %p497, %p498
      %p500 = scmp.ne.s32.totalorder %s492, %s495
      %p501 = scmp.eq.s32.totalorder %s27, 0
      %p502 = por %p500, %p501
      %p503 = scmp.ne.s32.totalorder %s492, %s495
      %p504 = scmp.eq.s32.totalorder %s32, 3
      %p505 = por %p503, %p504
      %p506 = scmp.ne.s32.totalorder %s495, %s496
      %p507 = scmp.eq.s32.totalorder %s32, 0
      %p508 = por %p506, %p507
      %p509 = scmp.ne.s32.totalorder %s495, %s496
      %p510 = scmp.eq.s32.totalorder %s33, 3
      %p511 = por %p509, %p510
      %p513 = scmp.ne.s32.totalorder %s496, %s512
      %p514 = scmp.eq.s32.totalorder %s33, 0
      %p515 = por %p513, %p514
      %p516 = scmp.le.s32.totalorder 1, %s27
      %p517 = scmp.lt.s32.totalorder %s27, 5
      %p518 = pnand %p516, %p517
      %p519 = pneg %p518
      // Predicated region
      $region9: #{transformer_predictor_forward.1} parent=5 // pred_check
        _
      $region10: #{transformer_predictor_forward.1} parent=5 // pred_check_branch
        %521 = sbr.rel (%p518) target = $region12
      $region11: #{transformer_predictor_forward.1} parent=5 // pred_region
        %s522 = ssub.s32 %s27, 1
        // Predicated region
        $region13: #{transformer_predictor_forward.1} parent=11 // pred_check
          %p523 = pneg %p86
        $region14: #{transformer_predictor_forward.1} parent=11 // pred_check_branch
          %525 = sbr.rel (%p523) target = $region16
        $region15: #{transformer_predictor_forward.1} parent=11 // pred_region
          _
        $region16: #{transformer_predictor_forward.1} parent=11 // pred_fallthru
          _
        // Predicated region
        $region17: #{transformer_predictor_forward.1} parent=11 // pred_check
          %p526 = pneg %p107
        $region18: #{transformer_predictor_forward.1} parent=11 // pred_check_branch
          %528 = sbr.rel (%p526) target = $region20
        $region19: #{transformer_predictor_forward.1} parent=11 // pred_region
          _
        $region20: #{transformer_predictor_forward.1} parent=11 // pred_fallthru
          _
        // Predicated region
        $region21: #{transformer_predictor_forward.1} parent=11 // pred_check
          %p529 = pneg %p128
        $region22: #{transformer_predictor_forward.1} parent=11 // pred_check_branch
          %531 = sbr.rel (%p529) target = $region24
        $region23: #{transformer_predictor_forward.1} parent=11 // pred_region
          _
        $region24: #{transformer_predictor_forward.1} parent=11 // pred_fallthru
          _
        // Predicated region
        $region25: #{transformer_predictor_forward.1} parent=11 // pred_check
          %p532 = pneg %p461
        $region26: #{transformer_predictor_forward.1} parent=11 // pred_check_branch
          %534 = sbr.rel (%p532) target = $region28
        $region27: #{transformer_predictor_forward.1} parent=11 // pred_region
          _
        $region28: #{transformer_predictor_forward.1} parent=11 // pred_fallthru
          _
        // Predicated region
        $region29: #{transformer_predictor_forward.1} parent=11 // pred_check
          %p535 = pneg %p482
        $region30: #{transformer_predictor_forward.1} parent=11 // pred_check_branch
          %537 = sbr.rel (%p535) target = $region32
        $region31: #{transformer_predictor_forward.1} parent=11 // pred_region
          _
        $region32: #{transformer_predictor_forward.1} parent=11 // pred_fallthru
          _
      $region12: #{transformer_predictor_forward.1} parent=5 // pred_fallthru
        _
      %p538 = scmp.lt.s32.totalorder %s27, 4
      // Predicated region
      $region33: #{transformer_predictor_forward.1} parent=5 // pred_check
        %p539 = pneg %p538
      $region34: #{transformer_predictor_forward.1} parent=5 // pred_check_branch
        %541 = sbr.rel (%p539) target = $region36
      $region35: #{transformer_predictor_forward.1} parent=5 // pred_region
        // Predicated region
        $region37: #{transformer_predictor_forward.1} parent=35 // pred_check
          %p542 = pneg %p59
        $region38: #{transformer_predictor_forward.1} parent=35 // pred_check_branch
          %544 = sbr.rel (%p542) target = $region40
        $region39: #{transformer_predictor_forward.1} parent=35 // pred_region
          %p545 = scmp.lt.s32.totalorder %s34, 1
          %s546 = scalar_select %p545, %s34, 1
          %s547 = smul.addr %s546, 8
          %s548 = scalar_lea.vmem %s0, %s547
        $region40: #{transformer_predictor_forward.1} parent=35 // pred_fallthru
          _
        // Predicated region
        $region41: #{transformer_predictor_forward.1} parent=35 // pred_check
          %p549 = pneg %p148
        $region42: #{transformer_predictor_forward.1} parent=35 // pred_check_branch
          %551 = sbr.rel (%p549) target = $region44
        $region43: #{transformer_predictor_forward.1} parent=35 // pred_region
          %p552 = scmp.lt.s32.totalorder %s35, 1
          %s553 = scalar_select %p552, %s35, 1
          %s554 = smul.addr %s553, 4
          %s555 = smul.addr %s554, 4
          %s556 = scalar_lea.vmem %s4, %s555
        $region44: #{transformer_predictor_forward.1} parent=35 // pred_fallthru
          _
        // Predicated region
        $region45: #{transformer_predictor_forward.1} parent=35 // pred_check
          %p557 = pneg %p174
        $region46: #{transformer_predictor_forward.1} parent=35 // pred_check_branch
          %559 = sbr.rel (%p557) target = $region48
        $region47: #{transformer_predictor_forward.1} parent=35 // pred_region
          %p560 = scmp.lt.s32.totalorder %s35, 1
          %s561 = scalar_select %p560, %s35, 1
          %s562 = scalar_lea.vmem %s5, %s561
        $region48: #{transformer_predictor_forward.1} parent=35 // pred_fallthru
          _
        // Predicated region
        $region49: #{transformer_predictor_forward.1} parent=35 // pred_check
          %p563 = pneg %p200
        $region50: #{transformer_predictor_forward.1} parent=35 // pred_check_branch
          %565 = sbr.rel (%p563) target = $region52
        $region51: #{transformer_predictor_forward.1} parent=35 // pred_region
          %p566 = scmp.lt.s32.totalorder %s35, 1
          %s567 = scalar_select %p566, %s35, 1
          %s568 = smul.addr %s567, 4
          %s569 = smul.addr %s568, 4
          %s570 = scalar_lea.vmem %s6, %s569
        $region52: #{transformer_predictor_forward.1} parent=35 // pred_fallthru
          _
        // Predicated region
        $region53: #{transformer_predictor_forward.1} parent=35 // pred_check
          %p571 = pneg %p226
        $region54: #{transformer_predictor_forward.1} parent=35 // pred_check_branch
          %573 = sbr.rel (%p571) target = $region56
        $region55: #{transformer_predictor_forward.1} parent=35 // pred_region
          %p574 = scmp.lt.s32.totalorder %s35, 1
          %s575 = scalar_select %p574, %s35, 1
          %s576 = scalar_lea.vmem %s7, %s575
        $region56: #{transformer_predictor_forward.1} parent=35 // pred_fallthru
          _
        // Predicated region
        $region57: #{transformer_predictor_forward.1} parent=35 // pred_check
          %p577 = pneg %p252
        $region58: #{transformer_predictor_forward.1} parent=35 // pred_check_branch
          %579 = sbr.rel (%p577) target = $region60
        $region59: #{transformer_predictor_forward.1} parent=35 // pred_region
          %p580 = scmp.lt.s32.totalorder %s35, 1
          %s581 = scalar_select %p580, %s35, 1
          %s582 = scalar_lea.vmem %s8, %s581
        $region60: #{transformer_predictor_forward.1} parent=35 // pred_fallthru
          _
        // Predicated region
        $region61: #{transformer_predictor_forward.1} parent=35 // pred_check
          %p583 = pneg %p278
        $region62: #{transformer_predictor_forward.1} parent=35 // pred_check_branch
          %585 = sbr.rel (%p583) target = $region64
        $region63: #{transformer_predictor_forward.1} parent=35 // pred_region
          %p586 = scmp.lt.s32.totalorder %s35, 1
          %s587 = scalar_select %p586, %s35, 1
          %s588 = scalar_lea.vmem %s9, %s587
        $region64: #{transformer_predictor_forward.1} parent=35 // pred_fallthru
          _
        // Predicated region
        $region65: #{transformer_predictor_forward.1} parent=35 // pred_check
          %p589 = pneg %p304
        $region66: #{transformer_predictor_forward.1} parent=35 // pred_check_branch
          %591 = sbr.rel (%p589) target = $region68
        $region67: #{transformer_predictor_forward.1} parent=35 // pred_region
          %p592 = scmp.lt.s32.totalorder %s35, 1
          %s593 = scalar_select %p592, %s35, 1
          %s594 = smul.addr %s593, 64
          %s595 = smul.addr %s594, 4
          %s596 = scalar_lea.vmem %s10, %s595
        $region68: #{transformer_predictor_forward.1} parent=35 // pred_fallthru
          _
        // Predicated region
        $region69: #{transformer_predictor_forward.1} parent=35 // pred_check
          %p597 = pneg %p330
        $region70: #{transformer_predictor_forward.1} parent=35 // pred_check_branch
          %599 = sbr.rel (%p597) target = $region72
        $region71: #{transformer_predictor_forward.1} parent=35 // pred_region
          %p600 = scmp.lt.s32.totalorder %s35, 1
          %s601 = scalar_select %p600, %s35, 1
          %s602 = smul.addr %s601, 16
          %s603 = scalar_lea.vmem %s11, %s602
        $region72: #{transformer_predictor_forward.1} parent=35 // pred_fallthru
          _
        // Predicated region
        $region73: #{transformer_predictor_forward.1} parent=35 // pred_check
          %p604 = pneg %p356
        $region74: #{transformer_predictor_forward.1} parent=35 // pred_check_branch
          %606 = sbr.rel (%p604) target = $region76
        $region75: #{transformer_predictor_forward.1} parent=35 // pred_region
          %p607 = scmp.lt.s32.totalorder %s35, 1
          %s608 = scalar_select %p607, %s35, 1
          %s609 = smul.addr %s608, 256
          %s610 = smul.addr %s609, 4
          %s611 = scalar_lea.vmem %s12, %s610
        $region76: #{transformer_predictor_forward.1} parent=35 // pred_fallthru
          _
        // Predicated region
        $region77: #{transformer_predictor_forward.1} parent=35 // pred_check
          %p612 = pneg %p382
        $region78: #{transformer_predictor_forward.1} parent=35 // pred_check_branch
          %614 = sbr.rel (%p612) target = $region80
        $region79: #{transformer_predictor_forward.1} parent=35 // pred_region
          %p615 = scmp.lt.s32.totalorder %s35, 1
          %s616 = scalar_select %p615, %s35, 1
          %s617 = scalar_lea.vmem %s13, %s616
        $region80: #{transformer_predictor_forward.1} parent=35 // pred_fallthru
          _
        // Predicated region
        $region81: #{transformer_predictor_forward.1} parent=35 // pred_check
          %p618 = pneg %p408
        $region82: #{transformer_predictor_forward.1} parent=35 // pred_check_branch
          %620 = sbr.rel (%p618) target = $region84
        $region83: #{transformer_predictor_forward.1} parent=35 // pred_region
          %p621 = scmp.lt.s32.totalorder %s35, 1
          %s622 = scalar_select %p621, %s35, 1
          %s623 = scalar_lea.vmem %s14, %s622
        $region84: #{transformer_predictor_forward.1} parent=35 // pred_fallthru
          _
        // Predicated region
        $region85: #{transformer_predictor_forward.1} parent=35 // pred_check
          %p624 = pneg %p434
        $region86: #{transformer_predictor_forward.1} parent=35 // pred_check_branch
          %626 = sbr.rel (%p624) target = $region88
        $region87: #{transformer_predictor_forward.1} parent=35 // pred_region
          %p627 = scmp.lt.s32.totalorder %s35, 1
          %s628 = scalar_select %p627, %s35, 1
          %s629 = scalar_lea.vmem %s15, %s628
        $region88: #{transformer_predictor_forward.1} parent=35 // pred_fallthru
          _
      $region36: #{transformer_predictor_forward.1} parent=5 // pred_fallthru
        _
      %p630 = scmp.le.s32.totalorder 1, %s27
      %p631 = scmp.lt.s32.totalorder %s27, 5
      %p632 = pnand %p630, %p631
      %p633 = pneg %p632
      // Predicated region
      $region89: #{transformer_predictor_forward.1} parent=5 // pred_check
        _
      $region90: #{transformer_predictor_forward.1} parent=5 // pred_check_branch
        %635 = sbr.rel (%p632) target = $region92
      $region91: #{transformer_predictor_forward.1} parent=5 // pred_region
        %s636 = ssub.s32 %s27, 1
        %p637 = scmp.lt.s32.totalorder %s36, 1
        %s638 = scalar_select %p637, %s36, 1
        %s639 = smul.addr %s638, 8
        %s640 = scalar_lea.vmem %s0, %s639
        %p641 = pneg %p65
        %p642 = pneg %p62
        %p643 = pneg %p86
        %p644 = pneg %p83
        %p645 = pneg %p107
        %p646 = pneg %p104
        %p647 = pneg %p128
        %p648 = pneg %p125
        %p649 = scmp.lt.s32.totalorder %s37, 1
        %s650 = scalar_select %p649, %s37, 1
        %s651 = smul.addr %s650, 4
        %s652 = smul.addr %s651, 4
        %s653 = scalar_lea.vmem %s4, %s652
        %p654 = pneg %p154
        %p655 = pneg %p151
        %p656 = scmp.lt.s32.totalorder %s37, 1
        %s657 = scalar_select %p656, %s37, 1
        %s658 = scalar_lea.vmem %s5, %s657
        %p659 = pneg %p180
        %p660 = pneg %p177
        %p661 = scmp.lt.s32.totalorder %s37, 1
        %s662 = scalar_select %p661, %s37, 1
        %s663 = smul.addr %s662, 4
        %s664 = smul.addr %s663, 4
        %s665 = scalar_lea.vmem %s6, %s664
        %p666 = pneg %p206
        %p667 = pneg %p203
        %p668 = scmp.lt.s32.totalorder %s37, 1
        %s669 = scalar_select %p668, %s37, 1
        %s670 = scalar_lea.vmem %s7, %s669
        %p671 = pneg %p232
        %p672 = pneg %p229
        %p673 = scmp.lt.s32.totalorder %s37, 1
        %s674 = scalar_select %p673, %s37, 1
        %s675 = scalar_lea.vmem %s8, %s674
        %p676 = pneg %p258
        %p677 = pneg %p255
        %p678 = scmp.lt.s32.totalorder %s37, 1
        %s679 = scalar_select %p678, %s37, 1
        %s680 = scalar_lea.vmem %s9, %s679
        %p681 = pneg %p284
        %p682 = pneg %p281
        %p683 = scmp.lt.s32.totalorder %s37, 1
        %s684 = scalar_select %p683, %s37, 1
        %s685 = smul.addr %s684, 64
        %s686 = smul.addr %s685, 4
        %s687 = scalar_lea.vmem %s10, %s686
        %p688 = pneg %p310
        %p689 = pneg %p307
        %p690 = scmp.lt.s32.totalorder %s37, 1
        %s691 = scalar_select %p690, %s37, 1
        %s692 = smul.addr %s691, 16
        %s693 = scalar_lea.vmem %s11, %s692
        %p694 = pneg %p336
        %p695 = pneg %p333
        %p696 = scmp.lt.s32.totalorder %s37, 1
        %s697 = scalar_select %p696, %s37, 1
        %s698 = smul.addr %s697, 256
        %s699 = smul.addr %s698, 4
        %s700 = scalar_lea.vmem %s12, %s699
        %p701 = pneg %p362
        %p702 = pneg %p359
        %p703 = scmp.lt.s32.totalorder %s37, 1
        %s704 = scalar_select %p703, %s37, 1
        %s705 = scalar_lea.vmem %s13, %s704
        %p706 = pneg %p388
        %p707 = pneg %p385
        %p708 = scmp.lt.s32.totalorder %s37, 1
        %s709 = scalar_select %p708, %s37, 1
        %s710 = scalar_lea.vmem %s14, %s709
        %p711 = pneg %p414
        %p712 = pneg %p411
        %p713 = scmp.lt.s32.totalorder %s37, 1
        %s714 = scalar_select %p713, %s37, 1
        %s715 = scalar_lea.vmem %s15, %s714
        %p716 = pneg %p440
        %p717 = pneg %p437
        %p718 = pneg %p461
        %p719 = pneg %p458
        %p720 = pneg %p482
        %p721 = pneg %p479
        %p722 = pneg %p508
        %p723 = pneg %p505
        %s724 = sand.u32 %s495, 1
        %s725 = scalar_lea.sflag [#allocation4], %s724
        %s726 = sand.u32 %s495, 1
        %s727 = scalar_lea.vmem [#allocation3], %s726
        %p728 = scmp.lt.s32.totalorder %s36, 1
        %s729 = scalar_select %p728, %s36, 1
        %s730 = smul.addr %s729, 8
        %s731 = scalar_lea.vmem %s0, %s730
        %p732 = scmp.lt.s32.totalorder %s37, 1
        %s733 = scalar_select %p732, %s37, 1
        %s734 = smul.addr %s733, 4
        %s735 = smul.addr %s734, 4
        %s736 = scalar_lea.vmem %s4, %s735
        %p737 = scmp.lt.s32.totalorder %s37, 1
        %s738 = scalar_select %p737, %s37, 1
        %s739 = scalar_lea.vmem %s5, %s738
        %p740 = scmp.lt.s32.totalorder %s37, 1
        %s741 = scalar_select %p740, %s37, 1
        %s742 = smul.addr %s741, 4
        %s743 = smul.addr %s742, 4
        %s744 = scalar_lea.vmem %s6, %s743
        %p745 = scmp.lt.s32.totalorder %s37, 1
        %s746 = scalar_select %p745, %s37, 1
        %s747 = scalar_lea.vmem %s7, %s746
        %p748 = scmp.lt.s32.totalorder %s37, 1
        %s749 = scalar_select %p748, %s37, 1
        %s750 = scalar_lea.vmem %s8, %s749
        %p751 = scmp.lt.s32.totalorder %s37, 1
        %s752 = scalar_select %p751, %s37, 1
        %s753 = scalar_lea.vmem %s9, %s752
        %p754 = scmp.lt.s32.totalorder %s37, 1
        %s755 = scalar_select %p754, %s37, 1
        %s756 = smul.addr %s755, 64
        %s757 = smul.addr %s756, 4
        %s758 = scalar_lea.vmem %s10, %s757
        %p759 = scmp.lt.s32.totalorder %s37, 1
        %s760 = scalar_select %p759, %s37, 1
        %s761 = smul.addr %s760, 16
        %s762 = scalar_lea.vmem %s11, %s761
        %p763 = scmp.lt.s32.totalorder %s37, 1
        %s764 = scalar_select %p763, %s37, 1
        %s765 = smul.addr %s764, 256
        %s766 = smul.addr %s765, 4
        %s767 = scalar_lea.vmem %s12, %s766
        %p768 = scmp.lt.s32.totalorder %s37, 1
        %s769 = scalar_select %p768, %s37, 1
        %s770 = scalar_lea.vmem %s13, %s769
        %p771 = scmp.lt.s32.totalorder %s37, 1
        %s772 = scalar_select %p771, %s37, 1
        %s773 = scalar_lea.vmem %s14, %s772
        %p774 = scmp.lt.s32.totalorder %s37, 1
        %s775 = scalar_select %p774, %s37, 1
        %s776 = scalar_lea.vmem %s15, %s775
        %p778 = scmp.eq.s32.totalorder %s37, 0
        // Predicated region
        $region93: #{transformer_predictor_forward.1} parent=91 // pred_check
          %p779 = pneg %p778
        $region94: #{transformer_predictor_forward.1} parent=91 // pred_check_branch
          %781 = sbr.rel (%p779) target = $region96
        $region95: #{transformer_predictor_forward.1} parent=91 // pred_region
          %v782 = vld [vmem:[%s731] sm:$0xff]
          %v783 = vpack.c.bf16 %v782, %v782
          %v784 = vld [vmem:[%s1] sm:$0xf]
          %v785 = vld [vmem:[%s1 + $0x4] sm:$0xf]
          %v786 = vld [vmem:[%s2] sm:$0x1]
          %v788 = vlaneseq
          %v789 = vshrl.u32 %v788, 7
          %v790 = vsub.s32 0, %v789
          %v791 = vrot.slane %v786, %v790
          %v795 = vunpack.c.l.b16 %v784
          %v796 = vunpack.c.l.b16 %v785
          %v797 = vpack.c.b16 %v796, %v795
          %vm799 = vcmask 130048
          %v801 = vsel %vm799, %v783, 0
          %803 = vmatprep.subr.bf16.mxu0 0
          %804 = vmatpush1.bf16.msra.mxu0 %v797
          %805 = vmatprep.subr.bf16.mxu0 0
          %806 = vmatpush1.bf16.msra.mxu0 0
          %807 = vmatprep.subr.bf16.mxu0 0
          %808 = vmatpush1.bf16.msra.mxu0 0
          %809 = vmatprep.subr.bf16.mxu0 0
          %810 = vmatpush1.bf16.msra.mxu0 0
          %811 = vmatprep.subr.bf16.mxu0 0
          %812 = vmatpush1.bf16.msra.mxu0 0
          %813 = vmatprep.subr.bf16.mxu0 0
          %814 = vmatpush1.bf16.msra.mxu0 0
          %815 = vmatprep.subr.bf16.mxu0 0
          %816 = vmatpush1.bf16.msra.mxu0 0
          %817 = vmatprep.subr.bf16.mxu0 0
          %818 = vmatpush1.bf16.msra.mxu0 0
          %819 = vmatprep.subr.bf16.mxu0 0
          %820 = vmatpush1.bf16.msra.mxu0 0
          %821 = vmatprep.subr.bf16.mxu0 0
          %822 = vmatpush1.bf16.msra.mxu0 0
          %823 = vmatprep.subr.bf16.mxu0 0
          %824 = vmatpush1.bf16.msra.mxu0 0
          %825 = vmatprep.subr.bf16.mxu0 0
          %826 = vmatpush1.bf16.msra.mxu0 0
          %827 = vmatprep.subr.bf16.mxu0 0
          %828 = vmatpush1.bf16.msra.mxu0 0
          %829 = vmatprep.subr.bf16.mxu0 0
          %830 = vmatpush1.bf16.msra.mxu0 0
          %831 = vmatprep.subr.bf16.mxu0 0
          %832 = vmatpush1.bf16.msra.mxu0 0
          %833 = vmatprep.subr.bf16.mxu0 0
          %834 = vmatpush1.bf16.msra.mxu0 0
          %835 = vmatprep.mubr.bf16.mxu0 0
          %836 = vmatmul.mubr.bf16.gmra.mrb[0].mxu0 %v801
          %v837 = vpop.f32.mrb[0].mxu0
          %v838 = vadd.f32 %v791, %v837
          %v839 = vpop.f32.mrb[0].mxu0
          %v840 = vpop.f32.mrb[0].mxu0
          %v841 = vpop.f32.mrb[0].mxu0
          %842 = vdwg.mxu0
          %v843 = vld [vmem:[%s3] sm:$0xff]
          %v844 = vadd.f32 %v838, %v843
          %vm845 = vcmask 261120
          %846 = vst.msk [vmem:[#allocation2] sm:$0xff] %vm845, %v844
        $region96: #{transformer_predictor_forward.1} parent=91 // pred_fallthru
          _
        %v847 = vld [vmem:[#allocation2] sm:$0xff]
        %v848 = vpack.c.bf16 %v847, %v847
        %v849 = vld [vmem:[%s736] sm:$0xf]
        %v850 = vld [vmem:[%s736 + $0x4] sm:$0xf]
        %v851 = vld [vmem:[%s736 + $0x8] sm:$0xf]
        %v852 = vld [vmem:[%s736 + $0xc] sm:$0xf]
        %v853 = vld [vmem:[%s739] sm:$0x1]
        %v855 = vlaneseq
        %v856 = vshrl.u32 %v855, 7
        %v857 = vsub.s32 0, %v856
        %v858 = vrot.slane %v853, %v857
        %v864 = vunpack.c.l.b16 %v849
        %v865 = vunpack.c.l.b16 %v850
        %v866 = vunpack.c.l.b16 %v851
        %v867 = vunpack.c.l.b16 %v852
        %v868 = vpack.c.b16 %v865, %v864
        %v869 = vpack.c.b16 %v867, %v866
        %vm872 = vcmask 261120
        %v874 = vsel %vm872, %v848, 0
        %876 = vmatprep.subr.bf16.mxu0 0
        %877 = vmatpush1.bf16.msra.mxu0 %v868
        %878 = vmatprep.subr.bf16.mxu0 0
        %879 = vmatpush1.bf16.msra.mxu0 %v869
        %880 = vmatprep.subr.bf16.mxu0 0
        %881 = vmatpush1.bf16.msra.mxu0 0
        %882 = vmatprep.subr.bf16.mxu0 0
        %883 = vmatpush1.bf16.msra.mxu0 0
        %884 = vmatprep.subr.bf16.mxu0 0
        %885 = vmatpush1.bf16.msra.mxu0 0
        %886 = vmatprep.subr.bf16.mxu0 0
        %887 = vmatpush1.bf16.msra.mxu0 0
        %888 = vmatprep.subr.bf16.mxu0 0
        %889 = vmatpush1.bf16.msra.mxu0 0
        %890 = vmatprep.subr.bf16.mxu0 0
        %891 = vmatpush1.bf16.msra.mxu0 0
        %892 = vmatprep.subr.bf16.mxu0 0
        %893 = vmatpush1.bf16.msra.mxu0 0
        %894 = vmatprep.subr.bf16.mxu0 0
        %895 = vmatpush1.bf16.msra.mxu0 0
        %896 = vmatprep.subr.bf16.mxu0 0
        %897 = vmatpush1.bf16.msra.mxu0 0
        %898 = vmatprep.subr.bf16.mxu0 0
        %899 = vmatpush1.bf16.msra.mxu0 0
        %900 = vmatprep.subr.bf16.mxu0 0
        %901 = vmatpush1.bf16.msra.mxu0 0
        %902 = vmatprep.subr.bf16.mxu0 0
        %903 = vmatpush1.bf16.msra.mxu0 0
        %904 = vmatprep.subr.bf16.mxu0 0
        %905 = vmatpush1.bf16.msra.mxu0 0
        %906 = vmatprep.subr.bf16.mxu0 0
        %907 = vmatpush1.bf16.msra.mxu0 0
        %908 = vmatprep.mubr.bf16.mxu0 0
        %909 = vmatmul.mubr.bf16.gmra.mrb[0].mxu0 %v874
        %v910 = vpop.f32.mrb[0].mxu0
        %v911 = vadd.f32 %v858, %v910
        %v912 = vpop.f32.mrb[0].mxu0
        %v913 = vpop.f32.mrb[0].mxu0
        %v914 = vpop.f32.mrb[0].mxu0
        %915 = vdwg.mxu0
        %v916 = vpack.c.bf16 %v911, %v911
        %918 = vrot.lane.b32.xlu0 %v916, 96
        %v919 = vpop.permute.xlu0 %918
        %vm920 = vcmask 64512
        %v922 = vsel %vm920, %v916, 0
        %v925 = vsel %vm920, %v919, 0
        %927 = vmatprep.subr.bf16.mxu0 0
        %928 = vmatpush1.bf16.xpose.msra.mxu0 %v925
        %929 = vmatprep.subr.bf16.mxu0 0
        %930 = vmatpush1.bf16.xpose.msra.mxu0 0
        %931 = vmatprep.subr.bf16.mxu0 0
        %932 = vmatpush1.bf16.xpose.msra.mxu0 0
        %933 = vmatprep.subr.bf16.mxu0 0
        %934 = vmatpush1.bf16.xpose.msra.mxu0 0
        %935 = vmatprep.subr.bf16.mxu0 0
        %936 = vmatpush1.bf16.xpose.msra.mxu0 0
        %937 = vmatprep.subr.bf16.mxu0 0
        %938 = vmatpush1.bf16.xpose.msra.mxu0 0
        %939 = vmatprep.subr.bf16.mxu0 0
        %940 = vmatpush1.bf16.xpose.msra.mxu0 0
        %941 = vmatprep.subr.bf16.mxu0 0
        %942 = vmatpush1.bf16.xpose.msra.mxu0 0
        %943 = vmatprep.subr.bf16.mxu0 0
        %944 = vmatpush1.bf16.xpose.msra.mxu0 0
        %945 = vmatprep.subr.bf16.mxu0 0
        %946 = vmatpush1.bf16.xpose.msra.mxu0 0
        %947 = vmatprep.subr.bf16.mxu0 0
        %948 = vmatpush1.bf16.xpose.msra.mxu0 0
        %949 = vmatprep.subr.bf16.mxu0 0
        %950 = vmatpush1.bf16.xpose.msra.mxu0 0
        %951 = vmatprep.subr.bf16.mxu0 0
        %952 = vmatpush1.bf16.xpose.msra.mxu0 0
        %953 = vmatprep.subr.bf16.mxu0 0
        %954 = vmatpush1.bf16.xpose.msra.mxu0 0
        %955 = vmatprep.subr.bf16.mxu0 0
        %956 = vmatpush1.bf16.xpose.msra.mxu0 0
        %957 = vmatprep.subr.bf16.mxu0 0
        %958 = vmatpush1.bf16.xpose.msra.mxu0 0
        %959 = vmatprep.mubr.bf16.mxu0 0
        %960 = vmatmul.mubr.bf16.gmra.mrb[0].mxu0 %v922
        %v961 = vpop.f32.mrb[0].mxu0
        %v962 = vadd.f32 0.0, %v961
        %v963 = vpop.f32.mrb[0].mxu0
        %v964 = vpop.f32.mrb[0].mxu0
        %v965 = vpop.f32.mrb[0].mxu0
        %966 = vdwg.mxu0
        %v967 = vsel %vm920, %v962, -inf
        %968 = vmax.xlane.f32.xlu0 %v967
        %v969 = vpop.xlane.xlu0 %968
        %v970 = vsub.f32 %v962, %v969
        %v971 = vmul.f32 %v970, 1.442695
        %v972 = vpow.pop %v971
        %v973 = vsel %vm920, %v972, 0.0
        %974 = vadd.xlane.f32.xlu0 %v973
        %v975 = vpop.xlane.xlu0 %974
        %v976 = vrcp.pop %v975
        %v977 = vmul.f32 %v972, %v976
        %v978 = vpack.c.bf16 %v977, %v977
        %979 = vrot.lane.b32.xlu0 %v916, 64
        %v980 = vpop.permute.xlu0 %979
        %v982 = vsel %vm920, %v978, 0
        %vm984 = vcmask 1043456
        %v986 = vsel %vm984, %v980, 0
        %988 = vmatprep.subr.bf16.mxu0 0
        %989 = vmatpush1.bf16.msra.mxu0 %v986
        %990 = vmatprep.subr.bf16.mxu0 0
        %991 = vmatpush1.bf16.msra.mxu0 0
        %992 = vmatprep.subr.bf16.mxu0 0
        %993 = vmatpush1.bf16.msra.mxu0 0
        %994 = vmatprep.subr.bf16.mxu0 0
        %995 = vmatpush1.bf16.msra.mxu0 0
        %996 = vmatprep.subr.bf16.mxu0 0
        %997 = vmatpush1.bf16.msra.mxu0 0
        %998 = vmatprep.subr.bf16.mxu0 0
        %999 = vmatpush1.bf16.msra.mxu0 0
        %1000 = vmatprep.subr.bf16.mxu0 0
        %1001 = vmatpush1.bf16.msra.mxu0 0
        %1002 = vmatprep.subr.bf16.mxu0 0
        %1003 = vmatpush1.bf16.msra.mxu0 0
        %1004 = vmatprep.subr.bf16.mxu0 0
        %1005 = vmatpush1.bf16.msra.mxu0 0
        %1006 = vmatprep.subr.bf16.mxu0 0
        %1007 = vmatpush1.bf16.msra.mxu0 0
        %1008 = vmatprep.subr.bf16.mxu0 0
        %1009 = vmatpush1.bf16.msra.mxu0 0
        %1010 = vmatprep.subr.bf16.mxu0 0
        %1011 = vmatpush1.bf16.msra.mxu0 0
        %1012 = vmatprep.subr.bf16.mxu0 0
        %1013 = vmatpush1.bf16.msra.mxu0 0
        %1014 = vmatprep.subr.bf16.mxu0 0
        %1015 = vmatpush1.bf16.msra.mxu0 0
        %1016 = vmatprep.subr.bf16.mxu0 0
        %1017 = vmatpush1.bf16.msra.mxu0 0
        %1018 = vmatprep.subr.bf16.mxu0 0
        %1019 = vmatpush1.bf16.msra.mxu0 0
        %1020 = vmatprep.mubr.bf16.mxu0 0
        %1021 = vmatmul.mubr.bf16.gmra.mrb[0].mxu0 %v982
        %v1022 = vpop.f32.mrb[0].mxu0
        %v1023 = vadd.f32 0.0, %v1022
        %v1024 = vpop.f32.mrb[0].mxu0
        %v1025 = vpop.f32.mrb[0].mxu0
        %v1026 = vpop.f32.mrb[0].mxu0
        %1027 = vdwg.mxu0
        %1028 = vrot.lane.b32.xlu0 %v916, 120
        %v1029 = vpop.permute.xlu0 %1028
        %1030 = vrot.lane.b32.xlu0 %v916, 88
        %v1031 = vpop.permute.xlu0 %1030
        %v1033 = vsel %vm920, %v1029, 0
        %v1036 = vsel %vm920, %v1031, 0
        %1038 = vmatprep.subr.bf16.mxu0 0
        %1039 = vmatpush1.bf16.xpose.msra.mxu0 %v1036
        %1040 = vmatprep.subr.bf16.mxu0 0
        %1041 = vmatpush1.bf16.xpose.msra.mxu0 0
        %1042 = vmatprep.subr.bf16.mxu0 0
        %1043 = vmatpush1.bf16.xpose.msra.mxu0 0
        %1044 = vmatprep.subr.bf16.mxu0 0
        %1045 = vmatpush1.bf16.xpose.msra.mxu0 0
        %1046 = vmatprep.subr.bf16.mxu0 0
        %1047 = vmatpush1.bf16.xpose.msra.mxu0 0
        %1048 = vmatprep.subr.bf16.mxu0 0
        %1049 = vmatpush1.bf16.xpose.msra.mxu0 0
        %1050 = vmatprep.subr.bf16.mxu0 0
        %1051 = vmatpush1.bf16.xpose.msra.mxu0 0
        %1052 = vmatprep.subr.bf16.mxu0 0
        %1053 = vmatpush1.bf16.xpose.msra.mxu0 0
        %1054 = vmatprep.subr.bf16.mxu0 0
        %1055 = vmatpush1.bf16.xpose.msra.mxu0 0
        %1056 = vmatprep.subr.bf16.mxu0 0
        %1057 = vmatpush1.bf16.xpose.msra.mxu0 0
        %1058 = vmatprep.subr.bf16.mxu0 0
        %1059 = vmatpush1.bf16.xpose.msra.mxu0 0
        %1060 = vmatprep.subr.bf16.mxu0 0
        %1061 = vmatpush1.bf16.xpose.msra.mxu0 0
        %1062 = vmatprep.subr.bf16.mxu0 0
        %1063 = vmatpush1.bf16.xpose.msra.mxu0 0
        %1064 = vmatprep.subr.bf16.mxu0 0
        %1065 = vmatpush1.bf16.xpose.msra.mxu0 0
        %1066 = vmatprep.subr.bf16.mxu0 0
        %1067 = vmatpush1.bf16.xpose.msra.mxu0 0
        %1068 = vmatprep.subr.bf16.mxu0 0
        %1069 = vmatpush1.bf16.xpose.msra.mxu0 0
        %1070 = vmatprep.mubr.bf16.mxu0 0
        %1071 = vmatmul.mubr.bf16.gmra.mrb[0].mxu0 %v1033
        %v1072 = vpop.f32.mrb[0].mxu0
        %v1073 = vadd.f32 0.0, %v1072
        %v1074 = vpop.f32.mrb[0].mxu0
        %v1075 = vpop.f32.mrb[0].mxu0
        %v1076 = vpop.f32.mrb[0].mxu0
        %1077 = vdwg.mxu0
        %v1078 = vsel %vm920, %v1073, -inf
        %1079 = vmax.xlane.f32.xlu0 %v1078
        %v1080 = vpop.xlane.xlu0 %1079
        %v1081 = vsub.f32 %v1073, %v1080
        %v1082 = vmul.f32 %v1081, 1.442695
        %v1083 = vpow.pop %v1082
        %v1084 = vsel %vm920, %v1083, 0.0
        %1085 = vadd.xlane.f32.xlu0 %v1084
        %v1086 = vpop.xlane.xlu0 %1085
        %v1087 = vrcp.pop %v1086
        %v1088 = vmul.f32 %v1083, %v1087
        %v1089 = vpack.c.bf16 %v1088, %v1088
        %1090 = vrot.lane.b32.xlu0 %v916, 56
        %v1091 = vpop.permute.xlu0 %1090
        %v1093 = vsel %vm920, %v1089, 0
        %v1096 = vsel %vm984, %v1091, 0
        %1098 = vmatprep.subr.bf16.mxu0 0
        %1099 = vmatpush1.bf16.msra.mxu0 %v1096
        %1100 = vmatprep.subr.bf16.mxu0 0
        %1101 = vmatpush1.bf16.msra.mxu0 0
        %1102 = vmatprep.subr.bf16.mxu0 0
        %1103 = vmatpush1.bf16.msra.mxu0 0
        %1104 = vmatprep.subr.bf16.mxu0 0
        %1105 = vmatpush1.bf16.msra.mxu0 0
        %1106 = vmatprep.subr.bf16.mxu0 0
        %1107 = vmatpush1.bf16.msra.mxu0 0
        %1108 = vmatprep.subr.bf16.mxu0 0
        %1109 = vmatpush1.bf16.msra.mxu0 0
        %1110 = vmatprep.subr.bf16.mxu0 0
        %1111 = vmatpush1.bf16.msra.mxu0 0
        %1112 = vmatprep.subr.bf16.mxu0 0
        %1113 = vmatpush1.bf16.msra.mxu0 0
        %1114 = vmatprep.subr.bf16.mxu0 0
        %1115 = vmatpush1.bf16.msra.mxu0 0
        %1116 = vmatprep.subr.bf16.mxu0 0
        %1117 = vmatpush1.bf16.msra.mxu0 0
        %1118 = vmatprep.subr.bf16.mxu0 0
        %1119 = vmatpush1.bf16.msra.mxu0 0
        %1120 = vmatprep.subr.bf16.mxu0 0
        %1121 = vmatpush1.bf16.msra.mxu0 0
        %1122 = vmatprep.subr.bf16.mxu0 0
        %1123 = vmatpush1.bf16.msra.mxu0 0
        %1124 = vmatprep.subr.bf16.mxu0 0
        %1125 = vmatpush1.bf16.msra.mxu0 0
        %1126 = vmatprep.subr.bf16.mxu0 0
        %1127 = vmatpush1.bf16.msra.mxu0 0
        %1128 = vmatprep.subr.bf16.mxu0 0
        %1129 = vmatpush1.bf16.msra.mxu0 0
        %1130 = vmatprep.mubr.bf16.mxu0 0
        %1131 = vmatmul.mubr.bf16.gmra.mrb[0].mxu0 %v1093
        %v1132 = vpop.f32.mrb[0].mxu0
        %v1133 = vadd.f32 0.0, %v1132
        %v1134 = vpop.f32.mrb[0].mxu0
        %v1135 = vpop.f32.mrb[0].mxu0
        %v1136 = vpop.f32.mrb[0].mxu0
        %1137 = vdwg.mxu0
        %1138 = vrot.lane.b32.xlu0 %v916, 112
        %v1139 = vpop.permute.xlu0 %1138
        %1140 = vrot.lane.b32.xlu0 %v916, 80
        %v1141 = vpop.permute.xlu0 %1140
        %v1143 = vsel %vm920, %v1139, 0
        %v1146 = vsel %vm920, %v1141, 0
        %1148 = vmatprep.subr.bf16.mxu0 0
        %1149 = vmatpush1.bf16.xpose.msra.mxu0 %v1146
        %1150 = vmatprep.subr.bf16.mxu0 0
        %1151 = vmatpush1.bf16.xpose.msra.mxu0 0
        %1152 = vmatprep.subr.bf16.mxu0 0
        %1153 = vmatpush1.bf16.xpose.msra.mxu0 0
        %1154 = vmatprep.subr.bf16.mxu0 0
        %1155 = vmatpush1.bf16.xpose.msra.mxu0 0
        %1156 = vmatprep.subr.bf16.mxu0 0
        %1157 = vmatpush1.bf16.xpose.msra.mxu0 0
        %1158 = vmatprep.subr.bf16.mxu0 0
        %1159 = vmatpush1.bf16.xpose.msra.mxu0 0
        %1160 = vmatprep.subr.bf16.mxu0 0
        %1161 = vmatpush1.bf16.xpose.msra.mxu0 0
        %1162 = vmatprep.subr.bf16.mxu0 0
        %1163 = vmatpush1.bf16.xpose.msra.mxu0 0
        %1164 = vmatprep.subr.bf16.mxu0 0
        %1165 = vmatpush1.bf16.xpose.msra.mxu0 0
        %1166 = vmatprep.subr.bf16.mxu0 0
        %1167 = vmatpush1.bf16.xpose.msra.mxu0 0
        %1168 = vmatprep.subr.bf16.mxu0 0
        %1169 = vmatpush1.bf16.xpose.msra.mxu0 0
        %1170 = vmatprep.subr.bf16.mxu0 0
        %1171 = vmatpush1.bf16.xpose.msra.mxu0 0
        %1172 = vmatprep.subr.bf16.mxu0 0
        %1173 = vmatpush1.bf16.xpose.msra.mxu0 0
        %1174 = vmatprep.subr.bf16.mxu0 0
        %1175 = vmatpush1.bf16.xpose.msra.mxu0 0
        %1176 = vmatprep.subr.bf16.mxu0 0
        %1177 = vmatpush1.bf16.xpose.msra.mxu0 0
        %1178 = vmatprep.subr.bf16.mxu0 0
        %1179 = vmatpush1.bf16.xpose.msra.mxu0 0
        %1180 = vmatprep.mubr.bf16.mxu0 0
        %1181 = vmatmul.mubr.bf16.gmra.mrb[0].mxu0 %v1143
        %v1182 = vpop.f32.mrb[0].mxu0
        %v1183 = vadd.f32 0.0, %v1182
        %v1184 = vpop.f32.mrb[0].mxu0
        %v1185 = vpop.f32.mrb[0].mxu0
        %v1186 = vpop.f32.mrb[0].mxu0
        %1187 = vdwg.mxu0
        %v1188 = vsel %vm920, %v1183, -inf
        %1189 = vmax.xlane.f32.xlu0 %v1188
        %v1190 = vpop.xlane.xlu0 %1189
        %v1191 = vsub.f32 %v1183, %v1190
        %v1192 = vmul.f32 %v1191, 1.442695
        %v1193 = vpow.pop %v1192
        %v1194 = vsel %vm920, %v1193, 0.0
        %1195 = vadd.xlane.f32.xlu0 %v1194
        %v1196 = vpop.xlane.xlu0 %1195
        %v1197 = vrcp.pop %v1196
        %v1198 = vmul.f32 %v1193, %v1197
        %v1199 = vpack.c.bf16 %v1198, %v1198
        %1200 = vrot.lane.b32.xlu0 %v916, 48
        %v1201 = vpop.permute.xlu0 %1200
        %v1203 = vsel %vm920, %v1199, 0
        %v1206 = vsel %vm984, %v1201, 0
        %1208 = vmatprep.subr.bf16.mxu0 0
        %1209 = vmatpush1.bf16.msra.mxu0 %v1206
        %1210 = vmatprep.subr.bf16.mxu0 0
        %1211 = vmatpush1.bf16.msra.mxu0 0
        %1212 = vmatprep.subr.bf16.mxu0 0
        %1213 = vmatpush1.bf16.msra.mxu0 0
        %1214 = vmatprep.subr.bf16.mxu0 0
        %1215 = vmatpush1.bf16.msra.mxu0 0
        %1216 = vmatprep.subr.bf16.mxu0 0
        %1217 = vmatpush1.bf16.msra.mxu0 0
        %1218 = vmatprep.subr.bf16.mxu0 0
        %1219 = vmatpush1.bf16.msra.mxu0 0
        %1220 = vmatprep.subr.bf16.mxu0 0
        %1221 = vmatpush1.bf16.msra.mxu0 0
        %1222 = vmatprep.subr.bf16.mxu0 0
        %1223 = vmatpush1.bf16.msra.mxu0 0
        %1224 = vmatprep.subr.bf16.mxu0 0
        %1225 = vmatpush1.bf16.msra.mxu0 0
        %1226 = vmatprep.subr.bf16.mxu0 0
        %1227 = vmatpush1.bf16.msra.mxu0 0
        %1228 = vmatprep.subr.bf16.mxu0 0
        %1229 = vmatpush1.bf16.msra.mxu0 0
        %1230 = vmatprep.subr.bf16.mxu0 0
        %1231 = vmatpush1.bf16.msra.mxu0 0
        %1232 = vmatprep.subr.bf16.mxu0 0
        %1233 = vmatpush1.bf16.msra.mxu0 0
        %1234 = vmatprep.subr.bf16.mxu0 0
        %1235 = vmatpush1.bf16.msra.mxu0 0
        %1236 = vmatprep.subr.bf16.mxu0 0
        %1237 = vmatpush1.bf16.msra.mxu0 0
        %1238 = vmatprep.subr.bf16.mxu0 0
        %1239 = vmatpush1.bf16.msra.mxu0 0
        %1240 = vmatprep.mubr.bf16.mxu0 0
        %1241 = vmatmul.mubr.bf16.gmra.mrb[0].mxu0 %v1203
        %v1242 = vpop.f32.mrb[0].mxu0
        %v1243 = vadd.f32 0.0, %v1242
        %v1244 = vpop.f32.mrb[0].mxu0
        %v1245 = vpop.f32.mrb[0].mxu0
        %v1246 = vpop.f32.mrb[0].mxu0
        %1247 = vdwg.mxu0
        %1248 = vrot.lane.b32.xlu0 %v916, 104
        %v1249 = vpop.permute.xlu0 %1248
        %1250 = vrot.lane.b32.xlu0 %v916, 72
        %v1251 = vpop.permute.xlu0 %1250
        %v1253 = vsel %vm920, %v1249, 0
        %v1256 = vsel %vm920, %v1251, 0
        %1258 = vmatprep.subr.bf16.mxu0 0
        %1259 = vmatpush1.bf16.xpose.msra.mxu0 %v1256
        %1260 = vmatprep.subr.bf16.mxu0 0
        %1261 = vmatpush1.bf16.xpose.msra.mxu0 0
        %1262 = vmatprep.subr.bf16.mxu0 0
        %1263 = vmatpush1.bf16.xpose.msra.mxu0 0
        %1264 = vmatprep.subr.bf16.mxu0 0
        %1265 = vmatpush1.bf16.xpose.msra.mxu0 0
        %1266 = vmatprep.subr.bf16.mxu0 0
        %1267 = vmatpush1.bf16.xpose.msra.mxu0 0
        %1268 = vmatprep.subr.bf16.mxu0 0
        %1269 = vmatpush1.bf16.xpose.msra.mxu0 0
        %1270 = vmatprep.subr.bf16.mxu0 0
        %1271 = vmatpush1.bf16.xpose.msra.mxu0 0
        %1272 = vmatprep.subr.bf16.mxu0 0
        %1273 = vmatpush1.bf16.xpose.msra.mxu0 0
        %1274 = vmatprep.subr.bf16.mxu0 0
        %1275 = vmatpush1.bf16.xpose.msra.mxu0 0
        %1276 = vmatprep.subr.bf16.mxu0 0
        %1277 = vmatpush1.bf16.xpose.msra.mxu0 0
        %1278 = vmatprep.subr.bf16.mxu0 0
        %1279 = vmatpush1.bf16.xpose.msra.mxu0 0
        %1280 = vmatprep.subr.bf16.mxu0 0
        %1281 = vmatpush1.bf16.xpose.msra.mxu0 0
        %1282 = vmatprep.subr.bf16.mxu0 0
        %1283 = vmatpush1.bf16.xpose.msra.mxu0 0
        %1284 = vmatprep.subr.bf16.mxu0 0
        %1285 = vmatpush1.bf16.xpose.msra.mxu0 0
        %1286 = vmatprep.subr.bf16.mxu0 0
        %1287 = vmatpush1.bf16.xpose.msra.mxu0 0
        %1288 = vmatprep.subr.bf16.mxu0 0
        %1289 = vmatpush1.bf16.xpose.msra.mxu0 0
        %1290 = vmatprep.mubr.bf16.mxu0 0
        %1291 = vmatmul.mubr.bf16.gmra.mrb[0].mxu0 %v1253
        %v1292 = vpop.f32.mrb[0].mxu0
        %v1293 = vadd.f32 0.0, %v1292
        %v1294 = vpop.f32.mrb[0].mxu0
        %v1295 = vpop.f32.mrb[0].mxu0
        %v1296 = vpop.f32.mrb[0].mxu0
        %1297 = vdwg.mxu0
        %v1298 = vsel %vm920, %v1293, -inf
        %1299 = vmax.xlane.f32.xlu0 %v1298
        %v1300 = vpop.xlane.xlu0 %1299
        %v1301 = vsub.f32 %v1293, %v1300
        %v1302 = vmul.f32 %v1301, 1.442695
        %v1303 = vpow.pop %v1302
        %v1304 = vsel %vm920, %v1303, 0.0
        %1305 = vadd.xlane.f32.xlu0 %v1304
        %v1306 = vpop.xlane.xlu0 %1305
        %v1307 = vrcp.pop %v1306
        %v1308 = vmul.f32 %v1303, %v1307
        %v1309 = vpack.c.bf16 %v1308, %v1308
        %1310 = vrot.lane.b32.xlu0 %v916, 40
        %v1311 = vpop.permute.xlu0 %1310
        %v1313 = vsel %vm920, %v1309, 0
        %v1316 = vsel %vm984, %v1311, 0
        %1318 = vmatprep.subr.bf16.mxu0 0
        %1319 = vmatpush1.bf16.msra.mxu0 %v1316
        %1320 = vmatprep.subr.bf16.mxu0 0
        %1321 = vmatpush1.bf16.msra.mxu0 0
        %1322 = vmatprep.subr.bf16.mxu0 0
        %1323 = vmatpush1.bf16.msra.mxu0 0
        %1324 = vmatprep.subr.bf16.mxu0 0
        %1325 = vmatpush1.bf16.msra.mxu0 0
        %1326 = vmatprep.subr.bf16.mxu0 0
        %1327 = vmatpush1.bf16.msra.mxu0 0
        %1328 = vmatprep.subr.bf16.mxu0 0
        %1329 = vmatpush1.bf16.msra.mxu0 0
        %1330 = vmatprep.subr.bf16.mxu0 0
        %1331 = vmatpush1.bf16.msra.mxu0 0
        %1332 = vmatprep.subr.bf16.mxu0 0
        %1333 = vmatpush1.bf16.msra.mxu0 0
        %1334 = vmatprep.subr.bf16.mxu0 0
        %1335 = vmatpush1.bf16.msra.mxu0 0
        %1336 = vmatprep.subr.bf16.mxu0 0
        %1337 = vmatpush1.bf16.msra.mxu0 0
        %1338 = vmatprep.subr.bf16.mxu0 0
        %1339 = vmatpush1.bf16.msra.mxu0 0
        %1340 = vmatprep.subr.bf16.mxu0 0
        %1341 = vmatpush1.bf16.msra.mxu0 0
        %1342 = vmatprep.subr.bf16.mxu0 0
        %1343 = vmatpush1.bf16.msra.mxu0 0
        %1344 = vmatprep.subr.bf16.mxu0 0
        %1345 = vmatpush1.bf16.msra.mxu0 0
        %1346 = vmatprep.subr.bf16.mxu0 0
        %1347 = vmatpush1.bf16.msra.mxu0 0
        %1348 = vmatprep.subr.bf16.mxu0 0
        %1349 = vmatpush1.bf16.msra.mxu0 0
        %1350 = vmatprep.mubr.bf16.mxu0 0
        %1351 = vmatmul.mubr.bf16.gmra.mrb[0].mxu0 %v1313
        %v1352 = vpop.f32.mrb[0].mxu0
        %v1353 = vadd.f32 0.0, %v1352
        %v1354 = vpop.f32.mrb[0].mxu0
        %v1355 = vpop.f32.mrb[0].mxu0
        %v1356 = vpop.f32.mrb[0].mxu0
        %1357 = vdwg.mxu0
        %1359 = vrot.lane.b32.xlu0 %v1133, 8
        %v1360 = vpop.permute.xlu0 %1359
        %1363 = vrot.lane.b32.xlu0 %v1243, 16
        %v1364 = vpop.permute.xlu0 %1363
        %1367 = vrot.lane.b32.xlu0 %v1353, 24
        %v1368 = vpop.permute.xlu0 %1367
        %v1370 = vsel %vm920, %v1023, %v1360
        %vm1371 = vcmask 130048
        %v1372 = vsel %vm1371, %v1370, %v1364
        %vm1373 = vcmask 195584
        %v1374 = vsel %vm1373, %v1372, %v1368
        %v1375 = vpack.c.bf16 %v1374, %v1374
        %v1376 = vld [vmem:[%s744] sm:$0xf]
        %v1377 = vld [vmem:[%s744 + $0x4] sm:$0xf]
        %v1378 = vld [vmem:[%s744 + $0x8] sm:$0xf]
        %v1379 = vld [vmem:[%s744 + $0xc] sm:$0xf]
        %v1380 = vld [vmem:[%s747] sm:$0x1]
        %v1382 = vlaneseq
        %v1383 = vshrl.u32 %v1382, 7
        %v1384 = vsub.s32 0, %v1383
        %v1385 = vrot.slane %v1380, %v1384
        %v1391 = vunpack.c.l.b16 %v1376
        %v1392 = vunpack.c.l.b16 %v1377
        %v1393 = vunpack.c.l.b16 %v1378
        %v1394 = vunpack.c.l.b16 %v1379
        %v1395 = vpack.c.b16 %v1392, %v1391
        %v1396 = vpack.c.b16 %v1394, %v1393
        %v1400 = vsel %vm872, %v1375, 0
        %1402 = vmatprep.subr.bf16.mxu0 0
        %1403 = vmatpush1.bf16.msra.mxu0 %v1395
        %1404 = vmatprep.subr.bf16.mxu0 0
        %1405 = vmatpush1.bf16.msra.mxu0 %v1396
        %1406 = vmatprep.subr.bf16.mxu0 0
        %1407 = vmatpush1.bf16.msra.mxu0 0
        %1408 = vmatprep.subr.bf16.mxu0 0
        %1409 = vmatpush1.bf16.msra.mxu0 0
        %1410 = vmatprep.subr.bf16.mxu0 0
        %1411 = vmatpush1.bf16.msra.mxu0 0
        %1412 = vmatprep.subr.bf16.mxu0 0
        %1413 = vmatpush1.bf16.msra.mxu0 0
        %1414 = vmatprep.subr.bf16.mxu0 0
        %1415 = vmatpush1.bf16.msra.mxu0 0
        %1416 = vmatprep.subr.bf16.mxu0 0
        %1417 = vmatpush1.bf16.msra.mxu0 0
        %1418 = vmatprep.subr.bf16.mxu0 0
        %1419 = vmatpush1.bf16.msra.mxu0 0
        %1420 = vmatprep.subr.bf16.mxu0 0
        %1421 = vmatpush1.bf16.msra.mxu0 0
        %1422 = vmatprep.subr.bf16.mxu0 0
        %1423 = vmatpush1.bf16.msra.mxu0 0
        %1424 = vmatprep.subr.bf16.mxu0 0
        %1425 = vmatpush1.bf16.msra.mxu0 0
        %1426 = vmatprep.subr.bf16.mxu0 0
        %1427 = vmatpush1.bf16.msra.mxu0 0
        %1428 = vmatprep.subr.bf16.mxu0 0
        %1429 = vmatpush1.bf16.msra.mxu0 0
        %1430 = vmatprep.subr.bf16.mxu0 0
        %1431 = vmatpush1.bf16.msra.mxu0 0
        %1432 = vmatprep.subr.bf16.mxu0 0
        %1433 = vmatpush1.bf16.msra.mxu0 0
        %1434 = vmatprep.mubr.bf16.mxu0 0
        %1435 = vmatmul.mubr.bf16.gmra.mrb[0].mxu0 %v1400
        %v1436 = vpop.f32.mrb[0].mxu0
        %v1437 = vadd.f32 %v1385, %v1436
        %v1438 = vpop.f32.mrb[0].mxu0
        %v1439 = vpop.f32.mrb[0].mxu0
        %v1440 = vpop.f32.mrb[0].mxu0
        %1441 = vdwg.mxu0
        %v1442 = vadd.f32 %v1437, %v847
        %v1443 = vsel %vm872, %v1442, 0.0
        %1444 = vadd.xlane.f32.xlu0 %v1443
        %v1445 = vpop.xlane.xlu0 %1444
        %v1446 = vrcp.pop 32.0
        %v1447 = vmul.f32 %v1445, %v1446
        %v1448 = vsub.f32 %v1442, %v1447
        %v1449 = vmul.f32 %v1448, %v1448
        %v1450 = vsel %vm872, %v1449, 0.0
        %1451 = vadd.xlane.f32.xlu0 %v1450
        %v1452 = vpop.xlane.xlu0 %1451
        %v1453 = vmul.f32 %v1452, %v1446
        %v1454 = vadd.f32 %v1453, 1e-05
        %v1455 = vrsqrt.pop %v1454
        %v1456 = vmul.f32 %v1448, %v1455
        %v1457 = vld [vmem:[%s750] sm:$0x1]
        %v1459 = vlaneseq
        %v1460 = vshrl.u32 %v1459, 7
        %v1461 = vsub.s32 0, %v1460
        %v1462 = vrot.slane %v1457, %v1461
        %v1464 = vmul.f32 %v1456, %v1462
        %v1465 = vld [vmem:[%s753] sm:$0x1]
        %v1467 = vlaneseq
        %v1468 = vshrl.u32 %v1467, 7
        %v1469 = vsub.s32 0, %v1468
        %v1470 = vrot.slane %v1465, %v1469
        %v1472 = vadd.f32 %v1464, %v1470
        %v1473 = vpack.c.bf16 %v1472, %v1472
        %v1474 = vld [vmem:[%s758] sm:$0xff]
        %v1475 = vld [vmem:[%s758 + $0x8] sm:$0xff]
        %v1476 = vld [vmem:[%s758 + $0x10] sm:$0xff]
        %v1477 = vld [vmem:[%s758 + $0x18] sm:$0xff]
        %v1478 = vld [vmem:[%s758 + $0x20] sm:$0xff]
        %v1479 = vld [vmem:[%s758 + $0x28] sm:$0xff]
        %v1480 = vld [vmem:[%s758 + $0x30] sm:$0xff]
        %v1481 = vld [vmem:[%s758 + $0x38] sm:$0xff]
        %v1482 = vld [vmem:[%s758 + $0x40] sm:$0xff]
        %v1483 = vld [vmem:[%s758 + $0x48] sm:$0xff]
        %v1484 = vld [vmem:[%s758 + $0x50] sm:$0xff]
        %v1485 = vld [vmem:[%s758 + $0x58] sm:$0xff]
        %v1486 = vld [vmem:[%s758 + $0x60] sm:$0xff]
        %v1487 = vld [vmem:[%s758 + $0x68] sm:$0xff]
        %v1488 = vld [vmem:[%s758 + $0x70] sm:$0xff]
        %v1489 = vld [vmem:[%s758 + $0x78] sm:$0xff]
        %v1490 = vld [vmem:[%s758 + $0x80] sm:$0xff]
        %v1491 = vld [vmem:[%s758 + $0x88] sm:$0xff]
        %v1492 = vld [vmem:[%s758 + $0x90] sm:$0xff]
        %v1493 = vld [vmem:[%s758 + $0x98] sm:$0xff]
        %v1494 = vld [vmem:[%s758 + $0xa0] sm:$0xff]
        %v1495 = vld [vmem:[%s758 + $0xa8] sm:$0xff]
        %v1496 = vld [vmem:[%s758 + $0xb0] sm:$0xff]
        %v1497 = vld [vmem:[%s758 + $0xb8] sm:$0xff]
        %v1498 = vld [vmem:[%s758 + $0xc0] sm:$0xff]
        %v1499 = vld [vmem:[%s758 + $0xc8] sm:$0xff]
        %v1500 = vld [vmem:[%s758 + $0xd0] sm:$0xff]
        %v1501 = vld [vmem:[%s758 + $0xd8] sm:$0xff]
        %v1502 = vld [vmem:[%s758 + $0xe0] sm:$0xff]
        %v1503 = vld [vmem:[%s758 + $0xe8] sm:$0xff]
        %v1504 = vld [vmem:[%s758 + $0xf0] sm:$0xff]
        %v1505 = vld [vmem:[%s758 + $0xf8] sm:$0xff]
        %v1506 = vld [vmem:[%s762] sm:$0xff]
        %v1507 = vld [vmem:[%s762 + $0x8] sm:$0xff]
        %v1510 = vlaneseq
        %v1511 = vshrl.u32 %v1510, 7
        %v1512 = vsub.s32 0, %v1511
        %v1513 = vrot.slane %v1506, %v1512
        %v1514 = vlaneseq
        %v1515 = vshrl.u32 %v1514, 7
        %v1516 = vsub.s32 1, %v1515
        %v1517 = vrot.slane %v1506, %v1516
        %v1518 = vlaneseq
        %v1519 = vshrl.u32 %v1518, 7
        %v1520 = vsub.s32 2, %v1519
        %v1521 = vrot.slane %v1506, %v1520
        %v1522 = vlaneseq
        %v1523 = vshrl.u32 %v1522, 7
        %v1524 = vsub.s32 3, %v1523
        %v1525 = vrot.slane %v1506, %v1524
        %v1526 = vlaneseq
        %v1527 = vshrl.u32 %v1526, 7
        %v1528 = vsub.s32 4, %v1527
        %v1529 = vrot.slane %v1506, %v1528
        %v1530 = vlaneseq
        %v1531 = vshrl.u32 %v1530, 7
        %v1532 = vsub.s32 5, %v1531
        %v1533 = vrot.slane %v1506, %v1532
        %v1534 = vlaneseq
        %v1535 = vshrl.u32 %v1534, 7
        %v1536 = vsub.s32 6, %v1535
        %v1537 = vrot.slane %v1506, %v1536
        %v1538 = vlaneseq
        %v1539 = vshrl.u32 %v1538, 7
        %v1540 = vsub.s32 7, %v1539
        %v1541 = vrot.slane %v1506, %v1540
        %v1542 = vlaneseq
        %v1543 = vshrl.u32 %v1542, 7
        %v1544 = vsub.s32 0, %v1543
        %v1545 = vrot.slane %v1507, %v1544
        %v1546 = vlaneseq
        %v1547 = vshrl.u32 %v1546, 7
        %v1548 = vsub.s32 1, %v1547
        %v1549 = vrot.slane %v1507, %v1548
        %v1550 = vlaneseq
        %v1551 = vshrl.u32 %v1550, 7
        %v1552 = vsub.s32 2, %v1551
        %v1553 = vrot.slane %v1507, %v1552
        %v1554 = vlaneseq
        %v1555 = vshrl.u32 %v1554, 7
        %v1556 = vsub.s32 3, %v1555
        %v1557 = vrot.slane %v1507, %v1556
        %v1558 = vlaneseq
        %v1559 = vshrl.u32 %v1558, 7
        %v1560 = vsub.s32 4, %v1559
        %v1561 = vrot.slane %v1507, %v1560
        %v1562 = vlaneseq
        %v1563 = vshrl.u32 %v1562, 7
        %v1564 = vsub.s32 5, %v1563
        %v1565 = vrot.slane %v1507, %v1564
        %v1566 = vlaneseq
        %v1567 = vshrl.u32 %v1566, 7
        %v1568 = vsub.s32 6, %v1567
        %v1569 = vrot.slane %v1507, %v1568
        %v1570 = vlaneseq
        %v1571 = vshrl.u32 %v1570, 7
        %v1572 = vsub.s32 7, %v1571
        %v1573 = vrot.slane %v1507, %v1572
        %v1622 = vunpack.c.l.b16 %v1474
        %v1623 = vunpack.c.h.b16 %v1474
        %v1624 = vunpack.c.l.b16 %v1475
        %v1625 = vunpack.c.h.b16 %v1475
        %v1626 = vunpack.c.l.b16 %v1476
        %v1627 = vunpack.c.h.b16 %v1476
        %v1628 = vunpack.c.l.b16 %v1477
        %v1629 = vunpack.c.h.b16 %v1477
        %v1630 = vunpack.c.l.b16 %v1478
        %v1631 = vunpack.c.h.b16 %v1478
        %v1632 = vunpack.c.l.b16 %v1479
        %v1633 = vunpack.c.h.b16 %v1479
        %v1634 = vunpack.c.l.b16 %v1480
        %v1635 = vunpack.c.h.b16 %v1480
        %v1636 = vunpack.c.l.b16 %v1481
        %v1637 = vunpack.c.h.b16 %v1481
        %v1638 = vunpack.c.l.b16 %v1482
        %v1639 = vunpack.c.h.b16 %v1482
        %v1640 = vunpack.c.l.b16 %v1483
        %v1641 = vunpack.c.h.b16 %v1483
        %v1642 = vunpack.c.l.b16 %v1484
        %v1643 = vunpack.c.h.b16 %v1484
        %v1644 = vunpack.c.l.b16 %v1485
        %v1645 = vunpack.c.h.b16 %v1485
        %v1646 = vunpack.c.l.b16 %v1486
        %v1647 = vunpack.c.h.b16 %v1486
        %v1648 = vunpack.c.l.b16 %v1487
        %v1649 = vunpack.c.h.b16 %v1487
        %v1650 = vunpack.c.l.b16 %v1488
        %v1651 = vunpack.c.h.b16 %v1488
        %v1652 = vunpack.c.l.b16 %v1489
        %v1653 = vunpack.c.h.b16 %v1489
        %v1654 = vunpack.c.l.b16 %v1490
        %v1655 = vunpack.c.h.b16 %v1490
        %v1656 = vunpack.c.l.b16 %v1491
        %v1657 = vunpack.c.h.b16 %v1491
        %v1658 = vunpack.c.l.b16 %v1492
        %v1659 = vunpack.c.h.b16 %v1492
        %v1660 = vunpack.c.l.b16 %v1493
        %v1661 = vunpack.c.h.b16 %v1493
        %v1662 = vunpack.c.l.b16 %v1494
        %v1663 = vunpack.c.h.b16 %v1494
        %v1664 = vunpack.c.l.b16 %v1495
        %v1665 = vunpack.c.h.b16 %v1495
        %v1666 = vunpack.c.l.b16 %v1496
        %v1667 = vunpack.c.h.b16 %v1496
        %v1668 = vunpack.c.l.b16 %v1497
        %v1669 = vunpack.c.h.b16 %v1497
        %v1670 = vunpack.c.l.b16 %v1498
        %v1671 = vunpack.c.h.b16 %v1498
        %v1672 = vunpack.c.l.b16 %v1499
        %v1673 = vunpack.c.h.b16 %v1499
        %v1674 = vunpack.c.l.b16 %v1500
        %v1675 = vunpack.c.h.b16 %v1500
        %v1676 = vunpack.c.l.b16 %v1501
        %v1677 = vunpack.c.h.b16 %v1501
        %v1678 = vunpack.c.l.b16 %v1502
        %v1679 = vunpack.c.h.b16 %v1502
        %v1680 = vunpack.c.l.b16 %v1503
        %v1681 = vunpack.c.h.b16 %v1503
        %v1682 = vunpack.c.l.b16 %v1504
        %v1683 = vunpack.c.h.b16 %v1504
        %v1684 = vunpack.c.l.b16 %v1505
        %v1685 = vunpack.c.h.b16 %v1505
        %v1686 = vpack.c.b16 %v1638, %v1622
        %v1687 = vpack.c.b16 %v1639, %v1623
        %v1688 = vpack.c.b16 %v1640, %v1624
        %v1689 = vpack.c.b16 %v1641, %v1625
        %v1690 = vpack.c.b16 %v1642, %v1626
        %v1691 = vpack.c.b16 %v1643, %v1627
        %v1692 = vpack.c.b16 %v1644, %v1628
        %v1693 = vpack.c.b16 %v1645, %v1629
        %v1694 = vpack.c.b16 %v1646, %v1630
        %v1695 = vpack.c.b16 %v1647, %v1631
        %v1696 = vpack.c.b16 %v1648, %v1632
        %v1697 = vpack.c.b16 %v1649, %v1633
        %v1698 = vpack.c.b16 %v1650, %v1634
        %v1699 = vpack.c.b16 %v1651, %v1635
        %v1700 = vpack.c.b16 %v1652, %v1636
        %v1701 = vpack.c.b16 %v1653, %v1637
        %v1702 = vpack.c.b16 %v1670, %v1654
        %v1703 = vpack.c.b16 %v1671, %v1655
        %v1704 = vpack.c.b16 %v1672, %v1656
        %v1705 = vpack.c.b16 %v1673, %v1657
        %v1706 = vpack.c.b16 %v1674, %v1658
        %v1707 = vpack.c.b16 %v1675, %v1659
        %v1708 = vpack.c.b16 %v1676, %v1660
        %v1709 = vpack.c.b16 %v1677, %v1661
        %v1710 = vpack.c.b16 %v1678, %v1662
        %v1711 = vpack.c.b16 %v1679, %v1663
        %v1712 = vpack.c.b16 %v1680, %v1664
        %v1713 = vpack.c.b16 %v1681, %v1665
        %v1714 = vpack.c.b16 %v1682, %v1666
        %v1715 = vpack.c.b16 %v1683, %v1667
        %v1716 = vpack.c.b16 %v1684, %v1668
        %v1717 = vpack.c.b16 %v1685, %v1669
        %v1751 = vsel %vm872, %v1473, 0
        %1753 = vmatprep.subr.bf16.mxu0 %v1687
        %1754 = vmatpush1.bf16.msra.mxu0 %v1686
        %1755 = vmatprep.subr.bf16.mxu0 %v1703
        %1756 = vmatpush1.bf16.msra.mxu0 %v1702
        %1757 = vmatprep.subr.bf16.mxu0 0
        %1758 = vmatpush1.bf16.msra.mxu0 0
        %1759 = vmatprep.subr.bf16.mxu0 0
        %1760 = vmatpush1.bf16.msra.mxu0 0
        %1761 = vmatprep.subr.bf16.mxu0 0
        %1762 = vmatpush1.bf16.msra.mxu0 0
        %1763 = vmatprep.subr.bf16.mxu0 0
        %1764 = vmatpush1.bf16.msra.mxu0 0
        %1765 = vmatprep.subr.bf16.mxu0 0
        %1766 = vmatpush1.bf16.msra.mxu0 0
        %1767 = vmatprep.subr.bf16.mxu0 0
        %1768 = vmatpush1.bf16.msra.mxu0 0
        %1769 = vmatprep.subr.bf16.mxu0 0
        %1770 = vmatpush1.bf16.msra.mxu0 0
        %1771 = vmatprep.subr.bf16.mxu0 0
        %1772 = vmatpush1.bf16.msra.mxu0 0
        %1773 = vmatprep.subr.bf16.mxu0 0
        %1774 = vmatpush1.bf16.msra.mxu0 0
        %1775 = vmatprep.subr.bf16.mxu0 0
        %1776 = vmatpush1.bf16.msra.mxu0 0
        %1777 = vmatprep.subr.bf16.mxu0 0
        %1778 = vmatpush1.bf16.msra.mxu0 0
        %1779 = vmatprep.subr.bf16.mxu0 0
        %1780 = vmatpush1.bf16.msra.mxu0 0
        %1781 = vmatprep.subr.bf16.mxu0 0
        %1782 = vmatpush1.bf16.msra.mxu0 0
        %1783 = vmatprep.subr.bf16.mxu0 0
        %1784 = vmatpush1.bf16.msra.mxu0 0
        %1785 = vmatprep.mubr.bf16.mxu0 0
        %1786 = vmatmul.mubr.bf16.gmra.mrb[0].mxu0 %v1751
        %v1787 = vpop.f32.mrb[0].mxu0
        %v1788 = vadd.f32 %v1513, %v1787
        %v1789 = vpop.f32.mrb[0].mxu0
        %v1790 = vadd.f32 %v1517, %v1789
        %v1791 = vpop.f32.mrb[0].mxu0
        %v1792 = vpop.f32.mrb[0].mxu0
        %1793 = vdwg.mxu0
        %1794 = vmatprep.subr.bf16.mxu0 %v1689
        %1795 = vmatpush1.bf16.msra.mxu0 %v1688
        %1796 = vmatprep.subr.bf16.mxu0 %v1705
        %1797 = vmatpush1.bf16.msra.mxu0 %v1704
        %1798 = vmatprep.subr.bf16.mxu0 0
        %1799 = vmatpush1.bf16.msra.mxu0 0
        %1800 = vmatprep.subr.bf16.mxu0 0
        %1801 = vmatpush1.bf16.msra.mxu0 0
        %1802 = vmatprep.subr.bf16.mxu0 0
        %1803 = vmatpush1.bf16.msra.mxu0 0
        %1804 = vmatprep.subr.bf16.mxu0 0
        %1805 = vmatpush1.bf16.msra.mxu0 0
        %1806 = vmatprep.subr.bf16.mxu0 0
        %1807 = vmatpush1.bf16.msra.mxu0 0
        %1808 = vmatprep.subr.bf16.mxu0 0
        %1809 = vmatpush1.bf16.msra.mxu0 0
        %1810 = vmatprep.subr.bf16.mxu0 0
        %1811 = vmatpush1.bf16.msra.mxu0 0
        %1812 = vmatprep.subr.bf16.mxu0 0
        %1813 = vmatpush1.bf16.msra.mxu0 0
        %1814 = vmatprep.subr.bf16.mxu0 0
        %1815 = vmatpush1.bf16.msra.mxu0 0
        %1816 = vmatprep.subr.bf16.mxu0 0
        %1817 = vmatpush1.bf16.msra.mxu0 0
        %1818 = vmatprep.subr.bf16.mxu0 0
        %1819 = vmatpush1.bf16.msra.mxu0 0
        %1820 = vmatprep.subr.bf16.mxu0 0
        %1821 = vmatpush1.bf16.msra.mxu0 0
        %1822 = vmatprep.subr.bf16.mxu0 0
        %1823 = vmatpush1.bf16.msra.mxu0 0
        %1824 = vmatprep.subr.bf16.mxu0 0
        %1825 = vmatpush1.bf16.msra.mxu0 0
        %1826 = vmatprep.mubr.bf16.mxu0 0
        %1827 = vmatmul.mubr.bf16.gmra.mrb[0].mxu0 %v1751
        %v1828 = vpop.f32.mrb[0].mxu0
        %v1829 = vadd.f32 %v1521, %v1828
        %v1830 = vpop.f32.mrb[0].mxu0
        %v1831 = vadd.f32 %v1525, %v1830
        %v1832 = vpop.f32.mrb[0].mxu0
        %v1833 = vpop.f32.mrb[0].mxu0
        %1834 = vdwg.mxu0
        %1835 = vmatprep.subr.bf16.mxu0 %v1691
        %1836 = vmatpush1.bf16.msra.mxu0 %v1690
        %1837 = vmatprep.subr.bf16.mxu0 %v1707
        %1838 = vmatpush1.bf16.msra.mxu0 %v1706
        %1839 = vmatprep.subr.bf16.mxu0 0
        %1840 = vmatpush1.bf16.msra.mxu0 0
        %1841 = vmatprep.subr.bf16.mxu0 0
        %1842 = vmatpush1.bf16.msra.mxu0 0
        %1843 = vmatprep.subr.bf16.mxu0 0
        %1844 = vmatpush1.bf16.msra.mxu0 0
        %1845 = vmatprep.subr.bf16.mxu0 0
        %1846 = vmatpush1.bf16.msra.mxu0 0
        %1847 = vmatprep.subr.bf16.mxu0 0
        %1848 = vmatpush1.bf16.msra.mxu0 0
        %1849 = vmatprep.subr.bf16.mxu0 0
        %1850 = vmatpush1.bf16.msra.mxu0 0
        %1851 = vmatprep.subr.bf16.mxu0 0
        %1852 = vmatpush1.bf16.msra.mxu0 0
        %1853 = vmatprep.subr.bf16.mxu0 0
        %1854 = vmatpush1.bf16.msra.mxu0 0
        %1855 = vmatprep.subr.bf16.mxu0 0
        %1856 = vmatpush1.bf16.msra.mxu0 0
        %1857 = vmatprep.subr.bf16.mxu0 0
        %1858 = vmatpush1.bf16.msra.mxu0 0
        %1859 = vmatprep.subr.bf16.mxu0 0
        %1860 = vmatpush1.bf16.msra.mxu0 0
        %1861 = vmatprep.subr.bf16.mxu0 0
        %1862 = vmatpush1.bf16.msra.mxu0 0
        %1863 = vmatprep.subr.bf16.mxu0 0
        %1864 = vmatpush1.bf16.msra.mxu0 0
        %1865 = vmatprep.subr.bf16.mxu0 0
        %1866 = vmatpush1.bf16.msra.mxu0 0
        %1867 = vmatprep.mubr.bf16.mxu0 0
        %1868 = vmatmul.mubr.bf16.gmra.mrb[0].mxu0 %v1751
        %v1869 = vpop.f32.mrb[0].mxu0
        %v1870 = vadd.f32 %v1529, %v1869
        %v1871 = vpop.f32.mrb[0].mxu0
        %v1872 = vadd.f32 %v1533, %v1871
        %v1873 = vpop.f32.mrb[0].mxu0
        %v1874 = vpop.f32.mrb[0].mxu0
        %1875 = vdwg.mxu0
        %1876 = vmatprep.subr.bf16.mxu0 %v1693
        %1877 = vmatpush1.bf16.msra.mxu0 %v1692
        %1878 = vmatprep.subr.bf16.mxu0 %v1709
        %1879 = vmatpush1.bf16.msra.mxu0 %v1708
        %1880 = vmatprep.subr.bf16.mxu0 0
        %1881 = vmatpush1.bf16.msra.mxu0 0
        %1882 = vmatprep.subr.bf16.mxu0 0
        %1883 = vmatpush1.bf16.msra.mxu0 0
        %1884 = vmatprep.subr.bf16.mxu0 0
        %1885 = vmatpush1.bf16.msra.mxu0 0
        %1886 = vmatprep.subr.bf16.mxu0 0
        %1887 = vmatpush1.bf16.msra.mxu0 0
        %1888 = vmatprep.subr.bf16.mxu0 0
        %1889 = vmatpush1.bf16.msra.mxu0 0
        %1890 = vmatprep.subr.bf16.mxu0 0
        %1891 = vmatpush1.bf16.msra.mxu0 0
        %1892 = vmatprep.subr.bf16.mxu0 0
        %1893 = vmatpush1.bf16.msra.mxu0 0
        %1894 = vmatprep.subr.bf16.mxu0 0
        %1895 = vmatpush1.bf16.msra.mxu0 0
        %1896 = vmatprep.subr.bf16.mxu0 0
        %1897 = vmatpush1.bf16.msra.mxu0 0
        %1898 = vmatprep.subr.bf16.mxu0 0
        %1899 = vmatpush1.bf16.msra.mxu0 0
        %1900 = vmatprep.subr.bf16.mxu0 0
        %1901 = vmatpush1.bf16.msra.mxu0 0
        %1902 = vmatprep.subr.bf16.mxu0 0
        %1903 = vmatpush1.bf16.msra.mxu0 0
        %1904 = vmatprep.subr.bf16.mxu0 0
        %1905 = vmatpush1.bf16.msra.mxu0 0
        %1906 = vmatprep.subr.bf16.mxu0 0
        %1907 = vmatpush1.bf16.msra.mxu0 0
        %1908 = vmatprep.mubr.bf16.mxu0 0
        %1909 = vmatmul.mubr.bf16.gmra.mrb[0].mxu0 %v1751
        %v1910 = vpop.f32.mrb[0].mxu0
        %v1911 = vadd.f32 %v1537, %v1910
        %v1912 = vpop.f32.mrb[0].mxu0
        %v1913 = vadd.f32 %v1541, %v1912
        %v1914 = vpop.f32.mrb[0].mxu0
        %v1915 = vpop.f32.mrb[0].mxu0
        %1916 = vdwg.mxu0
        %1917 = vmatprep.subr.bf16.mxu0 %v1695
        %1918 = vmatpush1.bf16.msra.mxu0 %v1694
        %1919 = vmatprep.subr.bf16.mxu0 %v1711
        %1920 = vmatpush1.bf16.msra.mxu0 %v1710
        %1921 = vmatprep.subr.bf16.mxu0 0
        %1922 = vmatpush1.bf16.msra.mxu0 0
        %1923 = vmatprep.subr.bf16.mxu0 0
        %1924 = vmatpush1.bf16.msra.mxu0 0
        %1925 = vmatprep.subr.bf16.mxu0 0
        %1926 = vmatpush1.bf16.msra.mxu0 0
        %1927 = vmatprep.subr.bf16.mxu0 0
        %1928 = vmatpush1.bf16.msra.mxu0 0
        %1929 = vmatprep.subr.bf16.mxu0 0
        %1930 = vmatpush1.bf16.msra.mxu0 0
        %1931 = vmatprep.subr.bf16.mxu0 0
        %1932 = vmatpush1.bf16.msra.mxu0 0
        %1933 = vmatprep.subr.bf16.mxu0 0
        %1934 = vmatpush1.bf16.msra.mxu0 0
        %1935 = vmatprep.subr.bf16.mxu0 0
        %1936 = vmatpush1.bf16.msra.mxu0 0
        %1937 = vmatprep.subr.bf16.mxu0 0
        %1938 = vmatpush1.bf16.msra.mxu0 0
        %1939 = vmatprep.subr.bf16.mxu0 0
        %1940 = vmatpush1.bf16.msra.mxu0 0
        %1941 = vmatprep.subr.bf16.mxu0 0
        %1942 = vmatpush1.bf16.msra.mxu0 0
        %1943 = vmatprep.subr.bf16.mxu0 0
        %1944 = vmatpush1.bf16.msra.mxu0 0
        %1945 = vmatprep.subr.bf16.mxu0 0
        %1946 = vmatpush1.bf16.msra.mxu0 0
        %1947 = vmatprep.subr.bf16.mxu0 0
        %1948 = vmatpush1.bf16.msra.mxu0 0
        %1949 = vmatprep.mubr.bf16.mxu0 0
        %1950 = vmatmul.mubr.bf16.gmra.mrb[0].mxu0 %v1751
        %v1951 = vpop.f32.mrb[0].mxu0
        %v1952 = vadd.f32 %v1545, %v1951
        %v1953 = vpop.f32.mrb[0].mxu0
        %v1954 = vadd.f32 %v1549, %v1953
        %v1955 = vpop.f32.mrb[0].mxu0
        %v1956 = vpop.f32.mrb[0].mxu0
        %1957 = vdwg.mxu0
        %1958 = vmatprep.subr.bf16.mxu0 %v1697
        %1959 = vmatpush1.bf16.msra.mxu0 %v1696
        %1960 = vmatprep.subr.bf16.mxu0 %v1713
        %1961 = vmatpush1.bf16.msra.mxu0 %v1712
        %1962 = vmatprep.subr.bf16.mxu0 0
        %1963 = vmatpush1.bf16.msra.mxu0 0
        %1964 = vmatprep.subr.bf16.mxu0 0
        %1965 = vmatpush1.bf16.msra.mxu0 0
        %1966 = vmatprep.subr.bf16.mxu0 0
        %1967 = vmatpush1.bf16.msra.mxu0 0
        %1968 = vmatprep.subr.bf16.mxu0 0
        %1969 = vmatpush1.bf16.msra.mxu0 0
        %1970 = vmatprep.subr.bf16.mxu0 0
        %1971 = vmatpush1.bf16.msra.mxu0 0
        %1972 = vmatprep.subr.bf16.mxu0 0
        %1973 = vmatpush1.bf16.msra.mxu0 0
        %1974 = vmatprep.subr.bf16.mxu0 0
        %1975 = vmatpush1.bf16.msra.mxu0 0
        %1976 = vmatprep.subr.bf16.mxu0 0
        %1977 = vmatpush1.bf16.msra.mxu0 0
        %1978 = vmatprep.subr.bf16.mxu0 0
        %1979 = vmatpush1.bf16.msra.mxu0 0
        %1980 = vmatprep.subr.bf16.mxu0 0
        %1981 = vmatpush1.bf16.msra.mxu0 0
        %1982 = vmatprep.subr.bf16.mxu0 0
        %1983 = vmatpush1.bf16.msra.mxu0 0
        %1984 = vmatprep.subr.bf16.mxu0 0
        %1985 = vmatpush1.bf16.msra.mxu0 0
        %1986 = vmatprep.subr.bf16.mxu0 0
        %1987 = vmatpush1.bf16.msra.mxu0 0
        %1988 = vmatprep.subr.bf16.mxu0 0
        %1989 = vmatpush1.bf16.msra.mxu0 0
        %1990 = vmatprep.mubr.bf16.mxu0 0
        %1991 = vmatmul.mubr.bf16.gmra.mrb[0].mxu0 %v1751
        %v1992 = vpop.f32.mrb[0].mxu0
        %v1993 = vadd.f32 %v1553, %v1992
        %v1994 = vpop.f32.mrb[0].mxu0
        %v1995 = vadd.f32 %v1557, %v1994
        %v1996 = vpop.f32.mrb[0].mxu0
        %v1997 = vpop.f32.mrb[0].mxu0
        %1998 = vdwg.mxu0
        %1999 = vmatprep.subr.bf16.mxu0 %v1699
        %2000 = vmatpush1.bf16.msra.mxu0 %v1698
        %2001 = vmatprep.subr.bf16.mxu0 %v1715
        %2002 = vmatpush1.bf16.msra.mxu0 %v1714
        %2003 = vmatprep.subr.bf16.mxu0 0
        %2004 = vmatpush1.bf16.msra.mxu0 0
        %2005 = vmatprep.subr.bf16.mxu0 0
        %2006 = vmatpush1.bf16.msra.mxu0 0
        %2007 = vmatprep.subr.bf16.mxu0 0
        %2008 = vmatpush1.bf16.msra.mxu0 0
        %2009 = vmatprep.subr.bf16.mxu0 0
        %2010 = vmatpush1.bf16.msra.mxu0 0
        %2011 = vmatprep.subr.bf16.mxu0 0
        %2012 = vmatpush1.bf16.msra.mxu0 0
        %2013 = vmatprep.subr.bf16.mxu0 0
        %2014 = vmatpush1.bf16.msra.mxu0 0
        %2015 = vmatprep.subr.bf16.mxu0 0
        %2016 = vmatpush1.bf16.msra.mxu0 0
        %2017 = vmatprep.subr.bf16.mxu0 0
        %2018 = vmatpush1.bf16.msra.mxu0 0
        %2019 = vmatprep.subr.bf16.mxu0 0
        %2020 = vmatpush1.bf16.msra.mxu0 0
        %2021 = vmatprep.subr.bf16.mxu0 0
        %2022 = vmatpush1.bf16.msra.mxu0 0
        %2023 = vmatprep.subr.bf16.mxu0 0
        %2024 = vmatpush1.bf16.msra.mxu0 0
        %2025 = vmatprep.subr.bf16.mxu0 0
        %2026 = vmatpush1.bf16.msra.mxu0 0
        %2027 = vmatprep.subr.bf16.mxu0 0
        %2028 = vmatpush1.bf16.msra.mxu0 0
        %2029 = vmatprep.subr.bf16.mxu0 0
        %2030 = vmatpush1.bf16.msra.mxu0 0
        %2031 = vmatprep.mubr.bf16.mxu0 0
        %2032 = vmatmul.mubr.bf16.gmra.mrb[0].mxu0 %v1751
        %v2033 = vpop.f32.mrb[0].mxu0
        %v2034 = vadd.f32 %v1561, %v2033
        %v2035 = vpop.f32.mrb[0].mxu0
        %v2036 = vadd.f32 %v1565, %v2035
        %v2037 = vpop.f32.mrb[0].mxu0
        %v2038 = vpop.f32.mrb[0].mxu0
        %2039 = vdwg.mxu0
        %2040 = vmatprep.subr.bf16.mxu0 %v1701
        %2041 = vmatpush1.bf16.msra.mxu0 %v1700
        %2042 = vmatprep.subr.bf16.mxu0 %v1717
        %2043 = vmatpush1.bf16.msra.mxu0 %v1716
        %2044 = vmatprep.subr.bf16.mxu0 0
        %2045 = vmatpush1.bf16.msra.mxu0 0
        %2046 = vmatprep.subr.bf16.mxu0 0
        %2047 = vmatpush1.bf16.msra.mxu0 0
        %2048 = vmatprep.subr.bf16.mxu0 0
        %2049 = vmatpush1.bf16.msra.mxu0 0
        %2050 = vmatprep.subr.bf16.mxu0 0
        %2051 = vmatpush1.bf16.msra.mxu0 0
        %2052 = vmatprep.subr.bf16.mxu0 0
        %2053 = vmatpush1.bf16.msra.mxu0 0
        %2054 = vmatprep.subr.bf16.mxu0 0
        %2055 = vmatpush1.bf16.msra.mxu0 0
        %2056 = vmatprep.subr.bf16.mxu0 0
        %2057 = vmatpush1.bf16.msra.mxu0 0
        %2058 = vmatprep.subr.bf16.mxu0 0
        %2059 = vmatpush1.bf16.msra.mxu0 0
        %2060 = vmatprep.subr.bf16.mxu0 0
        %2061 = vmatpush1.bf16.msra.mxu0 0
        %2062 = vmatprep.subr.bf16.mxu0 0
        %2063 = vmatpush1.bf16.msra.mxu0 0
        %2064 = vmatprep.subr.bf16.mxu0 0
        %2065 = vmatpush1.bf16.msra.mxu0 0
        %2066 = vmatprep.subr.bf16.mxu0 0
        %2067 = vmatpush1.bf16.msra.mxu0 0
        %2068 = vmatprep.subr.bf16.mxu0 0
        %2069 = vmatpush1.bf16.msra.mxu0 0
        %2070 = vmatprep.subr.bf16.mxu0 0
        %2071 = vmatpush1.bf16.msra.mxu0 0
        %2072 = vmatprep.mubr.bf16.mxu0 0
        %2073 = vmatmul.mubr.bf16.gmra.mrb[0].mxu0 %v1751
        %v2074 = vpop.f32.mrb[0].mxu0
        %v2075 = vadd.f32 %v1569, %v2074
        %v2076 = vpop.f32.mrb[0].mxu0
        %v2077 = vadd.f32 %v1573, %v2076
        %v2078 = vpop.f32.mrb[0].mxu0
        %v2079 = vpop.f32.mrb[0].mxu0
        %2080 = vdwg.mxu0
        %v2081 = vmax.f32 %v1788, 0.0
        %v2082 = vmax.f32 %v1790, 0.0
        %v2083 = vmax.f32 %v1829, 0.0
        %v2084 = vmax.f32 %v1831, 0.0
        %v2085 = vmax.f32 %v1870, 0.0
        %v2086 = vmax.f32 %v1872, 0.0
        %v2087 = vmax.f32 %v1911, 0.0
        %v2088 = vmax.f32 %v1913, 0.0
        %v2089 = vmax.f32 %v1952, 0.0
        %v2090 = vmax.f32 %v1954, 0.0
        %v2091 = vmax.f32 %v1993, 0.0
        %v2092 = vmax.f32 %v1995, 0.0
        %v2093 = vmax.f32 %v2034, 0.0
        %v2094 = vmax.f32 %v2036, 0.0
        %v2095 = vmax.f32 %v2075, 0.0
        %v2096 = vmax.f32 %v2077, 0.0
        %v2097 = vpack.c.bf16 %v2081, %v2081
        %v2098 = vpack.c.bf16 %v2082, %v2082
        %v2099 = vpack.c.bf16 %v2083, %v2083
        %v2100 = vpack.c.bf16 %v2084, %v2084
        %v2101 = vpack.c.bf16 %v2085, %v2085
        %v2102 = vpack.c.bf16 %v2086, %v2086
        %v2103 = vpack.c.bf16 %v2087, %v2087
        %v2104 = vpack.c.bf16 %v2088, %v2088
        %v2105 = vpack.c.bf16 %v2089, %v2089
        %v2106 = vpack.c.bf16 %v2090, %v2090
        %v2107 = vpack.c.bf16 %v2091, %v2091
        %v2108 = vpack.c.bf16 %v2092, %v2092
        %v2109 = vpack.c.bf16 %v2093, %v2093
        %v2110 = vpack.c.bf16 %v2094, %v2094
        %v2111 = vpack.c.bf16 %v2095, %v2095
        %v2112 = vpack.c.bf16 %v2096, %v2096
        %v2113 = vld [vmem:[%s767] sm:$0xf]
        %v2114 = vld [vmem:[%s767 + $0x4] sm:$0xf]
        %v2115 = vld [vmem:[%s767 + $0x8] sm:$0xf]
        %v2116 = vld [vmem:[%s767 + $0xc] sm:$0xf]
        %v2117 = vld [vmem:[%s767 + $0x10] sm:$0xf]
        %v2118 = vld [vmem:[%s767 + $0x14] sm:$0xf]
        %v2119 = vld [vmem:[%s767 + $0x18] sm:$0xf]
        %v2120 = vld [vmem:[%s767 + $0x1c] sm:$0xf]
        %v2121 = vld [vmem:[%s767 + $0x20] sm:$0xf]
        %v2122 = vld [vmem:[%s767 + $0x24] sm:$0xf]
        %v2123 = vld [vmem:[%s767 + $0x28] sm:$0xf]
        %v2124 = vld [vmem:[%s767 + $0x2c] sm:$0xf]
        %v2125 = vld [vmem:[%s767 + $0x30] sm:$0xf]
        %v2126 = vld [vmem:[%s767 + $0x34] sm:$0xf]
        %v2127 = vld [vmem:[%s767 + $0x38] sm:$0xf]
        %v2128 = vld [vmem:[%s767 + $0x3c] sm:$0xf]
        %v2129 = vld [vmem:[%s767 + $0x40] sm:$0xf]
        %v2130 = vld [vmem:[%s767 + $0x44] sm:$0xf]
        %v2131 = vld [vmem:[%s767 + $0x48] sm:$0xf]
        %v2132 = vld [vmem:[%s767 + $0x4c] sm:$0xf]
        %v2133 = vld [vmem:[%s767 + $0x50] sm:$0xf]
        %v2134 = vld [vmem:[%s767 + $0x54] sm:$0xf]
        %v2135 = vld [vmem:[%s767 + $0x58] sm:$0xf]
        %v2136 = vld [vmem:[%s767 + $0x5c] sm:$0xf]
        %v2137 = vld [vmem:[%s767 + $0x60] sm:$0xf]
        %v2138 = vld [vmem:[%s767 + $0x64] sm:$0xf]
        %v2139 = vld [vmem:[%s767 + $0x68] sm:$0xf]
        %v2140 = vld [vmem:[%s767 + $0x6c] sm:$0xf]
        %v2141 = vld [vmem:[%s767 + $0x70] sm:$0xf]
        %v2142 = vld [vmem:[%s767 + $0x74] sm:$0xf]
        %v2143 = vld [vmem:[%s767 + $0x78] sm:$0xf]
        %v2144 = vld [vmem:[%s767 + $0x7c] sm:$0xf]
        %v2145 = vld [vmem:[%s767 + $0x80] sm:$0xf]
        %v2146 = vld [vmem:[%s767 + $0x84] sm:$0xf]
        %v2147 = vld [vmem:[%s767 + $0x88] sm:$0xf]
        %v2148 = vld [vmem:[%s767 + $0x8c] sm:$0xf]
        %v2149 = vld [vmem:[%s767 + $0x90] sm:$0xf]
        %v2150 = vld [vmem:[%s767 + $0x94] sm:$0xf]
        %v2151 = vld [vmem:[%s767 + $0x98] sm:$0xf]
        %v2152 = vld [vmem:[%s767 + $0x9c] sm:$0xf]
        %v2153 = vld [vmem:[%s767 + $0xa0] sm:$0xf]
        %v2154 = vld [vmem:[%s767 + $0xa4] sm:$0xf]
        %v2155 = vld [vmem:[%s767 + $0xa8] sm:$0xf]
        %v2156 = vld [vmem:[%s767 + $0xac] sm:$0xf]
        %v2157 = vld [vmem:[%s767 + $0xb0] sm:$0xf]
        %v2158 = vld [vmem:[%s767 + $0xb4] sm:$0xf]
        %v2159 = vld [vmem:[%s767 + $0xb8] sm:$0xf]
        %v2160 = vld [vmem:[%s767 + $0xbc] sm:$0xf]
        %v2161 = vld [vmem:[%s767 + $0xc0] sm:$0xf]
        %v2162 = vld [vmem:[%s767 + $0xc4] sm:$0xf]
        %v2163 = vld [vmem:[%s767 + $0xc8] sm:$0xf]
        %v2164 = vld [vmem:[%s767 + $0xcc] sm:$0xf]
        %v2165 = vld [vmem:[%s767 + $0xd0] sm:$0xf]
        %v2166 = vld [vmem:[%s767 + $0xd4] sm:$0xf]
        %v2167 = vld [vmem:[%s767 + $0xd8] sm:$0xf]
        %v2168 = vld [vmem:[%s767 + $0xdc] sm:$0xf]
        %v2169 = vld [vmem:[%s767 + $0xe0] sm:$0xf]
        %v2170 = vld [vmem:[%s767 + $0xe4] sm:$0xf]
        %v2171 = vld [vmem:[%s767 + $0xe8] sm:$0xf]
        %v2172 = vld [vmem:[%s767 + $0xec] sm:$0xf]
        %v2173 = vld [vmem:[%s767 + $0xf0] sm:$0xf]
        %v2174 = vld [vmem:[%s767 + $0xf4] sm:$0xf]
        %v2175 = vld [vmem:[%s767 + $0xf8] sm:$0xf]
        %v2176 = vld [vmem:[%s767 + $0xfc] sm:$0xf]
        %v2177 = vld [vmem:[%s767 + $0x100] sm:$0xf]
        %v2178 = vld [vmem:[%s767 + $0x104] sm:$0xf]
        %v2179 = vld [vmem:[%s767 + $0x108] sm:$0xf]
        %v2180 = vld [vmem:[%s767 + $0x10c] sm:$0xf]
        %v2181 = vld [vmem:[%s767 + $0x110] sm:$0xf]
        %v2182 = vld [vmem:[%s767 + $0x114] sm:$0xf]
        %v2183 = vld [vmem:[%s767 + $0x118] sm:$0xf]
        %v2184 = vld [vmem:[%s767 + $0x11c] sm:$0xf]
        %v2185 = vld [vmem:[%s767 + $0x120] sm:$0xf]
        %v2186 = vld [vmem:[%s767 + $0x124] sm:$0xf]
        %v2187 = vld [vmem:[%s767 + $0x128] sm:$0xf]
        %v2188 = vld [vmem:[%s767 + $0x12c] sm:$0xf]
        %v2189 = vld [vmem:[%s767 + $0x130] sm:$0xf]
        %v2190 = vld [vmem:[%s767 + $0x134] sm:$0xf]
        %v2191 = vld [vmem:[%s767 + $0x138] sm:$0xf]
        %v2192 = vld [vmem:[%s767 + $0x13c] sm:$0xf]
        %v2193 = vld [vmem:[%s767 + $0x140] sm:$0xf]
        %v2194 = vld [vmem:[%s767 + $0x144] sm:$0xf]
        %v2195 = vld [vmem:[%s767 + $0x148] sm:$0xf]
        %v2196 = vld [vmem:[%s767 + $0x14c] sm:$0xf]
        %v2197 = vld [vmem:[%s767 + $0x150] sm:$0xf]
        %v2198 = vld [vmem:[%s767 + $0x154] sm:$0xf]
        %v2199 = vld [vmem:[%s767 + $0x158] sm:$0xf]
        %v2200 = vld [vmem:[%s767 + $0x15c] sm:$0xf]
        %v2201 = vld [vmem:[%s767 + $0x160] sm:$0xf]
        %v2202 = vld [vmem:[%s767 + $0x164] sm:$0xf]
        %v2203 = vld [vmem:[%s767 + $0x168] sm:$0xf]
        %v2204 = vld [vmem:[%s767 + $0x16c] sm:$0xf]
        %v2205 = vld [vmem:[%s767 + $0x170] sm:$0xf]
        %v2206 = vld [vmem:[%s767 + $0x174] sm:$0xf]
        %v2207 = vld [vmem:[%s767 + $0x178] sm:$0xf]
        %v2208 = vld [vmem:[%s767 + $0x17c] sm:$0xf]
        %v2209 = vld [vmem:[%s767 + $0x180] sm:$0xf]
        %v2210 = vld [vmem:[%s767 + $0x184] sm:$0xf]
        %v2211 = vld [vmem:[%s767 + $0x188] sm:$0xf]
        %v2212 = vld [vmem:[%s767 + $0x18c] sm:$0xf]
        %v2213 = vld [vmem:[%s767 + $0x190] sm:$0xf]
        %v2214 = vld [vmem:[%s767 + $0x194] sm:$0xf]
        %v2215 = vld [vmem:[%s767 + $0x198] sm:$0xf]
        %v2216 = vld [vmem:[%s767 + $0x19c] sm:$0xf]
        %v2217 = vld [vmem:[%s767 + $0x1a0] sm:$0xf]
        %v2218 = vld [vmem:[%s767 + $0x1a4] sm:$0xf]
        %v2219 = vld [vmem:[%s767 + $0x1a8] sm:$0xf]
        %v2220 = vld [vmem:[%s767 + $0x1ac] sm:$0xf]
        %v2221 = vld [vmem:[%s767 + $0x1b0] sm:$0xf]
        %v2222 = vld [vmem:[%s767 + $0x1b4] sm:$0xf]
        %v2223 = vld [vmem:[%s767 + $0x1b8] sm:$0xf]
        %v2224 = vld [vmem:[%s767 + $0x1bc] sm:$0xf]
        %v2225 = vld [vmem:[%s767 + $0x1c0] sm:$0xf]
        %v2226 = vld [vmem:[%s767 + $0x1c4] sm:$0xf]
        %v2227 = vld [vmem:[%s767 + $0x1c8] sm:$0xf]
        %v2228 = vld [vmem:[%s767 + $0x1cc] sm:$0xf]
        %v2229 = vld [vmem:[%s767 + $0x1d0] sm:$0xf]
        %v2230 = vld [vmem:[%s767 + $0x1d4] sm:$0xf]
        %v2231 = vld [vmem:[%s767 + $0x1d8] sm:$0xf]
        %v2232 = vld [vmem:[%s767 + $0x1dc] sm:$0xf]
        %v2233 = vld [vmem:[%s767 + $0x1e0] sm:$0xf]
        %v2234 = vld [vmem:[%s767 + $0x1e4] sm:$0xf]
        %v2235 = vld [vmem:[%s767 + $0x1e8] sm:$0xf]
        %v2236 = vld [vmem:[%s767 + $0x1ec] sm:$0xf]
        %v2237 = vld [vmem:[%s767 + $0x1f0] sm:$0xf]
        %v2238 = vld [vmem:[%s767 + $0x1f4] sm:$0xf]
        %v2239 = vld [vmem:[%s767 + $0x1f8] sm:$0xf]
        %v2240 = vld [vmem:[%s767 + $0x1fc] sm:$0xf]
        %v2241 = vld [vmem:[%s767 + $0x200] sm:$0xf]
        %v2242 = vld [vmem:[%s767 + $0x204] sm:$0xf]
        %v2243 = vld [vmem:[%s767 + $0x208] sm:$0xf]
        %v2244 = vld [vmem:[%s767 + $0x20c] sm:$0xf]
        %v2245 = vld [vmem:[%s767 + $0x210] sm:$0xf]
        %v2246 = vld [vmem:[%s767 + $0x214] sm:$0xf]
        %v2247 = vld [vmem:[%s767 + $0x218] sm:$0xf]
        %v2248 = vld [vmem:[%s767 + $0x21c] sm:$0xf]
        %v2249 = vld [vmem:[%s767 + $0x220] sm:$0xf]
        %v2250 = vld [vmem:[%s767 + $0x224] sm:$0xf]
        %v2251 = vld [vmem:[%s767 + $0x228] sm:$0xf]
        %v2252 = vld [vmem:[%s767 + $0x22c] sm:$0xf]
        %v2253 = vld [vmem:[%s767 + $0x230] sm:$0xf]
        %v2254 = vld [vmem:[%s767 + $0x234] sm:$0xf]
        %v2255 = vld [vmem:[%s767 + $0x238] sm:$0xf]
        %v2256 = vld [vmem:[%s767 + $0x23c] sm:$0xf]
        %v2257 = vld [vmem:[%s767 + $0x240] sm:$0xf]
        %v2258 = vld [vmem:[%s767 + $0x244] sm:$0xf]
        %v2259 = vld [vmem:[%s767 + $0x248] sm:$0xf]
        %v2260 = vld [vmem:[%s767 + $0x24c] sm:$0xf]
        %v2261 = vld [vmem:[%s767 + $0x250] sm:$0xf]
        %v2262 = vld [vmem:[%s767 + $0x254] sm:$0xf]
        %v2263 = vld [vmem:[%s767 + $0x258] sm:$0xf]
        %v2264 = vld [vmem:[%s767 + $0x25c] sm:$0xf]
        %v2265 = vld [vmem:[%s767 + $0x260] sm:$0xf]
        %v2266 = vld [vmem:[%s767 + $0x264] sm:$0xf]
        %v2267 = vld [vmem:[%s767 + $0x268] sm:$0xf]
        %v2268 = vld [vmem:[%s767 + $0x26c] sm:$0xf]
        %v2269 = vld [vmem:[%s767 + $0x270] sm:$0xf]
        %v2270 = vld [vmem:[%s767 + $0x274] sm:$0xf]
        %v2271 = vld [vmem:[%s767 + $0x278] sm:$0xf]
        %v2272 = vld [vmem:[%s767 + $0x27c] sm:$0xf]
        %v2273 = vld [vmem:[%s767 + $0x280] sm:$0xf]
        %v2274 = vld [vmem:[%s767 + $0x284] sm:$0xf]
        %v2275 = vld [vmem:[%s767 + $0x288] sm:$0xf]
        %v2276 = vld [vmem:[%s767 + $0x28c] sm:$0xf]
        %v2277 = vld [vmem:[%s767 + $0x290] sm:$0xf]
        %v2278 = vld [vmem:[%s767 + $0x294] sm:$0xf]
        %v2279 = vld [vmem:[%s767 + $0x298] sm:$0xf]
        %v2280 = vld [vmem:[%s767 + $0x29c] sm:$0xf]
        %v2281 = vld [vmem:[%s767 + $0x2a0] sm:$0xf]
        %v2282 = vld [vmem:[%s767 + $0x2a4] sm:$0xf]
        %v2283 = vld [vmem:[%s767 + $0x2a8] sm:$0xf]
        %v2284 = vld [vmem:[%s767 + $0x2ac] sm:$0xf]
        %v2285 = vld [vmem:[%s767 + $0x2b0] sm:$0xf]
        %v2286 = vld [vmem:[%s767 + $0x2b4] sm:$0xf]
        %v2287 = vld [vmem:[%s767 + $0x2b8] sm:$0xf]
        %v2288 = vld [vmem:[%s767 + $0x2bc] sm:$0xf]
        %v2289 = vld [vmem:[%s767 + $0x2c0] sm:$0xf]
        %v2290 = vld [vmem:[%s767 + $0x2c4] sm:$0xf]
        %v2291 = vld [vmem:[%s767 + $0x2c8] sm:$0xf]
        %v2292 = vld [vmem:[%s767 + $0x2cc] sm:$0xf]
        %v2293 = vld [vmem:[%s767 + $0x2d0] sm:$0xf]
        %v2294 = vld [vmem:[%s767 + $0x2d4] sm:$0xf]
        %v2295 = vld [vmem:[%s767 + $0x2d8] sm:$0xf]
        %v2296 = vld [vmem:[%s767 + $0x2dc] sm:$0xf]
        %v2297 = vld [vmem:[%s767 + $0x2e0] sm:$0xf]
        %v2298 = vld [vmem:[%s767 + $0x2e4] sm:$0xf]
        %v2299 = vld [vmem:[%s767 + $0x2e8] sm:$0xf]
        %v2300 = vld [vmem:[%s767 + $0x2ec] sm:$0xf]
        %v2301 = vld [vmem:[%s767 + $0x2f0] sm:$0xf]
        %v2302 = vld [vmem:[%s767 + $0x2f4] sm:$0xf]
        %v2303 = vld [vmem:[%s767 + $0x2f8] sm:$0xf]
        %v2304 = vld [vmem:[%s767 + $0x2fc] sm:$0xf]
        %v2305 = vld [vmem:[%s767 + $0x300] sm:$0xf]
        %v2306 = vld [vmem:[%s767 + $0x304] sm:$0xf]
        %v2307 = vld [vmem:[%s767 + $0x308] sm:$0xf]
        %v2308 = vld [vmem:[%s767 + $0x30c] sm:$0xf]
        %v2309 = vld [vmem:[%s767 + $0x310] sm:$0xf]
        %v2310 = vld [vmem:[%s767 + $0x314] sm:$0xf]
        %v2311 = vld [vmem:[%s767 + $0x318] sm:$0xf]
        %v2312 = vld [vmem:[%s767 + $0x31c] sm:$0xf]
        %v2313 = vld [vmem:[%s767 + $0x320] sm:$0xf]
        %v2314 = vld [vmem:[%s767 + $0x324] sm:$0xf]
        %v2315 = vld [vmem:[%s767 + $0x328] sm:$0xf]
        %v2316 = vld [vmem:[%s767 + $0x32c] sm:$0xf]
        %v2317 = vld [vmem:[%s767 + $0x330] sm:$0xf]
        %v2318 = vld [vmem:[%s767 + $0x334] sm:$0xf]
        %v2319 = vld [vmem:[%s767 + $0x338] sm:$0xf]
        %v2320 = vld [vmem:[%s767 + $0x33c] sm:$0xf]
        %v2321 = vld [vmem:[%s767 + $0x340] sm:$0xf]
        %v2322 = vld [vmem:[%s767 + $0x344] sm:$0xf]
        %v2323 = vld [vmem:[%s767 + $0x348] sm:$0xf]
        %v2324 = vld [vmem:[%s767 + $0x34c] sm:$0xf]
        %v2325 = vld [vmem:[%s767 + $0x350] sm:$0xf]
        %v2326 = vld [vmem:[%s767 + $0x354] sm:$0xf]
        %v2327 = vld [vmem:[%s767 + $0x358] sm:$0xf]
        %v2328 = vld [vmem:[%s767 + $0x35c] sm:$0xf]
        %v2329 = vld [vmem:[%s767 + $0x360] sm:$0xf]
        %v2330 = vld [vmem:[%s767 + $0x364] sm:$0xf]
        %v2331 = vld [vmem:[%s767 + $0x368] sm:$0xf]
        %v2332 = vld [vmem:[%s767 + $0x36c] sm:$0xf]
        %v2333 = vld [vmem:[%s767 + $0x370] sm:$0xf]
        %v2334 = vld [vmem:[%s767 + $0x374] sm:$0xf]
        %v2335 = vld [vmem:[%s767 + $0x378] sm:$0xf]
        %v2336 = vld [vmem:[%s767 + $0x37c] sm:$0xf]
        %v2337 = vld [vmem:[%s767 + $0x380] sm:$0xf]
        %v2338 = vld [vmem:[%s767 + $0x384] sm:$0xf]
        %v2339 = vld [vmem:[%s767 + $0x388] sm:$0xf]
        %v2340 = vld [vmem:[%s767 + $0x38c] sm:$0xf]
        %v2341 = vld [vmem:[%s767 + $0x390] sm:$0xf]
        %v2342 = vld [vmem:[%s767 + $0x394] sm:$0xf]
        %v2343 = vld [vmem:[%s767 + $0x398] sm:$0xf]
        %v2344 = vld [vmem:[%s767 + $0x39c] sm:$0xf]
        %v2345 = vld [vmem:[%s767 + $0x3a0] sm:$0xf]
        %v2346 = vld [vmem:[%s767 + $0x3a4] sm:$0xf]
        %v2347 = vld [vmem:[%s767 + $0x3a8] sm:$0xf]
        %v2348 = vld [vmem:[%s767 + $0x3ac] sm:$0xf]
        %v2349 = vld [vmem:[%s767 + $0x3b0] sm:$0xf]
        %v2350 = vld [vmem:[%s767 + $0x3b4] sm:$0xf]
        %v2351 = vld [vmem:[%s767 + $0x3b8] sm:$0xf]
        %v2352 = vld [vmem:[%s767 + $0x3bc] sm:$0xf]
        %v2353 = vld [vmem:[%s767 + $0x3c0] sm:$0xf]
        %v2354 = vld [vmem:[%s767 + $0x3c4] sm:$0xf]
        %v2355 = vld [vmem:[%s767 + $0x3c8] sm:$0xf]
        %v2356 = vld [vmem:[%s767 + $0x3cc] sm:$0xf]
        %v2357 = vld [vmem:[%s767 + $0x3d0] sm:$0xf]
        %v2358 = vld [vmem:[%s767 + $0x3d4] sm:$0xf]
        %v2359 = vld [vmem:[%s767 + $0x3d8] sm:$0xf]
        %v2360 = vld [vmem:[%s767 + $0x3dc] sm:$0xf]
        %v2361 = vld [vmem:[%s767 + $0x3e0] sm:$0xf]
        %v2362 = vld [vmem:[%s767 + $0x3e4] sm:$0xf]
        %v2363 = vld [vmem:[%s767 + $0x3e8] sm:$0xf]
        %v2364 = vld [vmem:[%s767 + $0x3ec] sm:$0xf]
        %v2365 = vld [vmem:[%s767 + $0x3f0] sm:$0xf]
        %v2366 = vld [vmem:[%s767 + $0x3f4] sm:$0xf]
        %v2367 = vld [vmem:[%s767 + $0x3f8] sm:$0xf]
        %v2368 = vld [vmem:[%s767 + $0x3fc] sm:$0xf]
        %v2369 = vld [vmem:[%s770] sm:$0x1]
        %v2371 = vlaneseq
        %v2372 = vshrl.u32 %v2371, 7
        %v2373 = vsub.s32 0, %v2372
        %v2374 = vrot.slane %v2369, %v2373
        %v2632 = vunpack.c.l.b16 %v2113
        %v2633 = vunpack.c.l.b16 %v2114
        %v2634 = vunpack.c.l.b16 %v2115
        %v2635 = vunpack.c.l.b16 %v2116
        %v2636 = vunpack.c.l.b16 %v2117
        %v2637 = vunpack.c.l.b16 %v2118
        %v2638 = vunpack.c.l.b16 %v2119
        %v2639 = vunpack.c.l.b16 %v2120
        %v2640 = vunpack.c.l.b16 %v2121
        %v2641 = vunpack.c.l.b16 %v2122
        %v2642 = vunpack.c.l.b16 %v2123
        %v2643 = vunpack.c.l.b16 %v2124
        %v2644 = vunpack.c.l.b16 %v2125
        %v2645 = vunpack.c.l.b16 %v2126
        %v2646 = vunpack.c.l.b16 %v2127
        %v2647 = vunpack.c.l.b16 %v2128
        %v2648 = vunpack.c.l.b16 %v2129
        %v2649 = vunpack.c.l.b16 %v2130
        %v2650 = vunpack.c.l.b16 %v2131
        %v2651 = vunpack.c.l.b16 %v2132
        %v2652 = vunpack.c.l.b16 %v2133
        %v2653 = vunpack.c.l.b16 %v2134
        %v2654 = vunpack.c.l.b16 %v2135
        %v2655 = vunpack.c.l.b16 %v2136
        %v2656 = vunpack.c.l.b16 %v2137
        %v2657 = vunpack.c.l.b16 %v2138
        %v2658 = vunpack.c.l.b16 %v2139
        %v2659 = vunpack.c.l.b16 %v2140
        %v2660 = vunpack.c.l.b16 %v2141
        %v2661 = vunpack.c.l.b16 %v2142
        %v2662 = vunpack.c.l.b16 %v2143
        %v2663 = vunpack.c.l.b16 %v2144
        %v2664 = vunpack.c.l.b16 %v2145
        %v2665 = vunpack.c.l.b16 %v2146
        %v2666 = vunpack.c.l.b16 %v2147
        %v2667 = vunpack.c.l.b16 %v2148
        %v2668 = vunpack.c.l.b16 %v2149
        %v2669 = vunpack.c.l.b16 %v2150
        %v2670 = vunpack.c.l.b16 %v2151
        %v2671 = vunpack.c.l.b16 %v2152
        %v2672 = vunpack.c.l.b16 %v2153
        %v2673 = vunpack.c.l.b16 %v2154
        %v2674 = vunpack.c.l.b16 %v2155
        %v2675 = vunpack.c.l.b16 %v2156
        %v2676 = vunpack.c.l.b16 %v2157
        %v2677 = vunpack.c.l.b16 %v2158
        %v2678 = vunpack.c.l.b16 %v2159
        %v2679 = vunpack.c.l.b16 %v2160
        %v2680 = vunpack.c.l.b16 %v2161
        %v2681 = vunpack.c.l.b16 %v2162
        %v2682 = vunpack.c.l.b16 %v2163
        %v2683 = vunpack.c.l.b16 %v2164
        %v2684 = vunpack.c.l.b16 %v2165
        %v2685 = vunpack.c.l.b16 %v2166
        %v2686 = vunpack.c.l.b16 %v2167
        %v2687 = vunpack.c.l.b16 %v2168
        %v2688 = vunpack.c.l.b16 %v2169
        %v2689 = vunpack.c.l.b16 %v2170
        %v2690 = vunpack.c.l.b16 %v2171
        %v2691 = vunpack.c.l.b16 %v2172
        %v2692 = vunpack.c.l.b16 %v2173
        %v2693 = vunpack.c.l.b16 %v2174
        %v2694 = vunpack.c.l.b16 %v2175
        %v2695 = vunpack.c.l.b16 %v2176
        %v2696 = vunpack.c.l.b16 %v2177
        %v2697 = vunpack.c.l.b16 %v2178
        %v2698 = vunpack.c.l.b16 %v2179
        %v2699 = vunpack.c.l.b16 %v2180
        %v2700 = vunpack.c.l.b16 %v2181
        %v2701 = vunpack.c.l.b16 %v2182
        %v2702 = vunpack.c.l.b16 %v2183
        %v2703 = vunpack.c.l.b16 %v2184
        %v2704 = vunpack.c.l.b16 %v2185
        %v2705 = vunpack.c.l.b16 %v2186
        %v2706 = vunpack.c.l.b16 %v2187
        %v2707 = vunpack.c.l.b16 %v2188
        %v2708 = vunpack.c.l.b16 %v2189
        %v2709 = vunpack.c.l.b16 %v2190
        %v2710 = vunpack.c.l.b16 %v2191
        %v2711 = vunpack.c.l.b16 %v2192
        %v2712 = vunpack.c.l.b16 %v2193
        %v2713 = vunpack.c.l.b16 %v2194
        %v2714 = vunpack.c.l.b16 %v2195
        %v2715 = vunpack.c.l.b16 %v2196
        %v2716 = vunpack.c.l.b16 %v2197
        %v2717 = vunpack.c.l.b16 %v2198
        %v2718 = vunpack.c.l.b16 %v2199
        %v2719 = vunpack.c.l.b16 %v2200
        %v2720 = vunpack.c.l.b16 %v2201
        %v2721 = vunpack.c.l.b16 %v2202
        %v2722 = vunpack.c.l.b16 %v2203
        %v2723 = vunpack.c.l.b16 %v2204
        %v2724 = vunpack.c.l.b16 %v2205
        %v2725 = vunpack.c.l.b16 %v2206
        %v2726 = vunpack.c.l.b16 %v2207
        %v2727 = vunpack.c.l.b16 %v2208
        %v2728 = vunpack.c.l.b16 %v2209
        %v2729 = vunpack.c.l.b16 %v2210
        %v2730 = vunpack.c.l.b16 %v2211
        %v2731 = vunpack.c.l.b16 %v2212
        %v2732 = vunpack.c.l.b16 %v2213
        %v2733 = vunpack.c.l.b16 %v2214
        %v2734 = vunpack.c.l.b16 %v2215
        %v2735 = vunpack.c.l.b16 %v2216
        %v2736 = vunpack.c.l.b16 %v2217
        %v2737 = vunpack.c.l.b16 %v2218
        %v2738 = vunpack.c.l.b16 %v2219
        %v2739 = vunpack.c.l.b16 %v2220
        %v2740 = vunpack.c.l.b16 %v2221
        %v2741 = vunpack.c.l.b16 %v2222
        %v2742 = vunpack.c.l.b16 %v2223
        %v2743 = vunpack.c.l.b16 %v2224
        %v2744 = vunpack.c.l.b16 %v2225
        %v2745 = vunpack.c.l.b16 %v2226
        %v2746 = vunpack.c.l.b16 %v2227
        %v2747 = vunpack.c.l.b16 %v2228
        %v2748 = vunpack.c.l.b16 %v2229
        %v2749 = vunpack.c.l.b16 %v2230
        %v2750 = vunpack.c.l.b16 %v2231
        %v2751 = vunpack.c.l.b16 %v2232
        %v2752 = vunpack.c.l.b16 %v2233
        %v2753 = vunpack.c.l.b16 %v2234
        %v2754 = vunpack.c.l.b16 %v2235
        %v2755 = vunpack.c.l.b16 %v2236
        %v2756 = vunpack.c.l.b16 %v2237
        %v2757 = vunpack.c.l.b16 %v2238
        %v2758 = vunpack.c.l.b16 %v2239
        %v2759 = vunpack.c.l.b16 %v2240
        %v2760 = vunpack.c.l.b16 %v2241
        %v2761 = vunpack.c.l.b16 %v2242
        %v2762 = vunpack.c.l.b16 %v2243
        %v2763 = vunpack.c.l.b16 %v2244
        %v2764 = vunpack.c.l.b16 %v2245
        %v2765 = vunpack.c.l.b16 %v2246
        %v2766 = vunpack.c.l.b16 %v2247
        %v2767 = vunpack.c.l.b16 %v2248
        %v2768 = vunpack.c.l.b16 %v2249
        %v2769 = vunpack.c.l.b16 %v2250
        %v2770 = vunpack.c.l.b16 %v2251
        %v2771 = vunpack.c.l.b16 %v2252
        %v2772 = vunpack.c.l.b16 %v2253
        %v2773 = vunpack.c.l.b16 %v2254
        %v2774 = vunpack.c.l.b16 %v2255
        %v2775 = vunpack.c.l.b16 %v2256
        %v2776 = vunpack.c.l.b16 %v2257
        %v2777 = vunpack.c.l.b16 %v2258
        %v2778 = vunpack.c.l.b16 %v2259
        %v2779 = vunpack.c.l.b16 %v2260
        %v2780 = vunpack.c.l.b16 %v2261
        %v2781 = vunpack.c.l.b16 %v2262
        %v2782 = vunpack.c.l.b16 %v2263
        %v2783 = vunpack.c.l.b16 %v2264
        %v2784 = vunpack.c.l.b16 %v2265
        %v2785 = vunpack.c.l.b16 %v2266
        %v2786 = vunpack.c.l.b16 %v2267
        %v2787 = vunpack.c.l.b16 %v2268
        %v2788 = vunpack.c.l.b16 %v2269
        %v2789 = vunpack.c.l.b16 %v2270
        %v2790 = vunpack.c.l.b16 %v2271
        %v2791 = vunpack.c.l.b16 %v2272
        %v2792 = vunpack.c.l.b16 %v2273
        %v2793 = vunpack.c.l.b16 %v2274
        %v2794 = vunpack.c.l.b16 %v2275
        %v2795 = vunpack.c.l.b16 %v2276
        %v2796 = vunpack.c.l.b16 %v2277
        %v2797 = vunpack.c.l.b16 %v2278
        %v2798 = vunpack.c.l.b16 %v2279
        %v2799 = vunpack.c.l.b16 %v2280
        %v2800 = vunpack.c.l.b16 %v2281
        %v2801 = vunpack.c.l.b16 %v2282
        %v2802 = vunpack.c.l.b16 %v2283
        %v2803 = vunpack.c.l.b16 %v2284
        %v2804 = vunpack.c.l.b16 %v2285
        %v2805 = vunpack.c.l.b16 %v2286
        %v2806 = vunpack.c.l.b16 %v2287
        %v2807 = vunpack.c.l.b16 %v2288
        %v2808 = vunpack.c.l.b16 %v2289
        %v2809 = vunpack.c.l.b16 %v2290
        %v2810 = vunpack.c.l.b16 %v2291
        %v2811 = vunpack.c.l.b16 %v2292
        %v2812 = vunpack.c.l.b16 %v2293
        %v2813 = vunpack.c.l.b16 %v2294
        %v2814 = vunpack.c.l.b16 %v2295
        %v2815 = vunpack.c.l.b16 %v2296
        %v2816 = vunpack.c.l.b16 %v2297
        %v2817 = vunpack.c.l.b16 %v2298
        %v2818 = vunpack.c.l.b16 %v2299
        %v2819 = vunpack.c.l.b16 %v2300
        %v2820 = vunpack.c.l.b16 %v2301
        %v2821 = vunpack.c.l.b16 %v2302
        %v2822 = vunpack.c.l.b16 %v2303
        %v2823 = vunpack.c.l.b16 %v2304
        %v2824 = vunpack.c.l.b16 %v2305
        %v2825 = vunpack.c.l.b16 %v2306
        %v2826 = vunpack.c.l.b16 %v2307
        %v2827 = vunpack.c.l.b16 %v2308
        %v2828 = vunpack.c.l.b16 %v2309
        %v2829 = vunpack.c.l.b16 %v2310
        %v2830 = vunpack.c.l.b16 %v2311
        %v2831 = vunpack.c.l.b16 %v2312
        %v2832 = vunpack.c.l.b16 %v2313
        %v2833 = vunpack.c.l.b16 %v2314
        %v2834 = vunpack.c.l.b16 %v2315
        %v2835 = vunpack.c.l.b16 %v2316
        %v2836 = vunpack.c.l.b16 %v2317
        %v2837 = vunpack.c.l.b16 %v2318
        %v2838 = vunpack.c.l.b16 %v2319
        %v2839 = vunpack.c.l.b16 %v2320
        %v2840 = vunpack.c.l.b16 %v2321
        %v2841 = vunpack.c.l.b16 %v2322
        %v2842 = vunpack.c.l.b16 %v2323
        %v2843 = vunpack.c.l.b16 %v2324
        %v2844 = vunpack.c.l.b16 %v2325
        %v2845 = vunpack.c.l.b16 %v2326
        %v2846 = vunpack.c.l.b16 %v2327
        %v2847 = vunpack.c.l.b16 %v2328
        %v2848 = vunpack.c.l.b16 %v2329
        %v2849 = vunpack.c.l.b16 %v2330
        %v2850 = vunpack.c.l.b16 %v2331
        %v2851 = vunpack.c.l.b16 %v2332
        %v2852 = vunpack.c.l.b16 %v2333
        %v2853 = vunpack.c.l.b16 %v2334
        %v2854 = vunpack.c.l.b16 %v2335
        %v2855 = vunpack.c.l.b16 %v2336
        %v2856 = vunpack.c.l.b16 %v2337
        %v2857 = vunpack.c.l.b16 %v2338
        %v2858 = vunpack.c.l.b16 %v2339
        %v2859 = vunpack.c.l.b16 %v2340
        %v2860 = vunpack.c.l.b16 %v2341
        %v2861 = vunpack.c.l.b16 %v2342
        %v2862 = vunpack.c.l.b16 %v2343
        %v2863 = vunpack.c.l.b16 %v2344
        %v2864 = vunpack.c.l.b16 %v2345
        %v2865 = vunpack.c.l.b16 %v2346
        %v2866 = vunpack.c.l.b16 %v2347
        %v2867 = vunpack.c.l.b16 %v2348
        %v2868 = vunpack.c.l.b16 %v2349
        %v2869 = vunpack.c.l.b16 %v2350
        %v2870 = vunpack.c.l.b16 %v2351
        %v2871 = vunpack.c.l.b16 %v2352
        %v2872 = vunpack.c.l.b16 %v2353
        %v2873 = vunpack.c.l.b16 %v2354
        %v2874 = vunpack.c.l.b16 %v2355
        %v2875 = vunpack.c.l.b16 %v2356
        %v2876 = vunpack.c.l.b16 %v2357
        %v2877 = vunpack.c.l.b16 %v2358
        %v2878 = vunpack.c.l.b16 %v2359
        %v2879 = vunpack.c.l.b16 %v2360
        %v2880 = vunpack.c.l.b16 %v2361
        %v2881 = vunpack.c.l.b16 %v2362
        %v2882 = vunpack.c.l.b16 %v2363
        %v2883 = vunpack.c.l.b16 %v2364
        %v2884 = vunpack.c.l.b16 %v2365
        %v2885 = vunpack.c.l.b16 %v2366
        %v2886 = vunpack.c.l.b16 %v2367
        %v2887 = vunpack.c.l.b16 %v2368
        %v2888 = vpack.c.b16 %v2633, %v2632
        %v2889 = vpack.c.b16 %v2635, %v2634
        %v2890 = vpack.c.b16 %v2637, %v2636
        %v2891 = vpack.c.b16 %v2639, %v2638
        %v2892 = vpack.c.b16 %v2641, %v2640
        %v2893 = vpack.c.b16 %v2643, %v2642
        %v2894 = vpack.c.b16 %v2645, %v2644
        %v2895 = vpack.c.b16 %v2647, %v2646
        %v2896 = vpack.c.b16 %v2649, %v2648
        %v2897 = vpack.c.b16 %v2651, %v2650
        %v2898 = vpack.c.b16 %v2653, %v2652
        %v2899 = vpack.c.b16 %v2655, %v2654
        %v2900 = vpack.c.b16 %v2657, %v2656
        %v2901 = vpack.c.b16 %v2659, %v2658
        %v2902 = vpack.c.b16 %v2661, %v2660
        %v2903 = vpack.c.b16 %v2663, %v2662
        %v2904 = vpack.c.b16 %v2665, %v2664
        %v2905 = vpack.c.b16 %v2667, %v2666
        %v2906 = vpack.c.b16 %v2669, %v2668
        %v2907 = vpack.c.b16 %v2671, %v2670
        %v2908 = vpack.c.b16 %v2673, %v2672
        %v2909 = vpack.c.b16 %v2675, %v2674
        %v2910 = vpack.c.b16 %v2677, %v2676
        %v2911 = vpack.c.b16 %v2679, %v2678
        %v2912 = vpack.c.b16 %v2681, %v2680
        %v2913 = vpack.c.b16 %v2683, %v2682
        %v2914 = vpack.c.b16 %v2685, %v2684
        %v2915 = vpack.c.b16 %v2687, %v2686
        %v2916 = vpack.c.b16 %v2689, %v2688
        %v2917 = vpack.c.b16 %v2691, %v2690
        %v2918 = vpack.c.b16 %v2693, %v2692
        %v2919 = vpack.c.b16 %v2695, %v2694
        %v2920 = vpack.c.b16 %v2697, %v2696
        %v2921 = vpack.c.b16 %v2699, %v2698
        %v2922 = vpack.c.b16 %v2701, %v2700
        %v2923 = vpack.c.b16 %v2703, %v2702
        %v2924 = vpack.c.b16 %v2705, %v2704
        %v2925 = vpack.c.b16 %v2707, %v2706
        %v2926 = vpack.c.b16 %v2709, %v2708
        %v2927 = vpack.c.b16 %v2711, %v2710
        %v2928 = vpack.c.b16 %v2713, %v2712
        %v2929 = vpack.c.b16 %v2715, %v2714
        %v2930 = vpack.c.b16 %v2717, %v2716
        %v2931 = vpack.c.b16 %v2719, %v2718
        %v2932 = vpack.c.b16 %v2721, %v2720
        %v2933 = vpack.c.b16 %v2723, %v2722
        %v2934 = vpack.c.b16 %v2725, %v2724
        %v2935 = vpack.c.b16 %v2727, %v2726
        %v2936 = vpack.c.b16 %v2729, %v2728
        %v2937 = vpack.c.b16 %v2731, %v2730
        %v2938 = vpack.c.b16 %v2733, %v2732
        %v2939 = vpack.c.b16 %v2735, %v2734
        %v2940 = vpack.c.b16 %v2737, %v2736
        %v2941 = vpack.c.b16 %v2739, %v2738
        %v2942 = vpack.c.b16 %v2741, %v2740
        %v2943 = vpack.c.b16 %v2743, %v2742
        %v2944 = vpack.c.b16 %v2745, %v2744
        %v2945 = vpack.c.b16 %v2747, %v2746
        %v2946 = vpack.c.b16 %v2749, %v2748
        %v2947 = vpack.c.b16 %v2751, %v2750
        %v2948 = vpack.c.b16 %v2753, %v2752
        %v2949 = vpack.c.b16 %v2755, %v2754
        %v2950 = vpack.c.b16 %v2757, %v2756
        %v2951 = vpack.c.b16 %v2759, %v2758
        %v2952 = vpack.c.b16 %v2761, %v2760
        %v2953 = vpack.c.b16 %v2763, %v2762
        %v2954 = vpack.c.b16 %v2765, %v2764
        %v2955 = vpack.c.b16 %v2767, %v2766
        %v2956 = vpack.c.b16 %v2769, %v2768
        %v2957 = vpack.c.b16 %v2771, %v2770
        %v2958 = vpack.c.b16 %v2773, %v2772
        %v2959 = vpack.c.b16 %v2775, %v2774
        %v2960 = vpack.c.b16 %v2777, %v2776
        %v2961 = vpack.c.b16 %v2779, %v2778
        %v2962 = vpack.c.b16 %v2781, %v2780
        %v2963 = vpack.c.b16 %v2783, %v2782
        %v2964 = vpack.c.b16 %v2785, %v2784
        %v2965 = vpack.c.b16 %v2787, %v2786
        %v2966 = vpack.c.b16 %v2789, %v2788
        %v2967 = vpack.c.b16 %v2791, %v2790
        %v2968 = vpack.c.b16 %v2793, %v2792
        %v2969 = vpack.c.b16 %v2795, %v2794
        %v2970 = vpack.c.b16 %v2797, %v2796
        %v2971 = vpack.c.b16 %v2799, %v2798
        %v2972 = vpack.c.b16 %v2801, %v2800
        %v2973 = vpack.c.b16 %v2803, %v2802
        %v2974 = vpack.c.b16 %v2805, %v2804
        %v2975 = vpack.c.b16 %v2807, %v2806
        %v2976 = vpack.c.b16 %v2809, %v2808
        %v2977 = vpack.c.b16 %v2811, %v2810
        %v2978 = vpack.c.b16 %v2813, %v2812
        %v2979 = vpack.c.b16 %v2815, %v2814
        %v2980 = vpack.c.b16 %v2817, %v2816
        %v2981 = vpack.c.b16 %v2819, %v2818
        %v2982 = vpack.c.b16 %v2821, %v2820
        %v2983 = vpack.c.b16 %v2823, %v2822
        %v2984 = vpack.c.b16 %v2825, %v2824
        %v2985 = vpack.c.b16 %v2827, %v2826
        %v2986 = vpack.c.b16 %v2829, %v2828
        %v2987 = vpack.c.b16 %v2831, %v2830
        %v2988 = vpack.c.b16 %v2833, %v2832
        %v2989 = vpack.c.b16 %v2835, %v2834
        %v2990 = vpack.c.b16 %v2837, %v2836
        %v2991 = vpack.c.b16 %v2839, %v2838
        %v2992 = vpack.c.b16 %v2841, %v2840
        %v2993 = vpack.c.b16 %v2843, %v2842
        %v2994 = vpack.c.b16 %v2845, %v2844
        %v2995 = vpack.c.b16 %v2847, %v2846
        %v2996 = vpack.c.b16 %v2849, %v2848
        %v2997 = vpack.c.b16 %v2851, %v2850
        %v2998 = vpack.c.b16 %v2853, %v2852
        %v2999 = vpack.c.b16 %v2855, %v2854
        %v3000 = vpack.c.b16 %v2857, %v2856
        %v3001 = vpack.c.b16 %v2859, %v2858
        %v3002 = vpack.c.b16 %v2861, %v2860
        %v3003 = vpack.c.b16 %v2863, %v2862
        %v3004 = vpack.c.b16 %v2865, %v2864
        %v3005 = vpack.c.b16 %v2867, %v2866
        %v3006 = vpack.c.b16 %v2869, %v2868
        %v3007 = vpack.c.b16 %v2871, %v2870
        %v3008 = vpack.c.b16 %v2873, %v2872
        %v3009 = vpack.c.b16 %v2875, %v2874
        %v3010 = vpack.c.b16 %v2877, %v2876
        %v3011 = vpack.c.b16 %v2879, %v2878
        %v3012 = vpack.c.b16 %v2881, %v2880
        %v3013 = vpack.c.b16 %v2883, %v2882
        %v3014 = vpack.c.b16 %v2885, %v2884
        %v3015 = vpack.c.b16 %v2887, %v2886
        %3144 = vmatprep.subr.bf16.mxu0 0
        %3145 = vmatpush1.bf16.msra.mxu0 %v2888
        %3146 = vmatprep.subr.bf16.mxu0 0
        %3147 = vmatpush1.bf16.msra.mxu0 %v2889
        %3148 = vmatprep.subr.bf16.mxu0 0
        %3149 = vmatpush1.bf16.msra.mxu0 %v2890
        %3150 = vmatprep.subr.bf16.mxu0 0
        %3151 = vmatpush1.bf16.msra.mxu0 %v2891
        %3152 = vmatprep.subr.bf16.mxu0 0
        %3153 = vmatpush1.bf16.msra.mxu0 %v2892
        %3154 = vmatprep.subr.bf16.mxu0 0
        %3155 = vmatpush1.bf16.msra.mxu0 %v2893
        %3156 = vmatprep.subr.bf16.mxu0 0
        %3157 = vmatpush1.bf16.msra.mxu0 %v2894
        %3158 = vmatprep.subr.bf16.mxu0 0
        %3159 = vmatpush1.bf16.msra.mxu0 %v2895
        %3160 = vmatprep.subr.bf16.mxu0 0
        %3161 = vmatpush1.bf16.msra.mxu0 %v2896
        %3162 = vmatprep.subr.bf16.mxu0 0
        %3163 = vmatpush1.bf16.msra.mxu0 %v2897
        %3164 = vmatprep.subr.bf16.mxu0 0
        %3165 = vmatpush1.bf16.msra.mxu0 %v2898
        %3166 = vmatprep.subr.bf16.mxu0 0
        %3167 = vmatpush1.bf16.msra.mxu0 %v2899
        %3168 = vmatprep.subr.bf16.mxu0 0
        %3169 = vmatpush1.bf16.msra.mxu0 %v2900
        %3170 = vmatprep.subr.bf16.mxu0 0
        %3171 = vmatpush1.bf16.msra.mxu0 %v2901
        %3172 = vmatprep.subr.bf16.mxu0 0
        %3173 = vmatpush1.bf16.msra.mxu0 %v2902
        %3174 = vmatprep.subr.bf16.mxu0 0
        %3175 = vmatpush1.bf16.msra.mxu0 %v2903
        %3176 = vmatprep.mubr.bf16.mxu0 %v2098
        %3177 = vmatmul.mubr.bf16.gmra.mrb[0].mxu0 %v2097
        %v3178 = vpop.f32.mrb[0].mxu0
        %v3179 = vadd.f32 %v2374, %v3178
        %v3180 = vpop.f32.mrb[0].mxu0
        %v3181 = vpop.f32.mrb[0].mxu0
        %v3182 = vpop.f32.mrb[0].mxu0
        %3183 = vdwg.mxu0
        %3184 = vmatprep.subr.bf16.mxu0 0
        %3185 = vmatpush1.bf16.msra.mxu0 %v2904
        %3186 = vmatprep.subr.bf16.mxu0 0
        %3187 = vmatpush1.bf16.msra.mxu0 %v2905
        %3188 = vmatprep.subr.bf16.mxu0 0
        %3189 = vmatpush1.bf16.msra.mxu0 %v2906
        %3190 = vmatprep.subr.bf16.mxu0 0
        %3191 = vmatpush1.bf16.msra.mxu0 %v2907
        %3192 = vmatprep.subr.bf16.mxu0 0
        %3193 = vmatpush1.bf16.msra.mxu0 %v2908
        %3194 = vmatprep.subr.bf16.mxu0 0
        %3195 = vmatpush1.bf16.msra.mxu0 %v2909
        %3196 = vmatprep.subr.bf16.mxu0 0
        %3197 = vmatpush1.bf16.msra.mxu0 %v2910
        %3198 = vmatprep.subr.bf16.mxu0 0
        %3199 = vmatpush1.bf16.msra.mxu0 %v2911
        %3200 = vmatprep.subr.bf16.mxu0 0
        %3201 = vmatpush1.bf16.msra.mxu0 %v2912
        %3202 = vmatprep.subr.bf16.mxu0 0
        %3203 = vmatpush1.bf16.msra.mxu0 %v2913
        %3204 = vmatprep.subr.bf16.mxu0 0
        %3205 = vmatpush1.bf16.msra.mxu0 %v2914
        %3206 = vmatprep.subr.bf16.mxu0 0
        %3207 = vmatpush1.bf16.msra.mxu0 %v2915
        %3208 = vmatprep.subr.bf16.mxu0 0
        %3209 = vmatpush1.bf16.msra.mxu0 %v2916
        %3210 = vmatprep.subr.bf16.mxu0 0
        %3211 = vmatpush1.bf16.msra.mxu0 %v2917
        %3212 = vmatprep.subr.bf16.mxu0 0
        %3213 = vmatpush1.bf16.msra.mxu0 %v2918
        %3214 = vmatprep.subr.bf16.mxu0 0
        %3215 = vmatpush1.bf16.msra.mxu0 %v2919
        %3216 = vmatprep.mubr.bf16.mxu0 %v2100
        %3217 = vmatmul.mubr.bf16.gmra.mrb[0].mxu0 %v2099
        %v3218 = vpop.f32.mrb[0].mxu0
        %v3219 = vadd.f32 %v3179, %v3218
        %v3220 = vpop.f32.mrb[0].mxu0
        %v3221 = vpop.f32.mrb[0].mxu0
        %v3222 = vpop.f32.mrb[0].mxu0
        %3223 = vdwg.mxu0
        %3224 = vmatprep.subr.bf16.mxu0 0
        %3225 = vmatpush1.bf16.msra.mxu0 %v2920
        %3226 = vmatprep.subr.bf16.mxu0 0
        %3227 = vmatpush1.bf16.msra.mxu0 %v2921
        %3228 = vmatprep.subr.bf16.mxu0 0
        %3229 = vmatpush1.bf16.msra.mxu0 %v2922
        %3230 = vmatprep.subr.bf16.mxu0 0
        %3231 = vmatpush1.bf16.msra.mxu0 %v2923
        %3232 = vmatprep.subr.bf16.mxu0 0
        %3233 = vmatpush1.bf16.msra.mxu0 %v2924
        %3234 = vmatprep.subr.bf16.mxu0 0
        %3235 = vmatpush1.bf16.msra.mxu0 %v2925
        %3236 = vmatprep.subr.bf16.mxu0 0
        %3237 = vmatpush1.bf16.msra.mxu0 %v2926
        %3238 = vmatprep.subr.bf16.mxu0 0
        %3239 = vmatpush1.bf16.msra.mxu0 %v2927
        %3240 = vmatprep.subr.bf16.mxu0 0
        %3241 = vmatpush1.bf16.msra.mxu0 %v2928
        %3242 = vmatprep.subr.bf16.mxu0 0
        %3243 = vmatpush1.bf16.msra.mxu0 %v2929
        %3244 = vmatprep.subr.bf16.mxu0 0
        %3245 = vmatpush1.bf16.msra.mxu0 %v2930
        %3246 = vmatprep.subr.bf16.mxu0 0
        %3247 = vmatpush1.bf16.msra.mxu0 %v2931
        %3248 = vmatprep.subr.bf16.mxu0 0
        %3249 = vmatpush1.bf16.msra.mxu0 %v2932
        %3250 = vmatprep.subr.bf16.mxu0 0
        %3251 = vmatpush1.bf16.msra.mxu0 %v2933
        %3252 = vmatprep.subr.bf16.mxu0 0
        %3253 = vmatpush1.bf16.msra.mxu0 %v2934
        %3254 = vmatprep.subr.bf16.mxu0 0
        %3255 = vmatpush1.bf16.msra.mxu0 %v2935
        %3256 = vmatprep.mubr.bf16.mxu0 %v2102
        %3257 = vmatmul.mubr.bf16.gmra.mrb[0].mxu0 %v2101
        %v3258 = vpop.f32.mrb[0].mxu0
        %v3259 = vadd.f32 %v3219, %v3258
        %v3260 = vpop.f32.mrb[0].mxu0
        %v3261 = vpop.f32.mrb[0].mxu0
        %v3262 = vpop.f32.mrb[0].mxu0
        %3263 = vdwg.mxu0
        %3264 = vmatprep.subr.bf16.mxu0 0
        %3265 = vmatpush1.bf16.msra.mxu0 %v2936
        %3266 = vmatprep.subr.bf16.mxu0 0
        %3267 = vmatpush1.bf16.msra.mxu0 %v2937
        %3268 = vmatprep.subr.bf16.mxu0 0
        %3269 = vmatpush1.bf16.msra.mxu0 %v2938
        %3270 = vmatprep.subr.bf16.mxu0 0
        %3271 = vmatpush1.bf16.msra.mxu0 %v2939
        %3272 = vmatprep.subr.bf16.mxu0 0
        %3273 = vmatpush1.bf16.msra.mxu0 %v2940
        %3274 = vmatprep.subr.bf16.mxu0 0
        %3275 = vmatpush1.bf16.msra.mxu0 %v2941
        %3276 = vmatprep.subr.bf16.mxu0 0
        %3277 = vmatpush1.bf16.msra.mxu0 %v2942
        %3278 = vmatprep.subr.bf16.mxu0 0
        %3279 = vmatpush1.bf16.msra.mxu0 %v2943
        %3280 = vmatprep.subr.bf16.mxu0 0
        %3281 = vmatpush1.bf16.msra.mxu0 %v2944
        %3282 = vmatprep.subr.bf16.mxu0 0
        %3283 = vmatpush1.bf16.msra.mxu0 %v2945
        %3284 = vmatprep.subr.bf16.mxu0 0
        %3285 = vmatpush1.bf16.msra.mxu0 %v2946
        %3286 = vmatprep.subr.bf16.mxu0 0
        %3287 = vmatpush1.bf16.msra.mxu0 %v2947
        %3288 = vmatprep.subr.bf16.mxu0 0
        %3289 = vmatpush1.bf16.msra.mxu0 %v2948
        %3290 = vmatprep.subr.bf16.mxu0 0
        %3291 = vmatpush1.bf16.msra.mxu0 %v2949
        %3292 = vmatprep.subr.bf16.mxu0 0
        %3293 = vmatpush1.bf16.msra.mxu0 %v2950
        %3294 = vmatprep.subr.bf16.mxu0 0
        %3295 = vmatpush1.bf16.msra.mxu0 %v2951
        %3296 = vmatprep.mubr.bf16.mxu0 %v2104
        %3297 = vmatmul.mubr.bf16.gmra.mrb[0].mxu0 %v2103
        %v3298 = vpop.f32.mrb[0].mxu0
        %v3299 = vadd.f32 %v3259, %v3298
        %v3300 = vpop.f32.mrb[0].mxu0
        %v3301 = vpop.f32.mrb[0].mxu0
        %v3302 = vpop.f32.mrb[0].mxu0
        %3303 = vdwg.mxu0
        %3304 = vmatprep.subr.bf16.mxu0 0
        %3305 = vmatpush1.bf16.msra.mxu0 %v2952
        %3306 = vmatprep.subr.bf16.mxu0 0
        %3307 = vmatpush1.bf16.msra.mxu0 %v2953
        %3308 = vmatprep.subr.bf16.mxu0 0
        %3309 = vmatpush1.bf16.msra.mxu0 %v2954
        %3310 = vmatprep.subr.bf16.mxu0 0
        %3311 = vmatpush1.bf16.msra.mxu0 %v2955
        %3312 = vmatprep.subr.bf16.mxu0 0
        %3313 = vmatpush1.bf16.msra.mxu0 %v2956
        %3314 = vmatprep.subr.bf16.mxu0 0
        %3315 = vmatpush1.bf16.msra.mxu0 %v2957
        %3316 = vmatprep.subr.bf16.mxu0 0
        %3317 = vmatpush1.bf16.msra.mxu0 %v2958
        %3318 = vmatprep.subr.bf16.mxu0 0
        %3319 = vmatpush1.bf16.msra.mxu0 %v2959
        %3320 = vmatprep.subr.bf16.mxu0 0
        %3321 = vmatpush1.bf16.msra.mxu0 %v2960
        %3322 = vmatprep.subr.bf16.mxu0 0
        %3323 = vmatpush1.bf16.msra.mxu0 %v2961
        %3324 = vmatprep.subr.bf16.mxu0 0
        %3325 = vmatpush1.bf16.msra.mxu0 %v2962
        %3326 = vmatprep.subr.bf16.mxu0 0
        %3327 = vmatpush1.bf16.msra.mxu0 %v2963
        %3328 = vmatprep.subr.bf16.mxu0 0
        %3329 = vmatpush1.bf16.msra.mxu0 %v2964
        %3330 = vmatprep.subr.bf16.mxu0 0
        %3331 = vmatpush1.bf16.msra.mxu0 %v2965
        %3332 = vmatprep.subr.bf16.mxu0 0
        %3333 = vmatpush1.bf16.msra.mxu0 %v2966
        %3334 = vmatprep.subr.bf16.mxu0 0
        %3335 = vmatpush1.bf16.msra.mxu0 %v2967
        %3336 = vmatprep.mubr.bf16.mxu0 %v2106
        %3337 = vmatmul.mubr.bf16.gmra.mrb[0].mxu0 %v2105
        %v3338 = vpop.f32.mrb[0].mxu0
        %v3339 = vadd.f32 %v3299, %v3338
        %v3340 = vpop.f32.mrb[0].mxu0
        %v3341 = vpop.f32.mrb[0].mxu0
        %v3342 = vpop.f32.mrb[0].mxu0
        %3343 = vdwg.mxu0
        %3344 = vmatprep.subr.bf16.mxu0 0
        %3345 = vmatpush1.bf16.msra.mxu0 %v2968
        %3346 = vmatprep.subr.bf16.mxu0 0
        %3347 = vmatpush1.bf16.msra.mxu0 %v2969
        %3348 = vmatprep.subr.bf16.mxu0 0
        %3349 = vmatpush1.bf16.msra.mxu0 %v2970
        %3350 = vmatprep.subr.bf16.mxu0 0
        %3351 = vmatpush1.bf16.msra.mxu0 %v2971
        %3352 = vmatprep.subr.bf16.mxu0 0
        %3353 = vmatpush1.bf16.msra.mxu0 %v2972
        %3354 = vmatprep.subr.bf16.mxu0 0
        %3355 = vmatpush1.bf16.msra.mxu0 %v2973
        %3356 = vmatprep.subr.bf16.mxu0 0
        %3357 = vmatpush1.bf16.msra.mxu0 %v2974
        %3358 = vmatprep.subr.bf16.mxu0 0
        %3359 = vmatpush1.bf16.msra.mxu0 %v2975
        %3360 = vmatprep.subr.bf16.mxu0 0
        %3361 = vmatpush1.bf16.msra.mxu0 %v2976
        %3362 = vmatprep.subr.bf16.mxu0 0
        %3363 = vmatpush1.bf16.msra.mxu0 %v2977
        %3364 = vmatprep.subr.bf16.mxu0 0
        %3365 = vmatpush1.bf16.msra.mxu0 %v2978
        %3366 = vmatprep.subr.bf16.mxu0 0
        %3367 = vmatpush1.bf16.msra.mxu0 %v2979
        %3368 = vmatprep.subr.bf16.mxu0 0
        %3369 = vmatpush1.bf16.msra.mxu0 %v2980
        %3370 = vmatprep.subr.bf16.mxu0 0
        %3371 = vmatpush1.bf16.msra.mxu0 %v2981
        %3372 = vmatprep.subr.bf16.mxu0 0
        %3373 = vmatpush1.bf16.msra.mxu0 %v2982
        %3374 = vmatprep.subr.bf16.mxu0 0
        %3375 = vmatpush1.bf16.msra.mxu0 %v2983
        %3376 = vmatprep.mubr.bf16.mxu0 %v2108
        %3377 = vmatmul.mubr.bf16.gmra.mrb[0].mxu0 %v2107
        %v3378 = vpop.f32.mrb[0].mxu0
        %v3379 = vadd.f32 %v3339, %v3378
        %v3380 = vpop.f32.mrb[0].mxu0
        %v3381 = vpop.f32.mrb[0].mxu0
        %v3382 = vpop.f32.mrb[0].mxu0
        %3383 = vdwg.mxu0
        %3384 = vmatprep.subr.bf16.mxu0 0
        %3385 = vmatpush1.bf16.msra.mxu0 %v2984
        %3386 = vmatprep.subr.bf16.mxu0 0
        %3387 = vmatpush1.bf16.msra.mxu0 %v2985
        %3388 = vmatprep.subr.bf16.mxu0 0
        %3389 = vmatpush1.bf16.msra.mxu0 %v2986
        %3390 = vmatprep.subr.bf16.mxu0 0
        %3391 = vmatpush1.bf16.msra.mxu0 %v2987
        %3392 = vmatprep.subr.bf16.mxu0 0
        %3393 = vmatpush1.bf16.msra.mxu0 %v2988
        %3394 = vmatprep.subr.bf16.mxu0 0
        %3395 = vmatpush1.bf16.msra.mxu0 %v2989
        %3396 = vmatprep.subr.bf16.mxu0 0
        %3397 = vmatpush1.bf16.msra.mxu0 %v2990
        %3398 = vmatprep.subr.bf16.mxu0 0
        %3399 = vmatpush1.bf16.msra.mxu0 %v2991
        %3400 = vmatprep.subr.bf16.mxu0 0
        %3401 = vmatpush1.bf16.msra.mxu0 %v2992
        %3402 = vmatprep.subr.bf16.mxu0 0
        %3403 = vmatpush1.bf16.msra.mxu0 %v2993
        %3404 = vmatprep.subr.bf16.mxu0 0
        %3405 = vmatpush1.bf16.msra.mxu0 %v2994
        %3406 = vmatprep.subr.bf16.mxu0 0
        %3407 = vmatpush1.bf16.msra.mxu0 %v2995
        %3408 = vmatprep.subr.bf16.mxu0 0
        %3409 = vmatpush1.bf16.msra.mxu0 %v2996
        %3410 = vmatprep.subr.bf16.mxu0 0
        %3411 = vmatpush1.bf16.msra.mxu0 %v2997
        %3412 = vmatprep.subr.bf16.mxu0 0
        %3413 = vmatpush1.bf16.msra.mxu0 %v2998
        %3414 = vmatprep.subr.bf16.mxu0 0
        %3415 = vmatpush1.bf16.msra.mxu0 %v2999
        %3416 = vmatprep.mubr.bf16.mxu0 %v2110
        %3417 = vmatmul.mubr.bf16.gmra.mrb[0].mxu0 %v2109
        %v3418 = vpop.f32.mrb[0].mxu0
        %v3419 = vadd.f32 %v3379, %v3418
        %v3420 = vpop.f32.mrb[0].mxu0
        %v3421 = vpop.f32.mrb[0].mxu0
        %v3422 = vpop.f32.mrb[0].mxu0
        %3423 = vdwg.mxu0
        %3424 = vmatprep.subr.bf16.mxu0 0
        %3425 = vmatpush1.bf16.msra.mxu0 %v3000
        %3426 = vmatprep.subr.bf16.mxu0 0
        %3427 = vmatpush1.bf16.msra.mxu0 %v3001
        %3428 = vmatprep.subr.bf16.mxu0 0
        %3429 = vmatpush1.bf16.msra.mxu0 %v3002
        %3430 = vmatprep.subr.bf16.mxu0 0
        %3431 = vmatpush1.bf16.msra.mxu0 %v3003
        %3432 = vmatprep.subr.bf16.mxu0 0
        %3433 = vmatpush1.bf16.msra.mxu0 %v3004
        %3434 = vmatprep.subr.bf16.mxu0 0
        %3435 = vmatpush1.bf16.msra.mxu0 %v3005
        %3436 = vmatprep.subr.bf16.mxu0 0
        %3437 = vmatpush1.bf16.msra.mxu0 %v3006
        %3438 = vmatprep.subr.bf16.mxu0 0
        %3439 = vmatpush1.bf16.msra.mxu0 %v3007
        %3440 = vmatprep.subr.bf16.mxu0 0
        %3441 = vmatpush1.bf16.msra.mxu0 %v3008
        %3442 = vmatprep.subr.bf16.mxu0 0
        %3443 = vmatpush1.bf16.msra.mxu0 %v3009
        %3444 = vmatprep.subr.bf16.mxu0 0
        %3445 = vmatpush1.bf16.msra.mxu0 %v3010
        %3446 = vmatprep.subr.bf16.mxu0 0
        %3447 = vmatpush1.bf16.msra.mxu0 %v3011
        %3448 = vmatprep.subr.bf16.mxu0 0
        %3449 = vmatpush1.bf16.msra.mxu0 %v3012
        %3450 = vmatprep.subr.bf16.mxu0 0
        %3451 = vmatpush1.bf16.msra.mxu0 %v3013
        %3452 = vmatprep.subr.bf16.mxu0 0
        %3453 = vmatpush1.bf16.msra.mxu0 %v3014
        %3454 = vmatprep.subr.bf16.mxu0 0
        %3455 = vmatpush1.bf16.msra.mxu0 %v3015
        %3456 = vmatprep.mubr.bf16.mxu0 %v2112
        %3457 = vmatmul.mubr.bf16.gmra.mrb[0].mxu0 %v2111
        %v3458 = vpop.f32.mrb[0].mxu0
        %v3459 = vadd.f32 %v3419, %v3458
        %v3460 = vpop.f32.mrb[0].mxu0
        %v3461 = vpop.f32.mrb[0].mxu0
        %v3462 = vpop.f32.mrb[0].mxu0
        %3463 = vdwg.mxu0
        %v3464 = vadd.f32 %v3459, %v1472
        %v3465 = vsel %vm872, %v3464, 0.0
        %3466 = vadd.xlane.f32.xlu0 %v3465
        %v3467 = vpop.xlane.xlu0 %3466
        %v3468 = vmul.f32 %v3467, %v1446
        %v3469 = vsub.f32 %v3464, %v3468
        %v3470 = vmul.f32 %v3469, %v3469
        %v3471 = vsel %vm872, %v3470, 0.0
        %3472 = vadd.xlane.f32.xlu0 %v3471
        %v3473 = vpop.xlane.xlu0 %3472
        %v3474 = vmul.f32 %v3473, %v1446
        %v3475 = vadd.f32 %v3474, 1e-05
        %v3476 = vrsqrt.pop %v3475
        %v3477 = vmul.f32 %v3469, %v3476
        %v3478 = vld [vmem:[%s773] sm:$0x1]
        %v3480 = vlaneseq
        %v3481 = vshrl.u32 %v3480, 7
        %v3482 = vsub.s32 0, %v3481
        %v3483 = vrot.slane %v3478, %v3482
        %v3485 = vmul.f32 %v3477, %v3483
        %v3486 = vld [vmem:[%s776] sm:$0x1]
        %v3488 = vlaneseq
        %v3489 = vshrl.u32 %v3488, 7
        %v3490 = vsub.s32 0, %v3489
        %v3491 = vrot.slane %v3486, %v3490
        %v3493 = vadd.f32 %v3485, %v3491
        %3494 = vst.msk [vmem:[#allocation2] sm:$0xff] %vm872, %v3493
        %p3495 = scmp.eq.s32.totalorder %s37, 1
        // Predicated region
        $region97: #{transformer_predictor_forward.1} parent=91 // pred_check
          %p3496 = pneg %p3495
        $region98: #{transformer_predictor_forward.1} parent=91 // pred_check_branch
          %3498 = sbr.rel (%p3496) target = $region100
        $region99: #{transformer_predictor_forward.1} parent=91 // pred_region
          %v3499 = vsel %vm872, %v3493, 0.0
          %v3500 = vrot.slane %v3499, 4
          %v3501 = vadd.f32 %v3499, %v3500
          %v3502 = vrot.slane %v3501, 2
          %v3503 = vadd.f32 %v3501, %v3502
          %v3504 = vrot.slane %v3503, 1
          %v3505 = vadd.f32 %v3503, %v3504
          %v3506 = vrcp.pop 8.0
          %v3507 = vmul.f32 %v3505, %v3506
          %v3508 = vpack.c.bf16 %v3507, %v3507
          %v3509 = vld [vmem:[%s16] sm:$0xf]
          %v3510 = vld [vmem:[%s16 + $0x4] sm:$0xf]
          %v3511 = vld [vmem:[%s16 + $0x8] sm:$0xf]
          %v3512 = vld [vmem:[%s16 + $0xc] sm:$0xf]
          %v3513 = vld [vmem:[%s17] sm:$0x1]
          %v3518 = vunpack.c.l.b16 %v3509
          %v3519 = vunpack.c.l.b16 %v3510
          %v3520 = vunpack.c.l.b16 %v3511
          %v3521 = vunpack.c.l.b16 %v3512
          %v3522 = vpack.c.b16 %v3519, %v3518
          %v3523 = vpack.c.b16 %v3521, %v3520
          %v3527 = vsel %vm872, %v3508, 0
          %3529 = vmatprep.subr.bf16.mxu0 0
          %3530 = vmatpush1.bf16.msra.mxu0 %v3522
          %3531 = vmatprep.subr.bf16.mxu0 0
          %3532 = vmatpush1.bf16.msra.mxu0 %v3523
          %3533 = vmatprep.subr.bf16.mxu0 0
          %3534 = vmatpush1.bf16.msra.mxu0 0
          %3535 = vmatprep.subr.bf16.mxu0 0
          %3536 = vmatpush1.bf16.msra.mxu0 0
          %3537 = vmatprep.subr.bf16.mxu0 0
          %3538 = vmatpush1.bf16.msra.mxu0 0
          %3539 = vmatprep.subr.bf16.mxu0 0
          %3540 = vmatpush1.bf16.msra.mxu0 0
          %3541 = vmatprep.subr.bf16.mxu0 0
          %3542 = vmatpush1.bf16.msra.mxu0 0
          %3543 = vmatprep.subr.bf16.mxu0 0
          %3544 = vmatpush1.bf16.msra.mxu0 0
          %3545 = vmatprep.subr.bf16.mxu0 0
          %3546 = vmatpush1.bf16.msra.mxu0 0
          %3547 = vmatprep.subr.bf16.mxu0 0
          %3548 = vmatpush1.bf16.msra.mxu0 0
          %3549 = vmatprep.subr.bf16.mxu0 0
          %3550 = vmatpush1.bf16.msra.mxu0 0
          %3551 = vmatprep.subr.bf16.mxu0 0
          %3552 = vmatpush1.bf16.msra.mxu0 0
          %3553 = vmatprep.subr.bf16.mxu0 0
          %3554 = vmatpush1.bf16.msra.mxu0 0
          %3555 = vmatprep.subr.bf16.mxu0 0
          %3556 = vmatpush1.bf16.msra.mxu0 0
          %3557 = vmatprep.subr.bf16.mxu0 0
          %3558 = vmatpush1.bf16.msra.mxu0 0
          %3559 = vmatprep.subr.bf16.mxu0 0
          %3560 = vmatpush1.bf16.msra.mxu0 0
          %3561 = vmatprep.mubr.bf16.mxu0 0
          %3562 = vmatmul.mubr.bf16.gmra.mrb[0].mxu0 %v3527
          %v3563 = vpop.f32.mrb[0].mxu0
          %v3564 = vadd.f32 %v3513, %v3563
          %v3565 = vpop.f32.mrb[0].mxu0
          %v3566 = vpop.f32.mrb[0].mxu0
          %v3567 = vpop.f32.mrb[0].mxu0
          %3568 = vdwg.mxu0
          %vm3569 = vcmask 24576
          %3570 = vst.msk [vmem:[%s727] sm:$0x1] %vm3569, %v3564
        $region100: #{transformer_predictor_forward.1} parent=91 // pred_fallthru
          _
        %s3571 = sand.u32 %s495, 1
        %s3572 = scalar_lea.sflag [#allocation4], %s3571
        %s3573 = sand.u32 %s495, 1
        %s3574 = scalar_lea.vmem [#allocation3], %s3573
        // Predicated region
        $region101: #{transformer_predictor_forward.1} parent=91 // pred_check
          %p3575 = pneg %p505
        $region102: #{transformer_predictor_forward.1} parent=91 // pred_check_branch
          %3577 = sbr.rel (%p3575) target = $region104
        $region103: #{transformer_predictor_forward.1} parent=91 // pred_region
          %s3579 = ssub.s32 16, 16
          %3580 = vsyncadd %s3572, %s3579
          %s3581 = smul.addr %s36, 16
          %s3582 = scalar_lea.hbm %s18, %s3581
          %s3584 = sshll.u32 %s3574, 4
          %s3585 = int_to_ptr.vmem [resolvable:$true] %s3584
          %3587 = dma.vmem_to_hbm [thread:$0]  %s3585, 16, %s3582, %s3572
        $region104: #{transformer_predictor_forward.1} parent=91 // pred_fallthru
          _
      $region92: #{transformer_predictor_forward.1} parent=5 // pred_fallthru
        _
      %p3588 = scmp.le.s32.totalorder 2, %s27
      // Predicated region
      $region105: #{transformer_predictor_forward.1} parent=5 // pred_check
        %p3589 = pneg %p3588
      $region106: #{transformer_predictor_forward.1} parent=5 // pred_check_branch
        %3591 = sbr.rel (%p3589) target = $region108
      $region107: #{transformer_predictor_forward.1} parent=5 // pred_region
        %s3592 = ssub.s32 %s27, 2
        // Predicated region
        $region109: #{transformer_predictor_forward.1} parent=107 // pred_check
          %p3593 = pneg %p511
        $region110: #{transformer_predictor_forward.1} parent=107 // pred_check_branch
          %3595 = sbr.rel (%p3593) target = $region112
        $region111: #{transformer_predictor_forward.1} parent=107 // pred_region
          %s3596 = sand.u32 %s496, 1
          %s3597 = scalar_lea.sflag [#allocation4], %s3596
          %s3598 = sand.u32 %s496, 1
          %s3599 = scalar_lea.vmem [#allocation3], %s3598
          %3600 = dma.done %s3597, 16
        $region112: #{transformer_predictor_forward.1} parent=107 // pred_fallthru
          _
      $region108: #{transformer_predictor_forward.1} parent=5 // pred_fallthru
        _
    $region6: #{transformer_predictor_forward.1} parent=1 // loop_footer
      %s31 = sadd.s32 1, %s27
    $region7: #{transformer_predictor_forward.1} parent=1 // loop_footer_branch
      %26 = sbr.rel target = $region3
    $region8: #{transformer_predictor_forward.1} parent=1 // loop_exit
      _
    %3601 = vsyncpa [#allocation4], 1
    %s3602 = scalar_lea.sflag [#allocation4], 1
    %3603 = vsyncpa %s3602, 1

</llo_original>
